<compile_context>
chip_gen: v7x
topology: tpu7x:2x2x1
jax: 0.10.0
libtpu: 0.0.40
codegen_flags: <defaults>
</compile_context>

<pallas_src>
import jax
import jax.numpy as jnp
import numpy as np
from jax.experimental import pallas as pl
from jax.experimental.pallas import tpu as pltpu


def _pick_block_b(b, target=128):
    """Largest divisor of b that is <= target, but keep >= 2 grid steps when possible
    (v7x has 2 TensorCores; a single-step grid leaves one idle)."""
    divisors = [d for d in range(1, b + 1) if b % d == 0 and d <= target]
    best = max(divisors) if divisors else 1
    if best == b and b > 1:
        smaller = [d for d in divisors if d < b]
        if smaller:
            best = max(smaller)
    return best


def _decision_core(i, state, aemb_k, pas_e, alive_mask, params, block_b=None):
    """Fused Pallas kernel.

    Returns (decision_avr (B,K,H), decision_max (B,K,H), logit (B,K,1)) where K = E + A.
    """
    B, A, H = state.shape
    E = params["self_emb"].shape[0]
    K = E + A
    dtype = state.dtype
    f32 = jnp.float32
    inv_a = 1.0 / A

    if block_b is None:
        block_b = _pick_block_b(B)
    assert B % block_b == 0, (B, block_b)
    grid = (B // block_b,)

    alive3 = alive_mask.astype(dtype).reshape(B, A, 1)

    # Static (agent, decision) selection masks, built host-side (no in-kernel iota).
    #   sel_self[a, k] = (a == i)         -> use the active decision row
    #   sel_tgt [a, k] = (k == E + a)     -> decision k targets agent a -> "hit" passive
    a_idx = np.arange(A)[:, None]
    k_idx = np.arange(K)[None, :]
    sel_self = jnp.asarray(np.broadcast_to(a_idx == i, (A, K)).astype(np.float32)[..., None])
    sel_tgt = jnp.asarray((k_idx == (E + a_idx)).astype(np.float32)[..., None])

    # Split every fused Linear so the kernel never concatenates along the lane axis.
    W1 = params["W1"]
    b1 = params["b1"].reshape(1, H)
    W2a, W2m = params["W2"][:, :H], params["W2"][:, H:]          # mean half / max half
    b2a, b2m = params["b2"][:H].reshape(1, H), params["b2"][H:].reshape(1, H)
    Wl1a, Wl1m = params["Wl1"][:H, :], params["Wl1"][H:, :]      # [avr | max] concat -> 2 matmuls
    bl1 = params["bl1"].reshape(1, H)
    Wl2 = params["Wl2"].reshape(H, 1)
    bl2 = params["bl2"].reshape(1, 1)
    self_emb = params["self_emb"]

    def kernel(state_ref, aemb_ref, pemb_ref, alive_ref, sself_ref, stgt_ref, semb_ref,
               w1_ref, b1_ref, w2a_ref, b2a_ref, w2m_ref, b2m_ref,
               wl1a_ref, wl1m_ref, bl1_ref, wl2_ref, bl2_ref,
               avr_ref, max_ref, logit_ref):
        bt = state_ref.shape[0]

        st = state_ref[...].astype(f32)          # (bt, A, H)
        ae = aemb_ref[...].astype(f32)           # (bt, A, H)   active embeds (+ self passive at row i)
        pe = pemb_ref[...].astype(f32)           # (bt, A, H)   passive embeds
        m_all = alive_ref[...].astype(f32)       # (bt, A, 1)

        st_i = st[:, i:i + 1, :]                 # (bt, 1, H)   acting agent's state
        m_i = m_all[:, i:i + 1, :]               # (bt, 1, 1)

        # Decision-encoder inputs (agent/decision axes are leading/sublane, H on lanes).
        x_act = jnp.concatenate([st_i + semb_ref[...].astype(f32)[None],    # k <  E
                                 st_i + ae], axis=1)                        # k >= E  -> (bt, K, H)
        x_pas = jnp.concatenate([st, st + pe], axis=1)                      # (bt, 2A, H)

        w1 = w1_ref[...]
        b1_ = b1_ref[...]
        w2a = w2a_ref[...]
        b2a_ = b2a_ref[...]
        w2m = w2m_ref[...]
        b2m_ = b2m_ref[...]

        def mlp(x3):
            # Linear(H,H)+ReLU then Linear(H,2H)+ReLU with the output Linear pre-split
            # into the mean / max halves (columns :H and H:), so no lane concat or slice.
            r = x3.shape[1]
            x2 = x3.reshape(bt * r, H)
            h = jnp.maximum(jnp.dot(x2, w1, preferred_element_type=f32) + b1_, 0.0)
            ya = jnp.maximum(jnp.dot(h, w2a, preferred_element_type=f32) + b2a_, 0.0)
            ym = jnp.maximum(jnp.dot(h, w2m, preferred_element_type=f32) + b2m_, 0.0)
            return ya.reshape(bt, r, H), ym.reshape(bt, r, H)

        ad_a, ad_m = mlp(x_act)                      # (bt, K, H)  active decisions
        p_a, p_m = mlp(x_pas)                        # (bt, 2A, H) passive decisions
        d0_a, d1_a = p_a[:, :A, :], p_a[:, A:, :]    # "not targeted" / "targeted" passive
        d0_m, d1_m = p_m[:, :A, :], p_m[:, A:, :]

        # Multiplicative alive mask (exactly the torch semantics).
        ad_a = ad_a * m_i
        ad_m = ad_m * m_i
        d0_a = d0_a * m_all
        d1_a = d1_a * m_all
        d0_m = d0_m * m_all
        d1_m = d1_m * m_all

        s_self = sself_ref[...][None] > 0.5          # (1, A, K, 1)
        s_tgt = stgt_ref[...][None] > 0.5

        def pooled(ad, d0, d1, reduce_fn):
            # decision[b, a, k] = ad[b, k]  if a == i
            #                   = d1[b, a]  if k == E + a
            #                   = d0[b, a]  otherwise
            dec = jnp.where(s_self, ad[:, None, :, :],
                            jnp.where(s_tgt, d1[:, :, None, :], d0[:, :, None, :]))
            return reduce_fn(dec)                    # reduce over the LEADING agent axis

        avr = pooled(ad_a, d0_a, d1_a, lambda d: jnp.sum(d, axis=1) * inv_a)   # (bt, K, H)
        mx = pooled(ad_m, d0_m, d1_m, lambda d: jnp.max(d, axis=1))            # (bt, K, H)

        avr_ref[...] = avr.astype(avr_ref.dtype)
        max_ref[...] = mx.astype(max_ref.dtype)

        # Logit encoder: Linear(2H,H)+ReLU+Linear(H,1) with the first Linear split so the
        # [avr | max] lane concat becomes two matmuls summed into one accumulator.
        avr2 = avr.reshape(bt * K, H)
        mx2 = mx.reshape(bt * K, H)
        hl = jnp.maximum(
            jnp.dot(avr2, wl1a_ref[...], preferred_element_type=f32)
            + jnp.dot(mx2, wl1m_ref[...], preferred_element_type=f32)
            + bl1_ref[...], 0.0)                                                # (bt*K, H)
        logit = jnp.dot(hl, wl2_ref[...], preferred_element_type=f32) + bl2_ref[...]
        logit_ref[...] = logit.reshape(bt, K, 1).astype(logit_ref.dtype)

    batch3 = lambda b: (b, 0, 0)
    const3 = lambda b: (0, 0, 0)
    const2 = lambda b: (0, 0)

    return pl.pallas_call(
        kernel,
        grid=grid,
        in_specs=[
            pl.BlockSpec((block_b, A, H), batch3),   # state
            pl.BlockSpec((block_b, A, H), batch3),   # active embeds (scatter_add of self passive applied)
            pl.BlockSpec((block_b, A, H), batch3),   # passive embeds
            pl.BlockSpec((block_b, A, 1), batch3),   # alive mask
            pl.BlockSpec((A, K, 1), const3),         # sel: a == i
            pl.BlockSpec((A, K, 1), const3),         # sel: k == E + a
            pl.BlockSpec((E, H), const2),            # self action embeds (parameter)
            pl.BlockSpec((H, H), const2),            # W1
            pl.BlockSpec((1, H), const2),            # b1
            pl.BlockSpec((H, H), const2),            # W2 (mean half)
            pl.BlockSpec((1, H), const2),            # b2 (mean half)
            pl.BlockSpec((H, H), const2),            # W2 (max half)
            pl.BlockSpec((1, H), const2),            # b2 (max half)
            pl.BlockSpec((H, H), const2),            # Wl1 (avr half)
            pl.BlockSpec((H, H), const2),            # Wl1 (max half)
            pl.BlockSpec((1, H), const2),            # bl1
            pl.BlockSpec((H, 1), const2),            # Wl2
            pl.BlockSpec((1, 1), const2),            # bl2
        ],
        out_specs=(
            pl.BlockSpec((block_b, K, H), batch3),
            pl.BlockSpec((block_b, K, H), batch3),
            pl.BlockSpec((block_b, K, 1), batch3),
        ),
        out_shape=(
            jax.ShapeDtypeStruct((B, K, H), dtype),
            jax.ShapeDtypeStruct((B, K, H), dtype),
            jax.ShapeDtypeStruct((B, K, 1), dtype),
        ),
        compiler_params=pltpu.CompilerParams(dimension_semantics=("parallel",)),
    )(state, aemb_k, pas_e, alive3, sel_self, sel_tgt, self_emb,
      W1, b1, W2a, b2a, W2m, b2m, Wl1a, Wl1m, bl1, Wl2, bl2)


def decision_encoder_forward(i, state, action_embed, alive_mask, action_mask, params,
                             action=None, update_state=True, block_b=None):
    """Kernel-backed DecisionEncoder.forward. Returns (state, decision, logit, action)."""
    B, A, H = state.shape
    E = params["self_emb"].shape[0]
    K = E + A

    act_e = action_embed[..., :H]          # active half
    pas_e = action_embed[..., H:]          # passive half
    # torch: active_embed_.scatter_add_ at row E+i with the acting agent's passive embed.
    aemb_k = act_e.at[:, i, :].add(pas_e[:, i, :])

    d_avr, d_max, logit3 = _decision_core(i, state, aemb_k, pas_e, alive_mask, params,
                                          block_b=block_b)
    logit = logit3[..., 0]                 # (B, K)

    if action is None:
        # ActionSampler(type='arg_max').
        # TODO(synk): eps_greedy / boltzman sampling (torch.multinomial RNG) not implemented.
        action = jnp.argmax(logit - 1e9 * (1.0 - action_mask.astype(logit.dtype)), axis=-1)

    onehot = jax.nn.one_hot(action, K, dtype=state.dtype)          # (B, K)

    new_state = state
    if update_state:
        active_embed_ = jnp.concatenate(
            [jnp.broadcast_to(params["self_emb"][None], (B, E, H)), act_e], axis=1)  # (B, K, H)
        chosen_active = jnp.einsum("bk,bkh->bh", onehot, active_embed_)
        new_state = new_state.at[:, i, :].add(chosen_active)
        new_state = new_state + onehot[:, E:, None] * pas_e        # passive hit on the target agent

    dec_sel = jnp.concatenate([jnp.einsum("bk,bkh->bh", onehot, d_avr),
                               jnp.einsum("bk,bkh->bh", onehot, d_max)], axis=-1)
    decision_out = dec_sel[:, None, :]                              # (B, 1, 2H)
    return new_state, decision_out, logit, action


def decision_encoder_reference(i, state, action_embed, alive_mask, action_mask, params,
                               action=None, update_state=True):
    """Pure-JAX transcription of the torch DecisionEncoder.forward (for verification)."""
    B, A, H = state.shape
    E = params["self_emb"].shape[0]
    K = E + A
    act_e = action_embed[..., :H]
    pas_e = action_embed[..., H:]

    def mlp(x):
        h = jax.nn.relu(jnp.matmul(x, params["W1"]) + params["b1"])
        return jax.nn.relu(jnp.matmul(h, params["W2"]) + params["b2"])

    def logit_enc(x):
        h = jax.nn.relu(jnp.matmul(x, params["Wl1"]) + params["bl1"])
        return (jnp.matmul(h, params["Wl2"]) + params["bl2"])[..., 0]

    active_self = jnp.broadcast_to(params["self_emb"][None, None], (B, 1, E, H))
    active_embed_ = jnp.concatenate([active_self, act_e[:, None]], axis=2)       # (B,1,K,H)
    active_embed = active_embed_.at[:, 0, E + i, :].add(pas_e[:, i, :])
    passive_none = jnp.zeros((B, A, 1, H), state.dtype)
    passive_embed = jnp.concatenate([passive_none, pas_e[:, :, None]], axis=2)   # (B,A,2,H)

    active_state = state[:, i][:, None, None, :] + active_embed
    passive_state = state[:, :, None, :] + passive_embed
    active_decision = mlp(active_state)                                          # (B,1,K,2H)
    passive_decision = mlp(passive_state)                                        # (B,A,2,2H)

    sel = (jnp.arange(K)[None, :] == (E + jnp.arange(A))[:, None])               # passive_map
    decision = jnp.where(sel[None, :, :, None],
                         passive_decision[:, :, 1:2, :],
                         passive_decision[:, :, 0:1, :])                         # (B,A,K,2H)
    decision = decision.at[:, i, :, :].set(active_decision[:, 0])

    m = alive_mask[:, :, None, None]
    d_avr = (decision[..., :H] * m).mean(axis=1)
    d_max = (decision[..., H:] * m).max(axis=1)
    dec = jnp.concatenate([d_avr, d_max], axis=-1)                               # (B,K,2H)
    logit = logit_enc(dec)                                                       # (B,K)

    if action is None:
        action = jnp.argmax(logit - 1e9 * (1.0 - action_mask), axis=-1)

    new_state = state
    if update_state:
        chosen_active = active_embed_[jnp.arange(B), 0, action]                  # (B,H) (pre scatter_add)
        new_state = new_state.at[:, i, :].add(chosen_active)
        pas_sel = (action[:, None] == (E + jnp.arange(A))[None, :]).astype(state.dtype)
        new_state = new_state + pas_sel[:, :, None] * pas_e

    decision_out = dec[jnp.arange(B), action][:, None, :]
    return new_state, decision_out, logit, action


if __name__ == "__main__":
    B, A, E, H = 8, 8, 8, 32     # batch, agent_num, embed_num, hidden_len  (K = E + A = 16)
    i = 2                        # acting agent index ("i" argument of forward)

    key = jax.random.PRNGKey(0)
    ks = jax.random.split(key, 13)

    state = jax.random.normal(ks[0], (B, A, H), dtype=jnp.float32)
    action_embed = jax.random.normal(ks[1], (B, A, 2 * H), dtype=jnp.float32)
    alive_mask = (jax.random.uniform(ks[2], (B, A)) > 0.25).astype(jnp.float32)
    action_mask = (jax.random.uniform(ks[3], (B, E + A)) > 0.3).astype(jnp.float32)
    action_mask = action_mask.at[:, 0].set(1.0)   # at least one legal action per row

    def uinit(k, fan_in, shape):
        bound = 1.0 / np.sqrt(fan_in)
        return jax.random.uniform(k, shape, jnp.float32, minval=-bound, maxval=bound)

    params = {
        # nn.Parameter(1,1,E,H) with kaiming_normal_(fan_out): std ~ sqrt(2/H)
        "self_emb": jax.random.normal(ks[4], (E, H), jnp.float32) * np.sqrt(2.0 / H),
        # decision encoder MLP(H, H, 2H, 2, ReLU) -> Linear(H,H)+ReLU, Linear(H,2H)+ReLU
        # (weights stored (in, out), i.e. W = W_torch.T)
        "W1": uinit(ks[5], H, (H, H)),
        "b1": uinit(ks[6], H, (H,)),
        "W2": uinit(ks[7], H, (H, 2 * H)),
        "b2": uinit(ks[8], H, (2 * H,)),
        # logit encoder: Linear(2H,H)+ReLU, Linear(H,1)
        "Wl1": uinit(ks[9], 2 * H, (2 * H, H)),
        "bl1": uinit(ks[10], 2 * H, (H,)),
        "Wl2": uinit(ks[11], H, (H, 1)),
        "bl2": uinit(ks[12], H, (1,)),
    }

    out = decision_encoder_forward(i, state, action_embed, alive_mask, action_mask, params)
    new_state, decision, logit, action = jax.block_until_ready(out)

    ref = decision_encoder_reference(i, state, action_embed, alive_mask, action_mask, params)
    ref_state, ref_decision, ref_logit, ref_action = jax.block_until_ready(ref)

    np.testing.assert_allclose(np.asarray(logit), np.asarray(ref_logit), rtol=1e-5, atol=1e-5)
    np.testing.assert_array_equal(np.asarray(action), np.asarray(ref_action))
    np.testing.assert_allclose(np.asarray(decision), np.asarray(ref_decision), rtol=1e-5, atol=1e-5)
    np.testing.assert_allclose(np.asarray(new_state), np.asarray(ref_state), rtol=1e-5, atol=1e-5)

    print("KERNEL_OK")
</pallas_src>

<mosaic_0001>
module attributes {stable_mosaic.version = 11 : i64} {
  func.func @kernel(%arg0: i32, %arg1: memref<4x8x32xf32, #tpu.memory_space<vmem>>, %arg2: memref<4x8x32xf32, #tpu.memory_space<vmem>>, %arg3: memref<4x8x32xf32, #tpu.memory_space<vmem>>, %arg4: memref<4x8x1xf32, #tpu.memory_space<vmem>>, %arg5: memref<8x16x1xf32, #tpu.memory_space<vmem>>, %arg6: memref<8x16x1xf32, #tpu.memory_space<vmem>>, %arg7: memref<8x32xf32, #tpu.memory_space<vmem>>, %arg8: memref<32x32xf32, #tpu.memory_space<vmem>>, %arg9: memref<1x32xf32, #tpu.memory_space<vmem>>, %arg10: memref<32x32xf32, #tpu.memory_space<vmem>>, %arg11: memref<1x32xf32, #tpu.memory_space<vmem>>, %arg12: memref<32x32xf32, #tpu.memory_space<vmem>>, %arg13: memref<1x32xf32, #tpu.memory_space<vmem>>, %arg14: memref<32x32xf32, #tpu.memory_space<vmem>>, %arg15: memref<32x32xf32, #tpu.memory_space<vmem>>, %arg16: memref<1x32xf32, #tpu.memory_space<vmem>>, %arg17: memref<32x1xf32, #tpu.memory_space<vmem>>, %arg18: memref<1x1xf32, #tpu.memory_space<vmem>>, %arg19: memref<4x16x32xf32, #tpu.memory_space<vmem>>, %arg20: memref<4x16x32xf32, #tpu.memory_space<vmem>>, %arg21: memref<4x16x1xf32, #tpu.memory_space<vmem>>) attributes {dimension_semantics = [#tpu.dimension_semantics<parallel>], iteration_bounds = array<i64: 2>, scalar_prefetch = 0 : i64, scratch_operands = 0 : i64, tpu.core_type = #tpu.core_type<tc>, window_params = [{transform_indices = @transform_0, window_bounds = array<i64: 4, 8, 32>}, {transform_indices = @transform_1, window_bounds = array<i64: 4, 8, 32>}, {transform_indices = @transform_2, window_bounds = array<i64: 4, 8, 32>}, {transform_indices = @transform_3, window_bounds = array<i64: 4, 8, 1>}, {pipeline_mode = #tpu.pipeline_mode<synchronous>, transform_indices = @transform_4, window_bounds = array<i64: 8, 16, 1>}, {pipeline_mode = #tpu.pipeline_mode<synchronous>, transform_indices = @transform_5, window_bounds = array<i64: 8, 16, 1>}, {pipeline_mode = #tpu.pipeline_mode<synchronous>, transform_indices = @transform_6, window_bounds = array<i64: 8, 32>}, {pipeline_mode = #tpu.pipeline_mode<synchronous>, transform_indices = @transform_7, window_bounds = array<i64: 32, 32>}, {pipeline_mode = #tpu.pipeline_mode<synchronous>, transform_indices = @transform_8, window_bounds = array<i64: 1, 32>}, {pipeline_mode = #tpu.pipeline_mode<synchronous>, transform_indices = @transform_9, window_bounds = array<i64: 32, 32>}, {pipeline_mode = #tpu.pipeline_mode<synchronous>, transform_indices = @transform_10, window_bounds = array<i64: 1, 32>}, {pipeline_mode = #tpu.pipeline_mode<synchronous>, transform_indices = @transform_11, window_bounds = array<i64: 32, 32>}, {pipeline_mode = #tpu.pipeline_mode<synchronous>, transform_indices = @transform_12, window_bounds = array<i64: 1, 32>}, {pipeline_mode = #tpu.pipeline_mode<synchronous>, transform_indices = @transform_13, window_bounds = array<i64: 32, 32>}, {pipeline_mode = #tpu.pipeline_mode<synchronous>, transform_indices = @transform_14, window_bounds = array<i64: 32, 32>}, {pipeline_mode = #tpu.pipeline_mode<synchronous>, transform_indices = @transform_15, window_bounds = array<i64: 1, 32>}, {pipeline_mode = #tpu.pipeline_mode<synchronous>, transform_indices = @transform_16, window_bounds = array<i64: 32, 1>}, {pipeline_mode = #tpu.pipeline_mode<synchronous>, transform_indices = @transform_17, window_bounds = array<i64: 1, 1>}, {transform_indices = @transform_18, window_bounds = array<i64: 4, 16, 32>}, {transform_indices = @transform_19, window_bounds = array<i64: 4, 16, 32>}, {transform_indices = @transform_20, window_bounds = array<i64: 4, 16, 1>}]} {
    %c0 = arith.constant 0 : index
    %c0_0 = arith.constant 0 : index
    %c0_1 = arith.constant 0 : index
    %0 = vector.load %arg1[%c0, %c0_0, %c0_1] : memref<4x8x32xf32, #tpu.memory_space<vmem>>, vector<4x8x32xf32>
    %c0_2 = arith.constant 0 : index
    %c0_3 = arith.constant 0 : index
    %c0_4 = arith.constant 0 : index
    %1 = vector.load %arg2[%c0_2, %c0_3, %c0_4] : memref<4x8x32xf32, #tpu.memory_space<vmem>>, vector<4x8x32xf32>
    %c0_5 = arith.constant 0 : index
    %c0_6 = arith.constant 0 : index
    %c0_7 = arith.constant 0 : index
    %2 = vector.load %arg3[%c0_5, %c0_6, %c0_7] : memref<4x8x32xf32, #tpu.memory_space<vmem>>, vector<4x8x32xf32>
    %c0_8 = arith.constant 0 : index
    %c0_9 = arith.constant 0 : index
    %c0_10 = arith.constant 0 : index
    %3 = vector.load %arg4[%c0_8, %c0_9, %c0_10] : memref<4x8x1xf32, #tpu.memory_space<vmem>>, vector<4x8x1xf32>
    %4 = vector.extract_strided_slice %0 {offsets = [0, 2, 0], sizes = [4, 1, 32], strides = [1, 1, 1]} : vector<4x8x32xf32> to vector<4x1x32xf32>
    %5 = vector.extract_strided_slice %3 {offsets = [0, 2, 0], sizes = [4, 1, 1], strides = [1, 1, 1]} : vector<4x8x1xf32> to vector<4x1x1xf32>
    %c0_11 = arith.constant 0 : index
    %c0_12 = arith.constant 0 : index
    %6 = vector.load %arg7[%c0_11, %c0_12] : memref<8x32xf32, #tpu.memory_space<vmem>>, vector<8x32xf32>
    %7 = vector.shape_cast %6 : vector<8x32xf32> to vector<1x8x32xf32>
    %8 = vector.broadcast %4 : vector<4x1x32xf32> to vector<4x8x32xf32>
    %9 = vector.broadcast %7 : vector<1x8x32xf32> to vector<4x8x32xf32>
    %10 = arith.addf %8, %9 : vector<4x8x32xf32>
    %11 = vector.broadcast %4 : vector<4x1x32xf32> to vector<4x8x32xf32>
    %12 = arith.addf %11, %1 : vector<4x8x32xf32>
    %13 = tpu.concatenate %10, %12 in 1 : vector<4x8x32xf32>, vector<4x8x32xf32> -> vector<4x16x32xf32>
    %14 = arith.addf %0, %2 : vector<4x8x32xf32>
    %15 = tpu.concatenate %0, %14 in 1 : vector<4x8x32xf32>, vector<4x8x32xf32> -> vector<4x16x32xf32>
    %c0_13 = arith.constant 0 : index
    %c0_14 = arith.constant 0 : index
    %16 = vector.load %arg8[%c0_13, %c0_14] : memref<32x32xf32, #tpu.memory_space<vmem>>, vector<32x32xf32>
    %c0_15 = arith.constant 0 : index
    %c0_16 = arith.constant 0 : index
    %17 = vector.load %arg9[%c0_15, %c0_16] : memref<1x32xf32, #tpu.memory_space<vmem>>, vector<1x32xf32>
    %c0_17 = arith.constant 0 : index
    %c0_18 = arith.constant 0 : index
    %18 = vector.load %arg10[%c0_17, %c0_18] : memref<32x32xf32, #tpu.memory_space<vmem>>, vector<32x32xf32>
    %c0_19 = arith.constant 0 : index
    %c0_20 = arith.constant 0 : index
    %19 = vector.load %arg11[%c0_19, %c0_20] : memref<1x32xf32, #tpu.memory_space<vmem>>, vector<1x32xf32>
    %c0_21 = arith.constant 0 : index
    %c0_22 = arith.constant 0 : index
    %20 = vector.load %arg12[%c0_21, %c0_22] : memref<32x32xf32, #tpu.memory_space<vmem>>, vector<32x32xf32>
    %c0_23 = arith.constant 0 : index
    %c0_24 = arith.constant 0 : index
    %21 = vector.load %arg13[%c0_23, %c0_24] : memref<1x32xf32, #tpu.memory_space<vmem>>, vector<1x32xf32>
    %22 = vector.shape_cast %13 : vector<4x16x32xf32> to vector<64x32xf32>
    %cst = arith.constant dense<0.000000e+00> : vector<64x32xf32>
    %23 = tpu.matmul %22, %16, %cst {dimension_numbers = #tpu.dot_dimension_numbers<[1], [0], [0], [1], [0, 0, 1, 1], [], []>} : vector<64x32xf32>, vector<32x32xf32>, vector<64x32xf32> -> vector<64x32xf32>
    %24 = vector.broadcast %17 : vector<1x32xf32> to vector<64x32xf32>
    %25 = arith.addf %23, %24 : vector<64x32xf32>
    %cst_25 = arith.constant 0.000000e+00 : f32
    %26 = vector.broadcast %cst_25 : f32 to vector<64x32xf32>
    %27 = arith.maximumf %25, %26 : vector<64x32xf32>
    %cst_26 = arith.constant dense<0.000000e+00> : vector<64x32xf32>
    %28 = tpu.matmul %27, %18, %cst_26 {dimension_numbers = #tpu.dot_dimension_numbers<[1], [0], [0], [1], [0, 0, 1, 1], [], []>} : vector<64x32xf32>, vector<32x32xf32>, vector<64x32xf32> -> vector<64x32xf32>
    %29 = vector.broadcast %19 : vector<1x32xf32> to vector<64x32xf32>
    %30 = arith.addf %28, %29 : vector<64x32xf32>
    %cst_27 = arith.constant 0.000000e+00 : f32
    %31 = vector.broadcast %cst_27 : f32 to vector<64x32xf32>
    %32 = arith.maximumf %30, %31 : vector<64x32xf32>
    %cst_28 = arith.constant dense<0.000000e+00> : vector<64x32xf32>
    %33 = tpu.matmul %27, %20, %cst_28 {dimension_numbers = #tpu.dot_dimension_numbers<[1], [0], [0], [1], [0, 0, 1, 1], [], []>} : vector<64x32xf32>, vector<32x32xf32>, vector<64x32xf32> -> vector<64x32xf32>
    %34 = vector.broadcast %21 : vector<1x32xf32> to vector<64x32xf32>
    %35 = arith.addf %33, %34 : vector<64x32xf32>
    %cst_29 = arith.constant 0.000000e+00 : f32
    %36 = vector.broadcast %cst_29 : f32 to vector<64x32xf32>
    %37 = arith.maximumf %35, %36 : vector<64x32xf32>
    %38 = vector.shape_cast %32 : vector<64x32xf32> to vector<4x16x32xf32>
    %39 = vector.shape_cast %37 : vector<64x32xf32> to vector<4x16x32xf32>
    %40 = vector.shape_cast %15 : vector<4x16x32xf32> to vector<64x32xf32>
    %cst_30 = arith.constant dense<0.000000e+00> : vector<64x32xf32>
    %41 = tpu.matmul %40, %16, %cst_30 {dimension_numbers = #tpu.dot_dimension_numbers<[1], [0], [0], [1], [0, 0, 1, 1], [], []>} : vector<64x32xf32>, vector<32x32xf32>, vector<64x32xf32> -> vector<64x32xf32>
    %42 = vector.broadcast %17 : vector<1x32xf32> to vector<64x32xf32>
    %43 = arith.addf %41, %42 : vector<64x32xf32>
    %cst_31 = arith.constant 0.000000e+00 : f32
    %44 = vector.broadcast %cst_31 : f32 to vector<64x32xf32>
    %45 = arith.maximumf %43, %44 : vector<64x32xf32>
    %cst_32 = arith.constant dense<0.000000e+00> : vector<64x32xf32>
    %46 = tpu.matmul %45, %18, %cst_32 {dimension_numbers = #tpu.dot_dimension_numbers<[1], [0], [0], [1], [0, 0, 1, 1], [], []>} : vector<64x32xf32>, vector<32x32xf32>, vector<64x32xf32> -> vector<64x32xf32>
    %47 = vector.broadcast %19 : vector<1x32xf32> to vector<64x32xf32>
    %48 = arith.addf %46, %47 : vector<64x32xf32>
    %cst_33 = arith.constant 0.000000e+00 : f32
    %49 = vector.broadcast %cst_33 : f32 to vector<64x32xf32>
    %50 = arith.maximumf %48, %49 : vector<64x32xf32>
    %cst_34 = arith.constant dense<0.000000e+00> : vector<64x32xf32>
    %51 = tpu.matmul %45, %20, %cst_34 {dimension_numbers = #tpu.dot_dimension_numbers<[1], [0], [0], [1], [0, 0, 1, 1], [], []>} : vector<64x32xf32>, vector<32x32xf32>, vector<64x32xf32> -> vector<64x32xf32>
    %52 = vector.broadcast %21 : vector<1x32xf32> to vector<64x32xf32>
    %53 = arith.addf %51, %52 : vector<64x32xf32>
    %cst_35 = arith.constant 0.000000e+00 : f32
    %54 = vector.broadcast %cst_35 : f32 to vector<64x32xf32>
    %55 = arith.maximumf %53, %54 : vector<64x32xf32>
    %56 = vector.shape_cast %50 : vector<64x32xf32> to vector<4x16x32xf32>
    %57 = vector.shape_cast %55 : vector<64x32xf32> to vector<4x16x32xf32>
    %58 = vector.extract_strided_slice %56 {offsets = [0, 0, 0], sizes = [4, 8, 32], strides = [1, 1, 1]} : vector<4x16x32xf32> to vector<4x8x32xf32>
    %59 = vector.extract_strided_slice %56 {offsets = [0, 8, 0], sizes = [4, 8, 32], strides = [1, 1, 1]} : vector<4x16x32xf32> to vector<4x8x32xf32>
    %60 = vector.extract_strided_slice %57 {offsets = [0, 0, 0], sizes = [4, 8, 32], strides = [1, 1, 1]} : vector<4x16x32xf32> to vector<4x8x32xf32>
    %61 = vector.extract_strided_slice %57 {offsets = [0, 8, 0], sizes = [4, 8, 32], strides = [1, 1, 1]} : vector<4x16x32xf32> to vector<4x8x32xf32>
    %62 = vector.broadcast %5 : vector<4x1x1xf32> to vector<4x16x32xf32>
    %63 = arith.mulf %38, %62 : vector<4x16x32xf32>
    %64 = vector.broadcast %5 : vector<4x1x1xf32> to vector<4x16x32xf32>
    %65 = arith.mulf %39, %64 : vector<4x16x32xf32>
    %66 = vector.broadcast %3 : vector<4x8x1xf32> to vector<4x8x32xf32>
    %67 = arith.mulf %58, %66 : vector<4x8x32xf32>
    %68 = vector.broadcast %3 : vector<4x8x1xf32> to vector<4x8x32xf32>
    %69 = arith.mulf %59, %68 : vector<4x8x32xf32>
    %70 = vector.broadcast %3 : vector<4x8x1xf32> to vector<4x8x32xf32>
    %71 = arith.mulf %60, %70 : vector<4x8x32xf32>
    %72 = vector.broadcast %3 : vector<4x8x1xf32> to vector<4x8x32xf32>
    %73 = arith.mulf %61, %72 : vector<4x8x32xf32>
    %c0_36 = arith.constant 0 : index
    %c0_37 = arith.constant 0 : index
    %c0_38 = arith.constant 0 : index
    %74 = vector.load %arg5[%c0_36, %c0_37, %c0_38] : memref<8x16x1xf32, #tpu.memory_space<vmem>>, vector<8x16x1xf32>
    %75 = vector.shape_cast %74 : vector<8x16x1xf32> to vector<1x8x16x1xf32>
    %cst_39 = arith.constant 5.000000e-01 : f32
    %76 = vector.broadcast %cst_39 : f32 to vector<1x8x16x1xf32>
    %77 = arith.cmpf ogt, %75, %76 : vector<1x8x16x1xf32>
    %c0_40 = arith.constant 0 : index
    %c0_41 = arith.constant 0 : index
    %c0_42 = arith.constant 0 : index
    %78 = vector.load %arg6[%c0_40, %c0_41, %c0_42] : memref<8x16x1xf32, #tpu.memory_space<vmem>>, vector<8x16x1xf32>
    %79 = vector.shape_cast %78 : vector<8x16x1xf32> to vector<1x8x16x1xf32>
    %cst_43 = arith.constant 5.000000e-01 : f32
    %80 = vector.broadcast %cst_43 : f32 to vector<1x8x16x1xf32>
    %81 = arith.cmpf ogt, %79, %80 : vector<1x8x16x1xf32>
    %82 = vector.shape_cast %63 : vector<4x16x32xf32> to vector<4x1x16x32xf32>
    %83 = vector.shape_cast %69 : vector<4x8x32xf32> to vector<4x8x1x32xf32>
    %84 = vector.shape_cast %67 : vector<4x8x32xf32> to vector<4x8x1x32xf32>
    %85 = vector.shape_cast %81 : vector<1x8x16x1xi1> to vector<1x8x16x1xi1>
    %86 = vector.broadcast %85 : vector<1x8x16x1xi1> to vector<4x8x16x32xi1>
    %87 = vector.shape_cast %83 : vector<4x8x1x32xf32> to vector<4x8x1x32xf32>
    %88 = vector.broadcast %87 : vector<4x8x1x32xf32> to vector<4x8x16x32xf32>
    %89 = vector.shape_cast %84 : vector<4x8x1x32xf32> to vector<4x8x1x32xf32>
    %90 = vector.broadcast %89 : vector<4x8x1x32xf32> to vector<4x8x16x32xf32>
    %91 = arith.select %86, %88, %90 : vector<4x8x16x32xi1>, vector<4x8x16x32xf32>
    %92 = vector.shape_cast %77 : vector<1x8x16x1xi1> to vector<1x8x16x1xi1>
    %93 = vector.broadcast %92 : vector<1x8x16x1xi1> to vector<4x8x16x32xi1>
    %94 = vector.shape_cast %82 : vector<4x1x16x32xf32> to vector<4x1x16x32xf32>
    %95 = vector.broadcast %94 : vector<4x1x16x32xf32> to vector<4x8x16x32xf32>
    %96 = arith.select %93, %95, %91 : vector<4x8x16x32xi1>, vector<4x8x16x32xf32>
    %cst_44 = arith.constant dense<0.000000e+00> : vector<4x16x32xf32>
    %97 = vector.multi_reduction <add>, %96, %cst_44 [1] : vector<4x8x16x32xf32> to vector<4x16x32xf32>
    %cst_45 = arith.constant 1.250000e-01 : f32
    %98 = vector.broadcast %cst_45 : f32 to vector<4x16x32xf32>
    %99 = arith.mulf %97, %98 : vector<4x16x32xf32>
    %100 = vector.shape_cast %65 : vector<4x16x32xf32> to vector<4x1x16x32xf32>
    %101 = vector.shape_cast %73 : vector<4x8x32xf32> to vector<4x8x1x32xf32>
    %102 = vector.shape_cast %71 : vector<4x8x32xf32> to vector<4x8x1x32xf32>
    %103 = vector.shape_cast %81 : vector<1x8x16x1xi1> to vector<1x8x16x1xi1>
    %104 = vector.broadcast %103 : vector<1x8x16x1xi1> to vector<4x8x16x32xi1>
    %105 = vector.shape_cast %101 : vector<4x8x1x32xf32> to vector<4x8x1x32xf32>
    %106 = vector.broadcast %105 : vector<4x8x1x32xf32> to vector<4x8x16x32xf32>
    %107 = vector.shape_cast %102 : vector<4x8x1x32xf32> to vector<4x8x1x32xf32>
    %108 = vector.broadcast %107 : vector<4x8x1x32xf32> to vector<4x8x16x32xf32>
    %109 = arith.select %104, %106, %108 : vector<4x8x16x32xi1>, vector<4x8x16x32xf32>
    %110 = vector.shape_cast %77 : vector<1x8x16x1xi1> to vector<1x8x16x1xi1>
    %111 = vector.broadcast %110 : vector<1x8x16x1xi1> to vector<4x8x16x32xi1>
    %112 = vector.shape_cast %100 : vector<4x1x16x32xf32> to vector<4x1x16x32xf32>
    %113 = vector.broadcast %112 : vector<4x1x16x32xf32> to vector<4x8x16x32xf32>
    %114 = arith.select %111, %113, %109 : vector<4x8x16x32xi1>, vector<4x8x16x32xf32>
    %cst_46 = arith.constant dense<0xFF800000> : vector<4x16x32xf32>
    %115 = vector.multi_reduction <maximumf>, %114, %cst_46 [1] : vector<4x8x16x32xf32> to vector<4x16x32xf32>
    %c0_47 = arith.constant 0 : index
    %c0_48 = arith.constant 0 : index
    %c0_49 = arith.constant 0 : index
    %116 = vector.load %arg19[%c0_47, %c0_48, %c0_49] : memref<4x16x32xf32, #tpu.memory_space<vmem>>, vector<4x16x32xf32>
    tpu.vector_store %arg19[%c0_47, %c0_48, %c0_49], %99 {strides = array<i32>} : memref<4x16x32xf32, #tpu.memory_space<vmem>>, vector<4x16x32xf32>,
    %c0_50 = arith.constant 0 : index
    %c0_51 = arith.constant 0 : index
    %c0_52 = arith.constant 0 : index
    %117 = vector.load %arg20[%c0_50, %c0_51, %c0_52] : memref<4x16x32xf32, #tpu.memory_space<vmem>>, vector<4x16x32xf32>
    tpu.vector_store %arg20[%c0_50, %c0_51, %c0_52], %115 {strides = array<i32>} : memref<4x16x32xf32, #tpu.memory_space<vmem>>, vector<4x16x32xf32>,
    %118 = vector.shape_cast %99 : vector<4x16x32xf32> to vector<64x32xf32>
    %119 = vector.shape_cast %115 : vector<4x16x32xf32> to vector<64x32xf32>
    %c0_53 = arith.constant 0 : index
    %c0_54 = arith.constant 0 : index
    %120 = vector.load %arg14[%c0_53, %c0_54] : memref<32x32xf32, #tpu.memory_space<vmem>>, vector<32x32xf32>
    %cst_55 = arith.constant dense<0.000000e+00> : vector<64x32xf32>
    %121 = tpu.matmul %118, %120, %cst_55 {dimension_numbers = #tpu.dot_dimension_numbers<[1], [0], [0], [1], [0, 0, 1, 1], [], []>} : vector<64x32xf32>, vector<32x32xf32>, vector<64x32xf32> -> vector<64x32xf32>
    %c0_56 = arith.constant 0 : index
    %c0_57 = arith.constant 0 : index
    %122 = vector.load %arg15[%c0_56, %c0_57] : memref<32x32xf32, #tpu.memory_space<vmem>>, vector<32x32xf32>
    %cst_58 = arith.constant dense<0.000000e+00> : vector<64x32xf32>
    %123 = tpu.matmul %119, %122, %cst_58 {dimension_numbers = #tpu.dot_dimension_numbers<[1], [0], [0], [1], [0, 0, 1, 1], [], []>} : vector<64x32xf32>, vector<32x32xf32>, vector<64x32xf32> -> vector<64x32xf32>
    %124 = arith.addf %121, %123 : vector<64x32xf32>
    %c0_59 = arith.constant 0 : index
    %c0_60 = arith.constant 0 : index
    %125 = vector.load %arg16[%c0_59, %c0_60] : memref<1x32xf32, #tpu.memory_space<vmem>>, vector<1x32xf32>
    %126 = vector.broadcast %125 : vector<1x32xf32> to vector<64x32xf32>
    %127 = arith.addf %124, %126 : vector<64x32xf32>
    %cst_61 = arith.constant 0.000000e+00 : f32
    %128 = vector.broadcast %cst_61 : f32 to vector<64x32xf32>
    %129 = arith.maximumf %127, %128 : vector<64x32xf32>
    %c0_62 = arith.constant 0 : index
    %c0_63 = arith.constant 0 : index
    %130 = vector.load %arg17[%c0_62, %c0_63] : memref<32x1xf32, #tpu.memory_space<vmem>>, vector<32x1xf32>
    %cst_64 = arith.constant dense<0.000000e+00> : vector<64x1xf32>
    %131 = tpu.matmul %129, %130, %cst_64 {dimension_numbers = #tpu.dot_dimension_numbers<[1], [0], [0], [1], [0, 0, 1, 1], [], []>} : vector<64x32xf32>, vector<32x1xf32>, vector<64x1xf32> -> vector<64x1xf32>
    %c0_65 = arith.constant 0 : index
    %c0_66 = arith.constant 0 : index
    %132 = vector.load %arg18[%c0_65, %c0_66] : memref<1x1xf32, #tpu.memory_space<vmem>>, vector<1x1xf32>
    %133 = vector.broadcast %132 : vector<1x1xf32> to vector<64x1xf32>
    %134 = arith.addf %131, %133 : vector<64x1xf32>
    %135 = vector.shape_cast %134 : vector<64x1xf32> to vector<4x16x1xf32>
    %c0_67 = arith.constant 0 : index
    %c0_68 = arith.constant 0 : index
    %c0_69 = arith.constant 0 : index
    %136 = vector.load %arg21[%c0_67, %c0_68, %c0_69] : memref<4x16x1xf32, #tpu.memory_space<vmem>>, vector<4x16x1xf32>
    tpu.vector_store %arg21[%c0_67, %c0_68, %c0_69], %135 {strides = array<i32>} : memref<4x16x1xf32, #tpu.memory_space<vmem>>, vector<4x16x1xf32>,
    return
  }
  func.func @transform_0(%arg0: i32) -> (i32, i32, i32) {
    %c0_i32 = arith.constant 0 : i32
    %c0_i32_0 = arith.constant 0 : i32
    %c0_i32_1 = arith.constant 0 : i32
    return %arg0, %c0_i32, %c0_i32_0 : i32, i32, i32
  }
  func.func @transform_1(%arg0: i32) -> (i32, i32, i32) {
    %c0_i32 = arith.constant 0 : i32
    %c0_i32_0 = arith.constant 0 : i32
    %c0_i32_1 = arith.constant 0 : i32
    return %arg0, %c0_i32, %c0_i32_0 : i32, i32, i32
  }
  func.func @transform_2(%arg0: i32) -> (i32, i32, i32) {
    %c0_i32 = arith.constant 0 : i32
    %c0_i32_0 = arith.constant 0 : i32
    %c0_i32_1 = arith.constant 0 : i32
    return %arg0, %c0_i32, %c0_i32_0 : i32, i32, i32
  }
  func.func @transform_3(%arg0: i32) -> (i32, i32, i32) {
    %c0_i32 = arith.constant 0 : i32
    %c0_i32_0 = arith.constant 0 : i32
    %c0_i32_1 = arith.constant 0 : i32
    return %arg0, %c0_i32, %c0_i32_0 : i32, i32, i32
  }
  func.func @transform_4(%arg0: i32) -> (i32, i32, i32) {
    %c0_i32 = arith.constant 0 : i32
    %c0_i32_0 = arith.constant 0 : i32
    %c0_i32_1 = arith.constant 0 : i32
    %c0_i32_2 = arith.constant 0 : i32
    return %c0_i32, %c0_i32_0, %c0_i32_1 : i32, i32, i32
  }
  func.func @transform_5(%arg0: i32) -> (i32, i32, i32) {
    %c0_i32 = arith.constant 0 : i32
    %c0_i32_0 = arith.constant 0 : i32
    %c0_i32_1 = arith.constant 0 : i32
    %c0_i32_2 = arith.constant 0 : i32
    return %c0_i32, %c0_i32_0, %c0_i32_1 : i32, i32, i32
  }
  func.func @transform_6(%arg0: i32) -> (i32, i32) {
    %c0_i32 = arith.constant 0 : i32
    %c0_i32_0 = arith.constant 0 : i32
    %c0_i32_1 = arith.constant 0 : i32
    return %c0_i32, %c0_i32_0 : i32, i32
  }
  func.func @transform_7(%arg0: i32) -> (i32, i32) {
    %c0_i32 = arith.constant 0 : i32
    %c0_i32_0 = arith.constant 0 : i32
    %c0_i32_1 = arith.constant 0 : i32
    return %c0_i32, %c0_i32_0 : i32, i32
  }
  func.func @transform_8(%arg0: i32) -> (i32, i32) {
    %c0_i32 = arith.constant 0 : i32
    %c0_i32_0 = arith.constant 0 : i32
    %c0_i32_1 = arith.constant 0 : i32
    return %c0_i32, %c0_i32_0 : i32, i32
  }
  func.func @transform_9(%arg0: i32) -> (i32, i32) {
    %c0_i32 = arith.constant 0 : i32
    %c0_i32_0 = arith.constant 0 : i32
    %c0_i32_1 = arith.constant 0 : i32
    return %c0_i32, %c0_i32_0 : i32, i32
  }
  func.func @transform_10(%arg0: i32) -> (i32, i32) {
    %c0_i32 = arith.constant 0 : i32
    %c0_i32_0 = arith.constant 0 : i32
    %c0_i32_1 = arith.constant 0 : i32
    return %c0_i32, %c0_i32_0 : i32, i32
  }
  func.func @transform_11(%arg0: i32) -> (i32, i32) {
    %c0_i32 = arith.constant 0 : i32
    %c0_i32_0 = arith.constant 0 : i32
    %c0_i32_1 = arith.constant 0 : i32
    return %c0_i32, %c0_i32_0 : i32, i32
  }
  func.func @transform_12(%arg0: i32) -> (i32, i32) {
    %c0_i32 = arith.constant 0 : i32
    %c0_i32_0 = arith.constant 0 : i32
    %c0_i32_1 = arith.constant 0 : i32
    return %c0_i32, %c0_i32_0 : i32, i32
  }
  func.func @transform_13(%arg0: i32) -> (i32, i32) {
    %c0_i32 = arith.constant 0 : i32
    %c0_i32_0 = arith.constant 0 : i32
    %c0_i32_1 = arith.constant 0 : i32
    return %c0_i32, %c0_i32_0 : i32, i32
  }
  func.func @transform_14(%arg0: i32) -> (i32, i32) {
    %c0_i32 = arith.constant 0 : i32
    %c0_i32_0 = arith.constant 0 : i32
    %c0_i32_1 = arith.constant 0 : i32
    return %c0_i32, %c0_i32_0 : i32, i32
  }
  func.func @transform_15(%arg0: i32) -> (i32, i32) {
    %c0_i32 = arith.constant 0 : i32
    %c0_i32_0 = arith.constant 0 : i32
    %c0_i32_1 = arith.constant 0 : i32
    return %c0_i32, %c0_i32_0 : i32, i32
  }
  func.func @transform_16(%arg0: i32) -> (i32, i32) {
    %c0_i32 = arith.constant 0 : i32
    %c0_i32_0 = arith.constant 0 : i32
    %c0_i32_1 = arith.constant 0 : i32
    return %c0_i32, %c0_i32_0 : i32, i32
  }
  func.func @transform_17(%arg0: i32) -> (i32, i32) {
    %c0_i32 = arith.constant 0 : i32
    %c0_i32_0 = arith.constant 0 : i32
    %c0_i32_1 = arith.constant 0 : i32
    return %c0_i32, %c0_i32_0 : i32, i32
  }
  func.func @transform_18(%arg0: i32) -> (i32, i32, i32) {
    %c0_i32 = arith.constant 0 : i32
    %c0_i32_0 = arith.constant 0 : i32
    %c0_i32_1 = arith.constant 0 : i32
    return %arg0, %c0_i32, %c0_i32_0 : i32, i32, i32
  }
  func.func @transform_19(%arg0: i32) -> (i32, i32, i32) {
    %c0_i32 = arith.constant 0 : i32
    %c0_i32_0 = arith.constant 0 : i32
    %c0_i32_1 = arith.constant 0 : i32
    return %arg0, %c0_i32, %c0_i32_0 : i32, i32, i32
  }
  func.func @transform_20(%arg0: i32) -> (i32, i32, i32) {
    %c0_i32 = arith.constant 0 : i32
    %c0_i32_0 = arith.constant 0 : i32
    %c0_i32_1 = arith.constant 0 : i32
    return %arg0, %c0_i32, %c0_i32_0 : i32, i32, i32
  }
}

</mosaic_0001>

<llo_original>
// kernel: tpu_custom_call.1
$region0: #{tpu_custom_call.1}
  #allocation0 [shape = 'u32[]', space=smem, size = 0x4, offset = 0x4, fixed_abs, tag = 'smem constant byte address 0x4 - core index']
  #allocation1 [shape = 'u32[144,128]{1,0:T(1,128)}', space=vmem, size = 0x12000, scoped, tag = 'internal scratch']
  #allocation2 [shape = 'f32[1,1]{1,0:T(1,128)S(1)}', space=vmem, size = 0x200, scoped, tag = 'scoped memory for tpu_custom_call.1']
  %s0 = inlined_call_operand.vmem [shape: f32[8,8,32], index: 0, kind: input, shape index: {}]
  %s1 = inlined_call_operand.vmem [shape: f32[8,8,32], index: 1, kind: input, shape index: {}]
  %s2 = inlined_call_operand.vmem [shape: f32[8,8,32], index: 2, kind: input, shape index: {}]
  %s3 = inlined_call_operand.vmem [shape: f32[8,8,1], index: 3, kind: input, shape index: {}]
  %s4 = inlined_call_operand.vmem [shape: f32[8,16,1], index: 4, kind: input, shape index: {}]
  %s5 = inlined_call_operand.vmem [shape: f32[8,16,1], index: 5, kind: input, shape index: {}]
  %s6 = inlined_call_operand.vmem [shape: f32[8,32], index: 6, kind: input, shape index: {}]
  %s7 = inlined_call_operand.vmem [shape: f32[32,32], index: 7, kind: input, shape index: {}]
  %s8 = inlined_call_operand.vmem [shape: f32[1,32], index: 8, kind: input, shape index: {}]
  %s9 = inlined_call_operand.vmem [shape: f32[32,32], index: 9, kind: input, shape index: {}]
  %s10 = inlined_call_operand.vmem [shape: f32[1,32], index: 10, kind: input, shape index: {}]
  %s11 = inlined_call_operand.vmem [shape: f32[32,32], index: 11, kind: input, shape index: {}]
  %s12 = inlined_call_operand.vmem [shape: f32[1,32], index: 12, kind: input, shape index: {}]
  %s13 = inlined_call_operand.vmem [shape: f32[32,32], index: 13, kind: input, shape index: {}]
  %s14 = inlined_call_operand.vmem [shape: f32[32,32], index: 14, kind: input, shape index: {}]
  %s15 = inlined_call_operand.vmem [shape: f32[1,32], index: 15, kind: input, shape index: {}]
  %s16 = inlined_call_operand.vmem [shape: f32[32,1], index: 16, kind: input, shape index: {}]
  %s17 = inlined_call_operand.<no memory space> [shape: f32[1,1], index: 17, kind: input, shape index: {}]
  %s18 = inlined_call_operand.hbm [shape: f32[8,16,32], index: 18, kind: output, shape index: {0}]
  %s19 = inlined_call_operand.hbm [shape: f32[8,16,32], index: 19, kind: output, shape index: {1}]
  %s20 = inlined_call_operand.vmem [shape: f32[8,16,1], index: 20, kind: output, shape index: {2}]
  %21 = xla_tuple %s18, %s19, %s20
  %s22 = sld [smem:[#allocation0]]
  $region121: #{tpu_custom_call.1} parent=0
    _
  %s24 = ssub.s32 1, %s22
  %s25 = scalar_select 0, %s24, %s22
  %v26 = vstv %s17
  %27 = vst [vmem:[#allocation2] sm:$0x1] %v26
  $region1: #{tpu_custom_call.1} parent=0
    #allocation3 [shape = 'u8[65536]{0}', space=vmem, size = 0x10000, scoped, tag = 'output window, operand 0']
    #allocation4 [shape = 's32[2]{0}', space=sflag, size = 0x8, scoped, tag = 'scoped memory for tpu_custom_call.1']
    #allocation5 [shape = 'u8[65536]{0}', space=vmem, size = 0x10000, scoped, tag = 'output window, operand 1']
    #allocation6 [shape = 's32[2]{0}', space=sflag, size = 0x8, scoped, tag = 'scoped memory for tpu_custom_call.1']
    %28 = vsyncpa [#allocation4], 0
    %s29 = scalar_lea.sflag [#allocation4], 1
    %30 = vsyncpa %s29, 0
    %31 = vsyncpa [#allocation6], 0
    %s32 = scalar_lea.sflag [#allocation6], 1
    %33 = vsyncpa %s32, 0
    loop: start=0, step=1, limit=4
    $region2: #{tpu_custom_call.1} parent=1 // loop_pre_header
      _
    $region3: #{tpu_custom_call.1} parent=1 // loop_header
      %s35 = sphi 0, %s39
      %p36 = scmp.ge.s32.totalorder %s35, 4
      %s45 = sphi 0, %s47
      %s48 = sphi 0, %s45
      %s49 = sphi 0, %s48
      %s65 = sphi 0, %s49
      %s71 = sphi 0, %s73
      %s74 = sphi 0, %s71
      %s75 = sphi 0, %s74
      %s91 = sphi 0, %s75
      %s97 = sphi 0, %s99
      %s100 = sphi 0, %s97
      %s101 = sphi 0, %s100
      %s117 = sphi 0, %s101
      %s123 = sphi 0, %s125
      %s126 = sphi 0, %s123
      %s127 = sphi 0, %s126
      %s143 = sphi 0, %s127
      %s147 = sphi 0, %s147
      %s149 = sphi 0, %s147
      %s150 = sphi 0, %s149
      %s164 = sphi 0, %s150
      %s168 = sphi 0, %s168
      %s170 = sphi 0, %s168
      %s171 = sphi 0, %s170
      %s185 = sphi 0, %s171
      %s189 = sphi 0, %s189
      %s191 = sphi 0, %s189
      %s192 = sphi 0, %s191
      %s206 = sphi 0, %s192
      %s210 = sphi 0, %s210
      %s212 = sphi 0, %s210
      %s213 = sphi 0, %s212
      %s227 = sphi 0, %s213
      %s231 = sphi 0, %s231
      %s233 = sphi 0, %s231
      %s234 = sphi 0, %s233
      %s248 = sphi 0, %s234
      %s252 = sphi 0, %s252
      %s254 = sphi 0, %s252
      %s255 = sphi 0, %s254
      %s269 = sphi 0, %s255
      %s273 = sphi 0, %s273
      %s275 = sphi 0, %s273
      %s276 = sphi 0, %s275
      %s290 = sphi 0, %s276
      %s294 = sphi 0, %s294
      %s296 = sphi 0, %s294
      %s297 = sphi 0, %s296
      %s311 = sphi 0, %s297
      %s315 = sphi 0, %s315
      %s317 = sphi 0, %s315
      %s318 = sphi 0, %s317
      %s332 = sphi 0, %s318
      %s336 = sphi 0, %s336
      %s338 = sphi 0, %s336
      %s339 = sphi 0, %s338
      %s353 = sphi 0, %s339
      %s357 = sphi 0, %s357
      %s359 = sphi 0, %s357
      %s360 = sphi 0, %s359
      %s374 = sphi 0, %s360
      %s378 = sphi 0, %s378
      %s380 = sphi 0, %s378
      %s381 = sphi 0, %s380
      %s395 = sphi 0, %s381
      %s399 = sphi 0, %s399
      %s401 = sphi 0, %s399
      %s402 = sphi 0, %s401
      %s416 = sphi 0, %s402
      %s420 = sphi 0, %s420
      %s422 = sphi 0, %s420
      %s423 = sphi 0, %s422
      %s437 = sphi 0, %s423
      %s443 = sphi 0, %s445
      %s446 = sphi 0, %s443
      %s447 = sphi 0, %s446
      %s463 = sphi 0, %s447
      %s469 = sphi 0, %s471
      %s472 = sphi 0, %s469
      %s473 = sphi 0, %s472
      %s489 = sphi 0, %s473
      %s495 = sphi 0, %s497
      %s498 = sphi 0, %s495
      %s499 = sphi 0, %s498
      %s515 = sphi 0, %s499
    $region4: #{tpu_custom_call.1} parent=1 // loop_header_branch
      %38 = sbr.rel (%p36) target = $region8
    $region5: #{tpu_custom_call.1} parent=1 // loop_body
      %s40 = ssub.s32 %s35, 1
      %s41 = ssub.s32 %s35, 2
      %s42 = sadd.s32 %s35, 1
      %s43 = ssub.s32 %s35, %s42
      %p44 = scmp.eq.s32.totalorder %s43, 0
      %s46 = sadd.s32 %s45, 1
      %s47 = scalar_select %p44, %s45, %s46
      %p50 = pneg %p44
      %p51 = scmp.eq.s32.totalorder %s35, 1
      %p52 = por %p50, %p51
      %p53 = scmp.ne.s32.totalorder %s45, %s48
      %p54 = scmp.eq.s32.totalorder %s35, 0
      %p55 = por %p53, %p54
      %p56 = scmp.ne.s32.totalorder %s45, %s48
      %p57 = scmp.eq.s32.totalorder %s40, 1
      %p58 = por %p56, %p57
      %p59 = scmp.ne.s32.totalorder %s48, %s49
      %p60 = scmp.eq.s32.totalorder %s40, 0
      %p61 = por %p59, %p60
      %p62 = scmp.ne.s32.totalorder %s48, %s49
      %p63 = scmp.eq.s32.totalorder %s41, 1
      %p64 = por %p62, %p63
      %p66 = scmp.ne.s32.totalorder %s49, %s65
      %p67 = scmp.eq.s32.totalorder %s41, 0
      %p68 = por %p66, %p67
      %s69 = ssub.s32 %s35, %s42
      %p70 = scmp.eq.s32.totalorder %s69, 0
      %s72 = sadd.s32 %s71, 1
      %s73 = scalar_select %p70, %s71, %s72
      %p76 = pneg %p70
      %p77 = scmp.eq.s32.totalorder %s35, 1
      %p78 = por %p76, %p77
      %p79 = scmp.ne.s32.totalorder %s71, %s74
      %p80 = scmp.eq.s32.totalorder %s35, 0
      %p81 = por %p79, %p80
      %p82 = scmp.ne.s32.totalorder %s71, %s74
      %p83 = scmp.eq.s32.totalorder %s40, 1
      %p84 = por %p82, %p83
      %p85 = scmp.ne.s32.totalorder %s74, %s75
      %p86 = scmp.eq.s32.totalorder %s40, 0
      %p87 = por %p85, %p86
      %p88 = scmp.ne.s32.totalorder %s74, %s75
      %p89 = scmp.eq.s32.totalorder %s41, 1
      %p90 = por %p88, %p89
      %p92 = scmp.ne.s32.totalorder %s75, %s91
      %p93 = scmp.eq.s32.totalorder %s41, 0
      %p94 = por %p92, %p93
      %s95 = ssub.s32 %s35, %s42
      %p96 = scmp.eq.s32.totalorder %s95, 0
      %s98 = sadd.s32 %s97, 1
      %s99 = scalar_select %p96, %s97, %s98
      %p102 = pneg %p96
      %p103 = scmp.eq.s32.totalorder %s35, 1
      %p104 = por %p102, %p103
      %p105 = scmp.ne.s32.totalorder %s97, %s100
      %p106 = scmp.eq.s32.totalorder %s35, 0
      %p107 = por %p105, %p106
      %p108 = scmp.ne.s32.totalorder %s97, %s100
      %p109 = scmp.eq.s32.totalorder %s40, 1
      %p110 = por %p108, %p109
      %p111 = scmp.ne.s32.totalorder %s100, %s101
      %p112 = scmp.eq.s32.totalorder %s40, 0
      %p113 = por %p111, %p112
      %p114 = scmp.ne.s32.totalorder %s100, %s101
      %p115 = scmp.eq.s32.totalorder %s41, 1
      %p116 = por %p114, %p115
      %p118 = scmp.ne.s32.totalorder %s101, %s117
      %p119 = scmp.eq.s32.totalorder %s41, 0
      %p120 = por %p118, %p119
      %s121 = ssub.s32 %s35, %s42
      %p122 = scmp.eq.s32.totalorder %s121, 0
      %s124 = sadd.s32 %s123, 1
      %s125 = scalar_select %p122, %s123, %s124
      %p128 = pneg %p122
      %p129 = scmp.eq.s32.totalorder %s35, 1
      %p130 = por %p128, %p129
      %p131 = scmp.ne.s32.totalorder %s123, %s126
      %p132 = scmp.eq.s32.totalorder %s35, 0
      %p133 = por %p131, %p132
      %p134 = scmp.ne.s32.totalorder %s123, %s126
      %p135 = scmp.eq.s32.totalorder %s40, 1
      %p136 = por %p134, %p135
      %p137 = scmp.ne.s32.totalorder %s126, %s127
      %p138 = scmp.eq.s32.totalorder %s40, 0
      %p139 = por %p137, %p138
      %p140 = scmp.ne.s32.totalorder %s126, %s127
      %p141 = scmp.eq.s32.totalorder %s41, 1
      %p142 = por %p140, %p141
      %p144 = scmp.ne.s32.totalorder %s127, %s143
      %p145 = scmp.eq.s32.totalorder %s41, 0
      %p146 = por %p144, %p145
      %s148 = sadd.s32 %s147, 1
      %p151 = scmp.eq.s32.totalorder %s35, 1
      %p152 = scmp.ne.s32.totalorder %s147, %s149
      %p153 = scmp.eq.s32.totalorder %s35, 0
      %p154 = por %p152, %p153
      %p155 = scmp.ne.s32.totalorder %s147, %s149
      %p156 = scmp.eq.s32.totalorder %s40, 1
      %p157 = por %p155, %p156
      %p158 = scmp.ne.s32.totalorder %s149, %s150
      %p159 = scmp.eq.s32.totalorder %s40, 0
      %p160 = por %p158, %p159
      %p161 = scmp.ne.s32.totalorder %s149, %s150
      %p162 = scmp.eq.s32.totalorder %s41, 1
      %p163 = por %p161, %p162
      %p165 = scmp.ne.s32.totalorder %s150, %s164
      %p166 = scmp.eq.s32.totalorder %s41, 0
      %p167 = por %p165, %p166
      %s169 = sadd.s32 %s168, 1
      %p172 = scmp.eq.s32.totalorder %s35, 1
      %p173 = scmp.ne.s32.totalorder %s168, %s170
      %p174 = scmp.eq.s32.totalorder %s35, 0
      %p175 = por %p173, %p174
      %p176 = scmp.ne.s32.totalorder %s168, %s170
      %p177 = scmp.eq.s32.totalorder %s40, 1
      %p178 = por %p176, %p177
      %p179 = scmp.ne.s32.totalorder %s170, %s171
      %p180 = scmp.eq.s32.totalorder %s40, 0
      %p181 = por %p179, %p180
      %p182 = scmp.ne.s32.totalorder %s170, %s171
      %p183 = scmp.eq.s32.totalorder %s41, 1
      %p184 = por %p182, %p183
      %p186 = scmp.ne.s32.totalorder %s171, %s185
      %p187 = scmp.eq.s32.totalorder %s41, 0
      %p188 = por %p186, %p187
      %s190 = sadd.s32 %s189, 1
      %p193 = scmp.eq.s32.totalorder %s35, 1
      %p194 = scmp.ne.s32.totalorder %s189, %s191
      %p195 = scmp.eq.s32.totalorder %s35, 0
      %p196 = por %p194, %p195
      %p197 = scmp.ne.s32.totalorder %s189, %s191
      %p198 = scmp.eq.s32.totalorder %s40, 1
      %p199 = por %p197, %p198
      %p200 = scmp.ne.s32.totalorder %s191, %s192
      %p201 = scmp.eq.s32.totalorder %s40, 0
      %p202 = por %p200, %p201
      %p203 = scmp.ne.s32.totalorder %s191, %s192
      %p204 = scmp.eq.s32.totalorder %s41, 1
      %p205 = por %p203, %p204
      %p207 = scmp.ne.s32.totalorder %s192, %s206
      %p208 = scmp.eq.s32.totalorder %s41, 0
      %p209 = por %p207, %p208
      %s211 = sadd.s32 %s210, 1
      %p214 = scmp.eq.s32.totalorder %s35, 1
      %p215 = scmp.ne.s32.totalorder %s210, %s212
      %p216 = scmp.eq.s32.totalorder %s35, 0
      %p217 = por %p215, %p216
      %p218 = scmp.ne.s32.totalorder %s210, %s212
      %p219 = scmp.eq.s32.totalorder %s40, 1
      %p220 = por %p218, %p219
      %p221 = scmp.ne.s32.totalorder %s212, %s213
      %p222 = scmp.eq.s32.totalorder %s40, 0
      %p223 = por %p221, %p222
      %p224 = scmp.ne.s32.totalorder %s212, %s213
      %p225 = scmp.eq.s32.totalorder %s41, 1
      %p226 = por %p224, %p225
      %p228 = scmp.ne.s32.totalorder %s213, %s227
      %p229 = scmp.eq.s32.totalorder %s41, 0
      %p230 = por %p228, %p229
      %s232 = sadd.s32 %s231, 1
      %p235 = scmp.eq.s32.totalorder %s35, 1
      %p236 = scmp.ne.s32.totalorder %s231, %s233
      %p237 = scmp.eq.s32.totalorder %s35, 0
      %p238 = por %p236, %p237
      %p239 = scmp.ne.s32.totalorder %s231, %s233
      %p240 = scmp.eq.s32.totalorder %s40, 1
      %p241 = por %p239, %p240
      %p242 = scmp.ne.s32.totalorder %s233, %s234
      %p243 = scmp.eq.s32.totalorder %s40, 0
      %p244 = por %p242, %p243
      %p245 = scmp.ne.s32.totalorder %s233, %s234
      %p246 = scmp.eq.s32.totalorder %s41, 1
      %p247 = por %p245, %p246
      %p249 = scmp.ne.s32.totalorder %s234, %s248
      %p250 = scmp.eq.s32.totalorder %s41, 0
      %p251 = por %p249, %p250
      %s253 = sadd.s32 %s252, 1
      %p256 = scmp.eq.s32.totalorder %s35, 1
      %p257 = scmp.ne.s32.totalorder %s252, %s254
      %p258 = scmp.eq.s32.totalorder %s35, 0
      %p259 = por %p257, %p258
      %p260 = scmp.ne.s32.totalorder %s252, %s254
      %p261 = scmp.eq.s32.totalorder %s40, 1
      %p262 = por %p260, %p261
      %p263 = scmp.ne.s32.totalorder %s254, %s255
      %p264 = scmp.eq.s32.totalorder %s40, 0
      %p265 = por %p263, %p264
      %p266 = scmp.ne.s32.totalorder %s254, %s255
      %p267 = scmp.eq.s32.totalorder %s41, 1
      %p268 = por %p266, %p267
      %p270 = scmp.ne.s32.totalorder %s255, %s269
      %p271 = scmp.eq.s32.totalorder %s41, 0
      %p272 = por %p270, %p271
      %s274 = sadd.s32 %s273, 1
      %p277 = scmp.eq.s32.totalorder %s35, 1
      %p278 = scmp.ne.s32.totalorder %s273, %s275
      %p279 = scmp.eq.s32.totalorder %s35, 0
      %p280 = por %p278, %p279
      %p281 = scmp.ne.s32.totalorder %s273, %s275
      %p282 = scmp.eq.s32.totalorder %s40, 1
      %p283 = por %p281, %p282
      %p284 = scmp.ne.s32.totalorder %s275, %s276
      %p285 = scmp.eq.s32.totalorder %s40, 0
      %p286 = por %p284, %p285
      %p287 = scmp.ne.s32.totalorder %s275, %s276
      %p288 = scmp.eq.s32.totalorder %s41, 1
      %p289 = por %p287, %p288
      %p291 = scmp.ne.s32.totalorder %s276, %s290
      %p292 = scmp.eq.s32.totalorder %s41, 0
      %p293 = por %p291, %p292
      %s295 = sadd.s32 %s294, 1
      %p298 = scmp.eq.s32.totalorder %s35, 1
      %p299 = scmp.ne.s32.totalorder %s294, %s296
      %p300 = scmp.eq.s32.totalorder %s35, 0
      %p301 = por %p299, %p300
      %p302 = scmp.ne.s32.totalorder %s294, %s296
      %p303 = scmp.eq.s32.totalorder %s40, 1
      %p304 = por %p302, %p303
      %p305 = scmp.ne.s32.totalorder %s296, %s297
      %p306 = scmp.eq.s32.totalorder %s40, 0
      %p307 = por %p305, %p306
      %p308 = scmp.ne.s32.totalorder %s296, %s297
      %p309 = scmp.eq.s32.totalorder %s41, 1
      %p310 = por %p308, %p309
      %p312 = scmp.ne.s32.totalorder %s297, %s311
      %p313 = scmp.eq.s32.totalorder %s41, 0
      %p314 = por %p312, %p313
      %s316 = sadd.s32 %s315, 1
      %p319 = scmp.eq.s32.totalorder %s35, 1
      %p320 = scmp.ne.s32.totalorder %s315, %s317
      %p321 = scmp.eq.s32.totalorder %s35, 0
      %p322 = por %p320, %p321
      %p323 = scmp.ne.s32.totalorder %s315, %s317
      %p324 = scmp.eq.s32.totalorder %s40, 1
      %p325 = por %p323, %p324
      %p326 = scmp.ne.s32.totalorder %s317, %s318
      %p327 = scmp.eq.s32.totalorder %s40, 0
      %p328 = por %p326, %p327
      %p329 = scmp.ne.s32.totalorder %s317, %s318
      %p330 = scmp.eq.s32.totalorder %s41, 1
      %p331 = por %p329, %p330
      %p333 = scmp.ne.s32.totalorder %s318, %s332
      %p334 = scmp.eq.s32.totalorder %s41, 0
      %p335 = por %p333, %p334
      %s337 = sadd.s32 %s336, 1
      %p340 = scmp.eq.s32.totalorder %s35, 1
      %p341 = scmp.ne.s32.totalorder %s336, %s338
      %p342 = scmp.eq.s32.totalorder %s35, 0
      %p343 = por %p341, %p342
      %p344 = scmp.ne.s32.totalorder %s336, %s338
      %p345 = scmp.eq.s32.totalorder %s40, 1
      %p346 = por %p344, %p345
      %p347 = scmp.ne.s32.totalorder %s338, %s339
      %p348 = scmp.eq.s32.totalorder %s40, 0
      %p349 = por %p347, %p348
      %p350 = scmp.ne.s32.totalorder %s338, %s339
      %p351 = scmp.eq.s32.totalorder %s41, 1
      %p352 = por %p350, %p351
      %p354 = scmp.ne.s32.totalorder %s339, %s353
      %p355 = scmp.eq.s32.totalorder %s41, 0
      %p356 = por %p354, %p355
      %s358 = sadd.s32 %s357, 1
      %p361 = scmp.eq.s32.totalorder %s35, 1
      %p362 = scmp.ne.s32.totalorder %s357, %s359
      %p363 = scmp.eq.s32.totalorder %s35, 0
      %p364 = por %p362, %p363
      %p365 = scmp.ne.s32.totalorder %s357, %s359
      %p366 = scmp.eq.s32.totalorder %s40, 1
      %p367 = por %p365, %p366
      %p368 = scmp.ne.s32.totalorder %s359, %s360
      %p369 = scmp.eq.s32.totalorder %s40, 0
      %p370 = por %p368, %p369
      %p371 = scmp.ne.s32.totalorder %s359, %s360
      %p372 = scmp.eq.s32.totalorder %s41, 1
      %p373 = por %p371, %p372
      %p375 = scmp.ne.s32.totalorder %s360, %s374
      %p376 = scmp.eq.s32.totalorder %s41, 0
      %p377 = por %p375, %p376
      %s379 = sadd.s32 %s378, 1
      %p382 = scmp.eq.s32.totalorder %s35, 1
      %p383 = scmp.ne.s32.totalorder %s378, %s380
      %p384 = scmp.eq.s32.totalorder %s35, 0
      %p385 = por %p383, %p384
      %p386 = scmp.ne.s32.totalorder %s378, %s380
      %p387 = scmp.eq.s32.totalorder %s40, 1
      %p388 = por %p386, %p387
      %p389 = scmp.ne.s32.totalorder %s380, %s381
      %p390 = scmp.eq.s32.totalorder %s40, 0
      %p391 = por %p389, %p390
      %p392 = scmp.ne.s32.totalorder %s380, %s381
      %p393 = scmp.eq.s32.totalorder %s41, 1
      %p394 = por %p392, %p393
      %p396 = scmp.ne.s32.totalorder %s381, %s395
      %p397 = scmp.eq.s32.totalorder %s41, 0
      %p398 = por %p396, %p397
      %s400 = sadd.s32 %s399, 1
      %p403 = scmp.eq.s32.totalorder %s35, 1
      %p404 = scmp.ne.s32.totalorder %s399, %s401
      %p405 = scmp.eq.s32.totalorder %s35, 0
      %p406 = por %p404, %p405
      %p407 = scmp.ne.s32.totalorder %s399, %s401
      %p408 = scmp.eq.s32.totalorder %s40, 1
      %p409 = por %p407, %p408
      %p410 = scmp.ne.s32.totalorder %s401, %s402
      %p411 = scmp.eq.s32.totalorder %s40, 0
      %p412 = por %p410, %p411
      %p413 = scmp.ne.s32.totalorder %s401, %s402
      %p414 = scmp.eq.s32.totalorder %s41, 1
      %p415 = por %p413, %p414
      %p417 = scmp.ne.s32.totalorder %s402, %s416
      %p418 = scmp.eq.s32.totalorder %s41, 0
      %p419 = por %p417, %p418
      %s421 = sadd.s32 %s420, 1
      %p424 = scmp.eq.s32.totalorder %s35, 1
      %p425 = scmp.ne.s32.totalorder %s420, %s422
      %p426 = scmp.eq.s32.totalorder %s35, 0
      %p427 = por %p425, %p426
      %p428 = scmp.ne.s32.totalorder %s420, %s422
      %p429 = scmp.eq.s32.totalorder %s40, 1
      %p430 = por %p428, %p429
      %p431 = scmp.ne.s32.totalorder %s422, %s423
      %p432 = scmp.eq.s32.totalorder %s40, 0
      %p433 = por %p431, %p432
      %p434 = scmp.ne.s32.totalorder %s422, %s423
      %p435 = scmp.eq.s32.totalorder %s41, 1
      %p436 = por %p434, %p435
      %p438 = scmp.ne.s32.totalorder %s423, %s437
      %p439 = scmp.eq.s32.totalorder %s41, 0
      %p440 = por %p438, %p439
      %s441 = ssub.s32 %s35, %s42
      %p442 = scmp.eq.s32.totalorder %s441, 0
      %s444 = sadd.s32 %s443, 1
      %s445 = scalar_select %p442, %s443, %s444
      %p448 = pneg %p442
      %p449 = scmp.eq.s32.totalorder %s35, 1
      %p450 = por %p448, %p449
      %p451 = scmp.ne.s32.totalorder %s443, %s446
      %p452 = scmp.eq.s32.totalorder %s35, 0
      %p453 = por %p451, %p452
      %p454 = scmp.ne.s32.totalorder %s443, %s446
      %p455 = scmp.eq.s32.totalorder %s40, 1
      %p456 = por %p454, %p455
      %p457 = scmp.ne.s32.totalorder %s446, %s447
      %p458 = scmp.eq.s32.totalorder %s40, 0
      %p459 = por %p457, %p458
      %p460 = scmp.ne.s32.totalorder %s446, %s447
      %p461 = scmp.eq.s32.totalorder %s41, 1
      %p462 = por %p460, %p461
      %p464 = scmp.ne.s32.totalorder %s447, %s463
      %p465 = scmp.eq.s32.totalorder %s41, 0
      %p466 = por %p464, %p465
      %s467 = ssub.s32 %s35, %s42
      %p468 = scmp.eq.s32.totalorder %s467, 0
      %s470 = sadd.s32 %s469, 1
      %s471 = scalar_select %p468, %s469, %s470
      %p474 = pneg %p468
      %p475 = scmp.eq.s32.totalorder %s35, 1
      %p476 = por %p474, %p475
      %p477 = scmp.ne.s32.totalorder %s469, %s472
      %p478 = scmp.eq.s32.totalorder %s35, 0
      %p479 = por %p477, %p478
      %p480 = scmp.ne.s32.totalorder %s469, %s472
      %p481 = scmp.eq.s32.totalorder %s40, 1
      %p482 = por %p480, %p481
      %p483 = scmp.ne.s32.totalorder %s472, %s473
      %p484 = scmp.eq.s32.totalorder %s40, 0
      %p485 = por %p483, %p484
      %p486 = scmp.ne.s32.totalorder %s472, %s473
      %p487 = scmp.eq.s32.totalorder %s41, 1
      %p488 = por %p486, %p487
      %p490 = scmp.ne.s32.totalorder %s473, %s489
      %p491 = scmp.eq.s32.totalorder %s41, 0
      %p492 = por %p490, %p491
      %s493 = ssub.s32 %s35, %s42
      %p494 = scmp.eq.s32.totalorder %s493, 0
      %s496 = sadd.s32 %s495, 1
      %s497 = scalar_select %p494, %s495, %s496
      %p500 = pneg %p494
      %p501 = scmp.eq.s32.totalorder %s35, 1
      %p502 = por %p500, %p501
      %p503 = scmp.ne.s32.totalorder %s495, %s498
      %p504 = scmp.eq.s32.totalorder %s35, 0
      %p505 = por %p503, %p504
      %p506 = scmp.ne.s32.totalorder %s495, %s498
      %p507 = scmp.eq.s32.totalorder %s40, 1
      %p508 = por %p506, %p507
      %p509 = scmp.ne.s32.totalorder %s498, %s499
      %p510 = scmp.eq.s32.totalorder %s40, 0
      %p511 = por %p509, %p510
      %p512 = scmp.ne.s32.totalorder %s498, %s499
      %p513 = scmp.eq.s32.totalorder %s41, 1
      %p514 = por %p512, %p513
      %p516 = scmp.ne.s32.totalorder %s499, %s515
      %p517 = scmp.eq.s32.totalorder %s41, 0
      %p518 = por %p516, %p517
      %p519 = scmp.le.s32.totalorder 1, %s35
      %p520 = scmp.lt.s32.totalorder %s35, 3
      %p521 = pnand %p519, %p520
      %p522 = pneg %p521
      // Predicated region
      $region9: #{tpu_custom_call.1} parent=5 // pred_check
        _
      $region10: #{tpu_custom_call.1} parent=5 // pred_check_branch
        %524 = sbr.rel (%p521) target = $region12
      $region11: #{tpu_custom_call.1} parent=5 // pred_region
        %s525 = ssub.s32 %s35, 1
        // Predicated region
        $region13: #{tpu_custom_call.1} parent=11 // pred_check
          %p526 = pneg %p160
        $region14: #{tpu_custom_call.1} parent=11 // pred_check_branch
          %528 = sbr.rel (%p526) target = $region16
        $region15: #{tpu_custom_call.1} parent=11 // pred_region
          _
        $region16: #{tpu_custom_call.1} parent=11 // pred_fallthru
          _
        // Predicated region
        $region17: #{tpu_custom_call.1} parent=11 // pred_check
          %p529 = pneg %p181
        $region18: #{tpu_custom_call.1} parent=11 // pred_check_branch
          %531 = sbr.rel (%p529) target = $region20
        $region19: #{tpu_custom_call.1} parent=11 // pred_region
          _
        $region20: #{tpu_custom_call.1} parent=11 // pred_fallthru
          _
        // Predicated region
        $region21: #{tpu_custom_call.1} parent=11 // pred_check
          %p532 = pneg %p202
        $region22: #{tpu_custom_call.1} parent=11 // pred_check_branch
          %534 = sbr.rel (%p532) target = $region24
        $region23: #{tpu_custom_call.1} parent=11 // pred_region
          _
        $region24: #{tpu_custom_call.1} parent=11 // pred_fallthru
          _
        // Predicated region
        $region25: #{tpu_custom_call.1} parent=11 // pred_check
          %p535 = pneg %p223
        $region26: #{tpu_custom_call.1} parent=11 // pred_check_branch
          %537 = sbr.rel (%p535) target = $region28
        $region27: #{tpu_custom_call.1} parent=11 // pred_region
          _
        $region28: #{tpu_custom_call.1} parent=11 // pred_fallthru
          _
        // Predicated region
        $region29: #{tpu_custom_call.1} parent=11 // pred_check
          %p538 = pneg %p244
        $region30: #{tpu_custom_call.1} parent=11 // pred_check_branch
          %540 = sbr.rel (%p538) target = $region32
        $region31: #{tpu_custom_call.1} parent=11 // pred_region
          _
        $region32: #{tpu_custom_call.1} parent=11 // pred_fallthru
          _
        // Predicated region
        $region33: #{tpu_custom_call.1} parent=11 // pred_check
          %p541 = pneg %p265
        $region34: #{tpu_custom_call.1} parent=11 // pred_check_branch
          %543 = sbr.rel (%p541) target = $region36
        $region35: #{tpu_custom_call.1} parent=11 // pred_region
          _
        $region36: #{tpu_custom_call.1} parent=11 // pred_fallthru
          _
        // Predicated region
        $region37: #{tpu_custom_call.1} parent=11 // pred_check
          %p544 = pneg %p286
        $region38: #{tpu_custom_call.1} parent=11 // pred_check_branch
          %546 = sbr.rel (%p544) target = $region40
        $region39: #{tpu_custom_call.1} parent=11 // pred_region
          _
        $region40: #{tpu_custom_call.1} parent=11 // pred_fallthru
          _
        // Predicated region
        $region41: #{tpu_custom_call.1} parent=11 // pred_check
          %p547 = pneg %p307
        $region42: #{tpu_custom_call.1} parent=11 // pred_check_branch
          %549 = sbr.rel (%p547) target = $region44
        $region43: #{tpu_custom_call.1} parent=11 // pred_region
          _
        $region44: #{tpu_custom_call.1} parent=11 // pred_fallthru
          _
        // Predicated region
        $region45: #{tpu_custom_call.1} parent=11 // pred_check
          %p550 = pneg %p328
        $region46: #{tpu_custom_call.1} parent=11 // pred_check_branch
          %552 = sbr.rel (%p550) target = $region48
        $region47: #{tpu_custom_call.1} parent=11 // pred_region
          _
        $region48: #{tpu_custom_call.1} parent=11 // pred_fallthru
          _
        // Predicated region
        $region49: #{tpu_custom_call.1} parent=11 // pred_check
          %p553 = pneg %p349
        $region50: #{tpu_custom_call.1} parent=11 // pred_check_branch
          %555 = sbr.rel (%p553) target = $region52
        $region51: #{tpu_custom_call.1} parent=11 // pred_region
          _
        $region52: #{tpu_custom_call.1} parent=11 // pred_fallthru
          _
        // Predicated region
        $region53: #{tpu_custom_call.1} parent=11 // pred_check
          %p556 = pneg %p370
        $region54: #{tpu_custom_call.1} parent=11 // pred_check_branch
          %558 = sbr.rel (%p556) target = $region56
        $region55: #{tpu_custom_call.1} parent=11 // pred_region
          _
        $region56: #{tpu_custom_call.1} parent=11 // pred_fallthru
          _
        // Predicated region
        $region57: #{tpu_custom_call.1} parent=11 // pred_check
          %p559 = pneg %p391
        $region58: #{tpu_custom_call.1} parent=11 // pred_check_branch
          %561 = sbr.rel (%p559) target = $region60
        $region59: #{tpu_custom_call.1} parent=11 // pred_region
          _
        $region60: #{tpu_custom_call.1} parent=11 // pred_fallthru
          _
        // Predicated region
        $region61: #{tpu_custom_call.1} parent=11 // pred_check
          %p562 = pneg %p412
        $region62: #{tpu_custom_call.1} parent=11 // pred_check_branch
          %564 = sbr.rel (%p562) target = $region64
        $region63: #{tpu_custom_call.1} parent=11 // pred_region
          _
        $region64: #{tpu_custom_call.1} parent=11 // pred_fallthru
          _
        // Predicated region
        $region65: #{tpu_custom_call.1} parent=11 // pred_check
          %p565 = pneg %p433
        $region66: #{tpu_custom_call.1} parent=11 // pred_check_branch
          %567 = sbr.rel (%p565) target = $region68
        $region67: #{tpu_custom_call.1} parent=11 // pred_region
          _
        $region68: #{tpu_custom_call.1} parent=11 // pred_fallthru
          _
      $region12: #{tpu_custom_call.1} parent=5 // pred_fallthru
        _
      %p568 = scmp.lt.s32.totalorder %s35, 2
      // Predicated region
      $region69: #{tpu_custom_call.1} parent=5 // pred_check
        %p569 = pneg %p568
      $region70: #{tpu_custom_call.1} parent=5 // pred_check_branch
        %571 = sbr.rel (%p569) target = $region72
      $region71: #{tpu_custom_call.1} parent=5 // pred_region
        // Predicated region
        $region73: #{tpu_custom_call.1} parent=71 // pred_check
          %p572 = pneg %p55
        $region74: #{tpu_custom_call.1} parent=71 // pred_check_branch
          %574 = sbr.rel (%p572) target = $region76
        $region75: #{tpu_custom_call.1} parent=71 // pred_region
          %s575 = smul.u32 4, %s35
          %p576 = scmp.lt.s32.totalorder %s575, 7
          %s577 = scalar_select %p576, %s575, 7
          %s578 = smul.addr %s577, 8
          %s579 = scalar_lea.vmem %s0, %s578
          %s580 = smul.u32 4, %s35
        $region76: #{tpu_custom_call.1} parent=71 // pred_fallthru
          _
        // Predicated region
        $region77: #{tpu_custom_call.1} parent=71 // pred_check
          %p581 = pneg %p81
        $region78: #{tpu_custom_call.1} parent=71 // pred_check_branch
          %583 = sbr.rel (%p581) target = $region80
        $region79: #{tpu_custom_call.1} parent=71 // pred_region
          %s584 = smul.u32 4, %s35
          %p585 = scmp.lt.s32.totalorder %s584, 7
          %s586 = scalar_select %p585, %s584, 7
          %s587 = smul.addr %s586, 8
          %s588 = scalar_lea.vmem %s1, %s587
          %s589 = smul.u32 4, %s35
        $region80: #{tpu_custom_call.1} parent=71 // pred_fallthru
          _
        // Predicated region
        $region81: #{tpu_custom_call.1} parent=71 // pred_check
          %p590 = pneg %p107
        $region82: #{tpu_custom_call.1} parent=71 // pred_check_branch
          %592 = sbr.rel (%p590) target = $region84
        $region83: #{tpu_custom_call.1} parent=71 // pred_region
          %s593 = smul.u32 4, %s35
          %p594 = scmp.lt.s32.totalorder %s593, 7
          %s595 = scalar_select %p594, %s593, 7
          %s596 = smul.addr %s595, 8
          %s597 = scalar_lea.vmem %s2, %s596
          %s598 = smul.u32 4, %s35
        $region84: #{tpu_custom_call.1} parent=71 // pred_fallthru
          _
        // Predicated region
        $region85: #{tpu_custom_call.1} parent=71 // pred_check
          %p599 = pneg %p133
        $region86: #{tpu_custom_call.1} parent=71 // pred_check_branch
          %601 = sbr.rel (%p599) target = $region88
        $region87: #{tpu_custom_call.1} parent=71 // pred_region
          %s602 = smul.u32 4, %s35
          %p603 = scmp.lt.s32.totalorder %s602, 7
          %s604 = scalar_select %p603, %s602, 7
          %s605 = smul.addr %s604, 8
          %s606 = scalar_lea.vmem %s3, %s605
          %s607 = smul.u32 4, %s35
        $region88: #{tpu_custom_call.1} parent=71 // pred_fallthru
          _
      $region72: #{tpu_custom_call.1} parent=5 // pred_fallthru
        _
      %p608 = scmp.le.s32.totalorder 1, %s35
      %p609 = scmp.lt.s32.totalorder %s35, 3
      %p610 = pnand %p608, %p609
      %p611 = pneg %p610
      // Predicated region
      $region89: #{tpu_custom_call.1} parent=5 // pred_check
        _
      $region90: #{tpu_custom_call.1} parent=5 // pred_check_branch
        %613 = sbr.rel (%p610) target = $region92
      $region91: #{tpu_custom_call.1} parent=5 // pred_region
        %s614 = ssub.s32 %s35, 1
        %s615 = smul.u32 4, %s40
        %p616 = scmp.lt.s32.totalorder %s615, 7
        %s617 = scalar_select %p616, %s615, 7
        %s618 = smul.addr %s617, 8
        %s619 = scalar_lea.vmem %s0, %s618
        %p620 = pneg %p61
        %p621 = pneg %p58
        %s622 = smul.u32 4, %s40
        %p623 = scmp.lt.s32.totalorder %s622, 7
        %s624 = scalar_select %p623, %s622, 7
        %s625 = smul.addr %s624, 8
        %s626 = scalar_lea.vmem %s1, %s625
        %p627 = pneg %p87
        %p628 = pneg %p84
        %s629 = smul.u32 4, %s40
        %p630 = scmp.lt.s32.totalorder %s629, 7
        %s631 = scalar_select %p630, %s629, 7
        %s632 = smul.addr %s631, 8
        %s633 = scalar_lea.vmem %s2, %s632
        %p634 = pneg %p113
        %p635 = pneg %p110
        %s636 = smul.u32 4, %s40
        %p637 = scmp.lt.s32.totalorder %s636, 7
        %s638 = scalar_select %p637, %s636, 7
        %s639 = smul.addr %s638, 8
        %s640 = scalar_lea.vmem %s3, %s639
        %p641 = pneg %p139
        %p642 = pneg %p136
        %p643 = pneg %p160
        %p644 = pneg %p157
        %p645 = pneg %p181
        %p646 = pneg %p178
        %p647 = pneg %p202
        %p648 = pneg %p199
        %p649 = pneg %p223
        %p650 = pneg %p220
        %p651 = pneg %p244
        %p652 = pneg %p241
        %p653 = pneg %p265
        %p654 = pneg %p262
        %p655 = pneg %p286
        %p656 = pneg %p283
        %p657 = pneg %p307
        %p658 = pneg %p304
        %p659 = pneg %p328
        %p660 = pneg %p325
        %p661 = pneg %p349
        %p662 = pneg %p346
        %p663 = pneg %p370
        %p664 = pneg %p367
        %p665 = pneg %p391
        %p666 = pneg %p388
        %p667 = pneg %p412
        %p668 = pneg %p409
        %p669 = pneg %p433
        %p670 = pneg %p430
        %p671 = pneg %p459
        %p672 = pneg %p456
        %s673 = sand.u32 %s446, 1
        %s674 = scalar_lea.sflag [#allocation4], %s673
        %s675 = sand.u32 %s446, 1
        %s676 = smul.addr %s675, 64
        %s677 = scalar_lea.vmem [#allocation3], %s676
        %p678 = pneg %p485
        %p679 = pneg %p482
        %s680 = sand.u32 %s472, 1
        %s681 = scalar_lea.sflag [#allocation6], %s680
        %s682 = sand.u32 %s472, 1
        %s683 = smul.addr %s682, 64
        %s684 = scalar_lea.vmem [#allocation5], %s683
        %p685 = pneg %p511
        %p686 = pneg %p508
        %s687 = smul.u32 4, %s40
        %p688 = scmp.lt.s32.totalorder %s687, 7
        %s689 = scalar_select %p688, %s687, 7
        %s690 = smul.addr %s689, 2
        %s691 = smul.addr %s690, 8
        %s692 = scalar_lea.vmem %s20, %s691
        %s693 = smul.u32 4, %s40
        %p694 = scmp.lt.s32.totalorder %s693, 7
        %s695 = scalar_select %p694, %s693, 7
        %s696 = smul.addr %s695, 8
        %s697 = scalar_lea.vmem %s0, %s696
        %s698 = smul.u32 4, %s40
        %s699 = smul.u32 4, %s40
        %p700 = scmp.lt.s32.totalorder %s699, 7
        %s701 = scalar_select %p700, %s699, 7
        %s702 = smul.addr %s701, 8
        %s703 = scalar_lea.vmem %s1, %s702
        %s704 = smul.u32 4, %s40
        %s705 = smul.u32 4, %s40
        %p706 = scmp.lt.s32.totalorder %s705, 7
        %s707 = scalar_select %p706, %s705, 7
        %s708 = smul.addr %s707, 8
        %s709 = scalar_lea.vmem %s2, %s708
        %s710 = smul.u32 4, %s40
        %s711 = smul.u32 4, %s40
        %p712 = scmp.lt.s32.totalorder %s711, 7
        %s713 = scalar_select %p712, %s711, 7
        %s714 = smul.addr %s713, 8
        %s715 = scalar_lea.vmem %s3, %s714
        %s716 = smul.u32 4, %s40
        %s717 = smul.u32 4, %s40
        %s718 = smul.u32 4, %s40
        %s719 = smul.u32 4, %s40
        %p720 = scmp.lt.s32.totalorder %s719, 7
        %s721 = scalar_select %p720, %s719, 7
        %s722 = smul.addr %s721, 2
        %s723 = smul.addr %s722, 8
        %s724 = scalar_lea.vmem %s20, %s723
        %s725 = smul.u32 4, %s40
        %v726 = vld [vmem:[%s697] sm:$0xff]
        %v727 = vld [vmem:[%s697 + $0x8] sm:$0xff]
        %v728 = vld [vmem:[%s697 + $0x10] sm:$0xff]
        %v729 = vld [vmem:[%s697 + $0x18] sm:$0xff]
        %v730 = vld [vmem:[%s703] sm:$0xff]
        %v731 = vld [vmem:[%s703 + $0x8] sm:$0xff]
        %v732 = vld [vmem:[%s703 + $0x10] sm:$0xff]
        %v733 = vld [vmem:[%s703 + $0x18] sm:$0xff]
        %v734 = vld [vmem:[%s709] sm:$0xff]
        %v735 = vld [vmem:[%s709 + $0x8] sm:$0xff]
        %v736 = vld [vmem:[%s709 + $0x10] sm:$0xff]
        %v737 = vld [vmem:[%s709 + $0x18] sm:$0xff]
        %v738 = vld [vmem:[%s715] sm:$0xff]
        %v739 = vld [vmem:[%s715 + $0x8] sm:$0xff]
        %v740 = vld [vmem:[%s715 + $0x10] sm:$0xff]
        %v741 = vld [vmem:[%s715 + $0x18] sm:$0xff]
        %v742 = vld [vmem:[%s6] sm:$0xff]
        %v743 = vlaneseq
        %v744 = vshrl.u32 %v743, 7
        %v745 = vsub.s32 2, %v744
        %v746 = vrot.slane %v726, %v745
        %v747 = vlaneseq
        %v748 = vshrl.u32 %v747, 7
        %v749 = vsub.s32 2, %v748
        %v750 = vrot.slane %v727, %v749
        %v751 = vlaneseq
        %v752 = vshrl.u32 %v751, 7
        %v753 = vsub.s32 2, %v752
        %v754 = vrot.slane %v728, %v753
        %v755 = vlaneseq
        %v756 = vshrl.u32 %v755, 7
        %v757 = vsub.s32 2, %v756
        %v758 = vrot.slane %v729, %v757
        %v759 = vadd.f32 %v746, %v742
        %v760 = vadd.f32 %v750, %v742
        %v761 = vadd.f32 %v754, %v742
        %v762 = vadd.f32 %v758, %v742
        %v763 = vadd.f32 %v746, %v730
        %v764 = vadd.f32 %v750, %v731
        %v765 = vadd.f32 %v754, %v732
        %v766 = vadd.f32 %v758, %v733
        %v767 = vadd.f32 %v726, %v734
        %v768 = vadd.f32 %v727, %v735
        %v769 = vadd.f32 %v728, %v736
        %v770 = vadd.f32 %v729, %v737
        %v771 = vld [vmem:[%s7] sm:$0xff]
        %v772 = vld [vmem:[%s7 + $0x8] sm:$0xff]
        %v773 = vld [vmem:[%s7 + $0x10] sm:$0xff]
        %v774 = vld [vmem:[%s7 + $0x18] sm:$0xff]
        %v775 = vld [vmem:[%s8] sm:$0x1]
        %v776 = vld [vmem:[%s9] sm:$0xff]
        %v777 = vld [vmem:[%s9 + $0x8] sm:$0xff]
        %v778 = vld [vmem:[%s9 + $0x10] sm:$0xff]
        %v779 = vld [vmem:[%s9 + $0x18] sm:$0xff]
        %v780 = vld [vmem:[%s10] sm:$0x1]
        %v781 = vld [vmem:[%s11] sm:$0xff]
        %v782 = vld [vmem:[%s11 + $0x8] sm:$0xff]
        %v783 = vld [vmem:[%s11 + $0x10] sm:$0xff]
        %v784 = vld [vmem:[%s11 + $0x18] sm:$0xff]
        %v785 = vld [vmem:[%s12] sm:$0x1]
        %v787 = vlaneseq
        %v788 = vshrl.u32 %v787, 7
        %v789 = vsub.s32 0, %v788
        %v790 = vrot.slane %v775, %v789
        %vm792 = vcmask 261120
        %v794 = vsel %vm792, %v759, 0
        %v797 = vsel %vm792, %v763, 0
        %v800 = vsel %vm792, %v760, 0
        %v803 = vsel %vm792, %v764, 0
        %v806 = vsel %vm792, %v761, 0
        %v809 = vsel %vm792, %v765, 0
        %v812 = vsel %vm792, %v762, 0
        %v815 = vsel %vm792, %v766, 0
        %817 = vmatprep.subr.mxu0 0.0
        %818 = vmatpush1.msra.mxu0 %v771
        %819 = vmatprep.subr.mxu0 0.0
        %820 = vmatpush1.msra.mxu0 %v772
        %821 = vmatprep.subr.mxu0 0.0
        %822 = vmatpush1.msra.mxu0 %v773
        %823 = vmatprep.subr.mxu0 0.0
        %824 = vmatpush1.msra.mxu0 %v774
        %825 = vmatprep.subr.mxu0 0.0
        %826 = vmatpush1.msra.mxu0 0.0
        %827 = vmatprep.subr.mxu0 0.0
        %828 = vmatpush1.msra.mxu0 0.0
        %829 = vmatprep.subr.mxu0 0.0
        %830 = vmatpush1.msra.mxu0 0.0
        %831 = vmatprep.subr.mxu0 0.0
        %832 = vmatpush1.msra.mxu0 0.0
        %833 = vmatprep.subr.mxu0 0.0
        %834 = vmatpush1.msra.mxu0 0.0
        %835 = vmatprep.subr.mxu0 0.0
        %836 = vmatpush1.msra.mxu0 0.0
        %837 = vmatprep.subr.mxu0 0.0
        %838 = vmatpush1.msra.mxu0 0.0
        %839 = vmatprep.subr.mxu0 0.0
        %840 = vmatpush1.msra.mxu0 0.0
        %841 = vmatprep.subr.mxu0 0.0
        %842 = vmatpush1.msra.mxu0 0.0
        %843 = vmatprep.subr.mxu0 0.0
        %844 = vmatpush1.msra.mxu0 0.0
        %845 = vmatprep.subr.mxu0 0.0
        %846 = vmatpush1.msra.mxu0 0.0
        %847 = vmatprep.subr.mxu0 0.0
        %848 = vmatpush1.msra.mxu0 0.0
        %849 = vmatprep.subr.mxu0 0.0
        %850 = vmatpush1.msra.mxu0 0.0
        %851 = vmatprep.subr.mxu0 0.0
        %852 = vmatpush1.msra.mxu0 0.0
        %853 = vmatprep.subr.mxu0 0.0
        %854 = vmatpush1.msra.mxu0 0.0
        %855 = vmatprep.subr.mxu0 0.0
        %856 = vmatpush1.msra.mxu0 0.0
        %857 = vmatprep.subr.mxu0 0.0
        %858 = vmatpush1.msra.mxu0 0.0
        %859 = vmatprep.subr.mxu0 0.0
        %860 = vmatpush1.msra.mxu0 0.0
        %861 = vmatprep.subr.mxu0 0.0
        %862 = vmatpush1.msra.mxu0 0.0
        %863 = vmatprep.subr.mxu0 0.0
        %864 = vmatpush1.msra.mxu0 0.0
        %865 = vmatprep.subr.mxu0 0.0
        %866 = vmatpush1.msra.mxu0 0.0
        %867 = vmatprep.subr.mxu0 0.0
        %868 = vmatpush1.msra.mxu0 0.0
        %869 = vmatprep.subr.mxu0 0.0
        %870 = vmatpush1.msra.mxu0 0.0
        %871 = vmatprep.subr.mxu0 0.0
        %872 = vmatpush1.msra.mxu0 0.0
        %873 = vmatprep.subr.mxu0 0.0
        %874 = vmatpush1.msra.mxu0 0.0
        %875 = vmatprep.subr.mxu0 0.0
        %876 = vmatpush1.msra.mxu0 0.0
        %877 = vmatprep.subr.mxu0 0.0
        %878 = vmatpush1.msra.mxu0 0.0
        %879 = vmatprep.subr.mxu0 0.0
        %880 = vmatpush1.msra.mxu0 0.0
        %881 = vmatprep.mubr.f32.mxu0 0.0
        %882 = vmatmul.mubr.f32.gmra.mrb[0].mxu0 %v794
        %v883 = vpop.f32.mrb[0].mxu0
        %v884 = vadd.f32 %v790, %v883
        %v885 = vpop.f32.mrb[0].mxu0
        %886 = vmatprep.mubr.f32.mxu0 0.0
        %887 = vmatmul.mubr.f32.gmra.mrb[0].mxu0 %v797
        %v888 = vpop.f32.mrb[0].mxu0
        %v889 = vadd.f32 %v790, %v888
        %v890 = vpop.f32.mrb[0].mxu0
        %891 = vmatprep.mubr.f32.mxu0 0.0
        %892 = vmatmul.mubr.f32.gmra.mrb[0].mxu0 %v800
        %v893 = vpop.f32.mrb[0].mxu0
        %v894 = vadd.f32 %v790, %v893
        %v895 = vpop.f32.mrb[0].mxu0
        %896 = vmatprep.mubr.f32.mxu0 0.0
        %897 = vmatmul.mubr.f32.gmra.mrb[0].mxu0 %v803
        %v898 = vpop.f32.mrb[0].mxu0
        %v899 = vadd.f32 %v790, %v898
        %v900 = vpop.f32.mrb[0].mxu0
        %901 = vmatprep.mubr.f32.mxu0 0.0
        %902 = vmatmul.mubr.f32.gmra.mrb[0].mxu0 %v806
        %v903 = vpop.f32.mrb[0].mxu0
        %v904 = vadd.f32 %v790, %v903
        %v905 = vpop.f32.mrb[0].mxu0
        %906 = vmatprep.mubr.f32.mxu0 0.0
        %907 = vmatmul.mubr.f32.gmra.mrb[0].mxu0 %v809
        %v908 = vpop.f32.mrb[0].mxu0
        %v909 = vadd.f32 %v790, %v908
        %v910 = vpop.f32.mrb[0].mxu0
        %911 = vmatprep.mubr.f32.mxu0 0.0
        %912 = vmatmul.mubr.f32.gmra.mrb[0].mxu0 %v812
        %v913 = vpop.f32.mrb[0].mxu0
        %v914 = vadd.f32 %v790, %v913
        %v915 = vpop.f32.mrb[0].mxu0
        %916 = vmatprep.mubr.f32.mxu0 0.0
        %917 = vmatmul.mubr.f32.gmra.mrb[0].mxu0 %v815
        %v918 = vpop.f32.mrb[0].mxu0
        %v919 = vadd.f32 %v790, %v918
        %v920 = vpop.f32.mrb[0].mxu0
        %921 = vdwg.mxu0
        %v922 = vmax.f32 %v884, 0.0
        %v923 = vmax.f32 %v889, 0.0
        %v924 = vmax.f32 %v894, 0.0
        %v925 = vmax.f32 %v899, 0.0
        %v926 = vmax.f32 %v904, 0.0
        %v927 = vmax.f32 %v909, 0.0
        %v928 = vmax.f32 %v914, 0.0
        %v929 = vmax.f32 %v919, 0.0
        %v931 = vlaneseq
        %v932 = vshrl.u32 %v931, 7
        %v933 = vsub.s32 0, %v932
        %v934 = vrot.slane %v780, %v933
        %v937 = vsel %vm792, %v922, 0
        %v940 = vsel %vm792, %v923, 0
        %v943 = vsel %vm792, %v924, 0
        %v946 = vsel %vm792, %v925, 0
        %v949 = vsel %vm792, %v926, 0
        %v952 = vsel %vm792, %v927, 0
        %v955 = vsel %vm792, %v928, 0
        %v958 = vsel %vm792, %v929, 0
        %960 = vmatprep.subr.mxu0 0.0
        %961 = vmatpush1.msra.mxu0 %v776
        %962 = vmatprep.subr.mxu0 0.0
        %963 = vmatpush1.msra.mxu0 %v777
        %964 = vmatprep.subr.mxu0 0.0
        %965 = vmatpush1.msra.mxu0 %v778
        %966 = vmatprep.subr.mxu0 0.0
        %967 = vmatpush1.msra.mxu0 %v779
        %968 = vmatprep.subr.mxu0 0.0
        %969 = vmatpush1.msra.mxu0 0.0
        %970 = vmatprep.subr.mxu0 0.0
        %971 = vmatpush1.msra.mxu0 0.0
        %972 = vmatprep.subr.mxu0 0.0
        %973 = vmatpush1.msra.mxu0 0.0
        %974 = vmatprep.subr.mxu0 0.0
        %975 = vmatpush1.msra.mxu0 0.0
        %976 = vmatprep.subr.mxu0 0.0
        %977 = vmatpush1.msra.mxu0 0.0
        %978 = vmatprep.subr.mxu0 0.0
        %979 = vmatpush1.msra.mxu0 0.0
        %980 = vmatprep.subr.mxu0 0.0
        %981 = vmatpush1.msra.mxu0 0.0
        %982 = vmatprep.subr.mxu0 0.0
        %983 = vmatpush1.msra.mxu0 0.0
        %984 = vmatprep.subr.mxu0 0.0
        %985 = vmatpush1.msra.mxu0 0.0
        %986 = vmatprep.subr.mxu0 0.0
        %987 = vmatpush1.msra.mxu0 0.0
        %988 = vmatprep.subr.mxu0 0.0
        %989 = vmatpush1.msra.mxu0 0.0
        %990 = vmatprep.subr.mxu0 0.0
        %991 = vmatpush1.msra.mxu0 0.0
        %992 = vmatprep.subr.mxu0 0.0
        %993 = vmatpush1.msra.mxu0 0.0
        %994 = vmatprep.subr.mxu0 0.0
        %995 = vmatpush1.msra.mxu0 0.0
        %996 = vmatprep.subr.mxu0 0.0
        %997 = vmatpush1.msra.mxu0 0.0
        %998 = vmatprep.subr.mxu0 0.0
        %999 = vmatpush1.msra.mxu0 0.0
        %1000 = vmatprep.subr.mxu0 0.0
        %1001 = vmatpush1.msra.mxu0 0.0
        %1002 = vmatprep.subr.mxu0 0.0
        %1003 = vmatpush1.msra.mxu0 0.0
        %1004 = vmatprep.subr.mxu0 0.0
        %1005 = vmatpush1.msra.mxu0 0.0
        %1006 = vmatprep.subr.mxu0 0.0
        %1007 = vmatpush1.msra.mxu0 0.0
        %1008 = vmatprep.subr.mxu0 0.0
        %1009 = vmatpush1.msra.mxu0 0.0
        %1010 = vmatprep.subr.mxu0 0.0
        %1011 = vmatpush1.msra.mxu0 0.0
        %1012 = vmatprep.subr.mxu0 0.0
        %1013 = vmatpush1.msra.mxu0 0.0
        %1014 = vmatprep.subr.mxu0 0.0
        %1015 = vmatpush1.msra.mxu0 0.0
        %1016 = vmatprep.subr.mxu0 0.0
        %1017 = vmatpush1.msra.mxu0 0.0
        %1018 = vmatprep.subr.mxu0 0.0
        %1019 = vmatpush1.msra.mxu0 0.0
        %1020 = vmatprep.subr.mxu0 0.0
        %1021 = vmatpush1.msra.mxu0 0.0
        %1022 = vmatprep.subr.mxu0 0.0
        %1023 = vmatpush1.msra.mxu0 0.0
        %1024 = vmatprep.mubr.f32.mxu0 0.0
        %1025 = vmatmul.mubr.f32.gmra.mrb[0].mxu0 %v937
        %v1026 = vpop.f32.mrb[0].mxu0
        %v1027 = vadd.f32 %v934, %v1026
        %v1028 = vpop.f32.mrb[0].mxu0
        %1029 = vmatprep.mubr.f32.mxu0 0.0
        %1030 = vmatmul.mubr.f32.gmra.mrb[0].mxu0 %v940
        %v1031 = vpop.f32.mrb[0].mxu0
        %v1032 = vadd.f32 %v934, %v1031
        %v1033 = vpop.f32.mrb[0].mxu0
        %1034 = vmatprep.mubr.f32.mxu0 0.0
        %1035 = vmatmul.mubr.f32.gmra.mrb[0].mxu0 %v943
        %v1036 = vpop.f32.mrb[0].mxu0
        %v1037 = vadd.f32 %v934, %v1036
        %v1038 = vpop.f32.mrb[0].mxu0
        %1039 = vmatprep.mubr.f32.mxu0 0.0
        %1040 = vmatmul.mubr.f32.gmra.mrb[0].mxu0 %v946
        %v1041 = vpop.f32.mrb[0].mxu0
        %v1042 = vadd.f32 %v934, %v1041
        %v1043 = vpop.f32.mrb[0].mxu0
        %1044 = vmatprep.mubr.f32.mxu0 0.0
        %1045 = vmatmul.mubr.f32.gmra.mrb[0].mxu0 %v949
        %v1046 = vpop.f32.mrb[0].mxu0
        %v1047 = vadd.f32 %v934, %v1046
        %v1048 = vpop.f32.mrb[0].mxu0
        %1049 = vmatprep.mubr.f32.mxu0 0.0
        %1050 = vmatmul.mubr.f32.gmra.mrb[0].mxu0 %v952
        %v1051 = vpop.f32.mrb[0].mxu0
        %v1052 = vadd.f32 %v934, %v1051
        %v1053 = vpop.f32.mrb[0].mxu0
        %1054 = vmatprep.mubr.f32.mxu0 0.0
        %1055 = vmatmul.mubr.f32.gmra.mrb[0].mxu0 %v955
        %v1056 = vpop.f32.mrb[0].mxu0
        %v1057 = vadd.f32 %v934, %v1056
        %v1058 = vpop.f32.mrb[0].mxu0
        %1059 = vmatprep.mubr.f32.mxu0 0.0
        %1060 = vmatmul.mubr.f32.gmra.mrb[0].mxu0 %v958
        %v1061 = vpop.f32.mrb[0].mxu0
        %v1062 = vadd.f32 %v934, %v1061
        %v1063 = vpop.f32.mrb[0].mxu0
        %1064 = vdwg.mxu0
        %v1065 = vmax.f32 %v1027, 0.0
        %v1066 = vmax.f32 %v1032, 0.0
        %v1067 = vmax.f32 %v1037, 0.0
        %v1068 = vmax.f32 %v1042, 0.0
        %v1069 = vmax.f32 %v1047, 0.0
        %v1070 = vmax.f32 %v1052, 0.0
        %v1071 = vmax.f32 %v1057, 0.0
        %v1072 = vmax.f32 %v1062, 0.0
        %v1074 = vlaneseq
        %v1075 = vshrl.u32 %v1074, 7
        %v1076 = vsub.s32 0, %v1075
        %v1077 = vrot.slane %v785, %v1076
        %1079 = vmatprep.subr.mxu0 0.0
        %1080 = vmatpush1.msra.mxu0 %v781
        %1081 = vmatprep.subr.mxu0 0.0
        %1082 = vmatpush1.msra.mxu0 %v782
        %1083 = vmatprep.subr.mxu0 0.0
        %1084 = vmatpush1.msra.mxu0 %v783
        %1085 = vmatprep.subr.mxu0 0.0
        %1086 = vmatpush1.msra.mxu0 %v784
        %1087 = vmatprep.subr.mxu0 0.0
        %1088 = vmatpush1.msra.mxu0 0.0
        %1089 = vmatprep.subr.mxu0 0.0
        %1090 = vmatpush1.msra.mxu0 0.0
        %1091 = vmatprep.subr.mxu0 0.0
        %1092 = vmatpush1.msra.mxu0 0.0
        %1093 = vmatprep.subr.mxu0 0.0
        %1094 = vmatpush1.msra.mxu0 0.0
        %1095 = vmatprep.subr.mxu0 0.0
        %1096 = vmatpush1.msra.mxu0 0.0
        %1097 = vmatprep.subr.mxu0 0.0
        %1098 = vmatpush1.msra.mxu0 0.0
        %1099 = vmatprep.subr.mxu0 0.0
        %1100 = vmatpush1.msra.mxu0 0.0
        %1101 = vmatprep.subr.mxu0 0.0
        %1102 = vmatpush1.msra.mxu0 0.0
        %1103 = vmatprep.subr.mxu0 0.0
        %1104 = vmatpush1.msra.mxu0 0.0
        %1105 = vmatprep.subr.mxu0 0.0
        %1106 = vmatpush1.msra.mxu0 0.0
        %1107 = vmatprep.subr.mxu0 0.0
        %1108 = vmatpush1.msra.mxu0 0.0
        %1109 = vmatprep.subr.mxu0 0.0
        %1110 = vmatpush1.msra.mxu0 0.0
        %1111 = vmatprep.subr.mxu0 0.0
        %1112 = vmatpush1.msra.mxu0 0.0
        %1113 = vmatprep.subr.mxu0 0.0
        %1114 = vmatpush1.msra.mxu0 0.0
        %1115 = vmatprep.subr.mxu0 0.0
        %1116 = vmatpush1.msra.mxu0 0.0
        %1117 = vmatprep.subr.mxu0 0.0
        %1118 = vmatpush1.msra.mxu0 0.0
        %1119 = vmatprep.subr.mxu0 0.0
        %1120 = vmatpush1.msra.mxu0 0.0
        %1121 = vmatprep.subr.mxu0 0.0
        %1122 = vmatpush1.msra.mxu0 0.0
        %1123 = vmatprep.subr.mxu0 0.0
        %1124 = vmatpush1.msra.mxu0 0.0
        %1125 = vmatprep.subr.mxu0 0.0
        %1126 = vmatpush1.msra.mxu0 0.0
        %1127 = vmatprep.subr.mxu0 0.0
        %1128 = vmatpush1.msra.mxu0 0.0
        %1129 = vmatprep.subr.mxu0 0.0
        %1130 = vmatpush1.msra.mxu0 0.0
        %1131 = vmatprep.subr.mxu0 0.0
        %1132 = vmatpush1.msra.mxu0 0.0
        %1133 = vmatprep.subr.mxu0 0.0
        %1134 = vmatpush1.msra.mxu0 0.0
        %1135 = vmatprep.subr.mxu0 0.0
        %1136 = vmatpush1.msra.mxu0 0.0
        %1137 = vmatprep.subr.mxu0 0.0
        %1138 = vmatpush1.msra.mxu0 0.0
        %1139 = vmatprep.subr.mxu0 0.0
        %1140 = vmatpush1.msra.mxu0 0.0
        %1141 = vmatprep.subr.mxu0 0.0
        %1142 = vmatpush1.msra.mxu0 0.0
        %1143 = vmatprep.mubr.f32.mxu0 0.0
        %1144 = vmatmul.mubr.f32.gmra.mrb[0].mxu0 %v937
        %v1145 = vpop.f32.mrb[0].mxu0
        %v1146 = vadd.f32 %v1077, %v1145
        %v1147 = vpop.f32.mrb[0].mxu0
        %1148 = vmatprep.mubr.f32.mxu0 0.0
        %1149 = vmatmul.mubr.f32.gmra.mrb[0].mxu0 %v940
        %v1150 = vpop.f32.mrb[0].mxu0
        %v1151 = vadd.f32 %v1077, %v1150
        %v1152 = vpop.f32.mrb[0].mxu0
        %1153 = vmatprep.mubr.f32.mxu0 0.0
        %1154 = vmatmul.mubr.f32.gmra.mrb[0].mxu0 %v943
        %v1155 = vpop.f32.mrb[0].mxu0
        %v1156 = vadd.f32 %v1077, %v1155
        %v1157 = vpop.f32.mrb[0].mxu0
        %1158 = vmatprep.mubr.f32.mxu0 0.0
        %1159 = vmatmul.mubr.f32.gmra.mrb[0].mxu0 %v946
        %v1160 = vpop.f32.mrb[0].mxu0
        %v1161 = vadd.f32 %v1077, %v1160
        %v1162 = vpop.f32.mrb[0].mxu0
        %1163 = vmatprep.mubr.f32.mxu0 0.0
        %1164 = vmatmul.mubr.f32.gmra.mrb[0].mxu0 %v949
        %v1165 = vpop.f32.mrb[0].mxu0
        %v1166 = vadd.f32 %v1077, %v1165
        %v1167 = vpop.f32.mrb[0].mxu0
        %1168 = vmatprep.mubr.f32.mxu0 0.0
        %1169 = vmatmul.mubr.f32.gmra.mrb[0].mxu0 %v952
        %v1170 = vpop.f32.mrb[0].mxu0
        %v1171 = vadd.f32 %v1077, %v1170
        %v1172 = vpop.f32.mrb[0].mxu0
        %1173 = vmatprep.mubr.f32.mxu0 0.0
        %1174 = vmatmul.mubr.f32.gmra.mrb[0].mxu0 %v955
        %v1175 = vpop.f32.mrb[0].mxu0
        %v1176 = vadd.f32 %v1077, %v1175
        %v1177 = vpop.f32.mrb[0].mxu0
        %1178 = vmatprep.mubr.f32.mxu0 0.0
        %1179 = vmatmul.mubr.f32.gmra.mrb[0].mxu0 %v958
        %v1180 = vpop.f32.mrb[0].mxu0
        %v1181 = vadd.f32 %v1077, %v1180
        %v1182 = vpop.f32.mrb[0].mxu0
        %1183 = vdwg.mxu0
        %v1184 = vmax.f32 %v1146, 0.0
        %v1185 = vmax.f32 %v1151, 0.0
        %v1186 = vmax.f32 %v1156, 0.0
        %v1187 = vmax.f32 %v1161, 0.0
        %v1188 = vmax.f32 %v1166, 0.0
        %v1189 = vmax.f32 %v1171, 0.0
        %v1190 = vmax.f32 %v1176, 0.0
        %v1191 = vmax.f32 %v1181, 0.0
        %v1193 = vsel %vm792, %v726, 0
        %v1196 = vsel %vm792, %v767, 0
        %v1199 = vsel %vm792, %v727, 0
        %v1202 = vsel %vm792, %v768, 0
        %v1205 = vsel %vm792, %v728, 0
        %v1208 = vsel %vm792, %v769, 0
        %v1211 = vsel %vm792, %v729, 0
        %v1214 = vsel %vm792, %v770, 0
        %1216 = vmatprep.subr.mxu0 0.0
        %1217 = vmatpush1.msra.mxu0 %v771
        %1218 = vmatprep.subr.mxu0 0.0
        %1219 = vmatpush1.msra.mxu0 %v772
        %1220 = vmatprep.subr.mxu0 0.0
        %1221 = vmatpush1.msra.mxu0 %v773
        %1222 = vmatprep.subr.mxu0 0.0
        %1223 = vmatpush1.msra.mxu0 %v774
        %1224 = vmatprep.subr.mxu0 0.0
        %1225 = vmatpush1.msra.mxu0 0.0
        %1226 = vmatprep.subr.mxu0 0.0
        %1227 = vmatpush1.msra.mxu0 0.0
        %1228 = vmatprep.subr.mxu0 0.0
        %1229 = vmatpush1.msra.mxu0 0.0
        %1230 = vmatprep.subr.mxu0 0.0
        %1231 = vmatpush1.msra.mxu0 0.0
        %1232 = vmatprep.subr.mxu0 0.0
        %1233 = vmatpush1.msra.mxu0 0.0
        %1234 = vmatprep.subr.mxu0 0.0
        %1235 = vmatpush1.msra.mxu0 0.0
        %1236 = vmatprep.subr.mxu0 0.0
        %1237 = vmatpush1.msra.mxu0 0.0
        %1238 = vmatprep.subr.mxu0 0.0
        %1239 = vmatpush1.msra.mxu0 0.0
        %1240 = vmatprep.subr.mxu0 0.0
        %1241 = vmatpush1.msra.mxu0 0.0
        %1242 = vmatprep.subr.mxu0 0.0
        %1243 = vmatpush1.msra.mxu0 0.0
        %1244 = vmatprep.subr.mxu0 0.0
        %1245 = vmatpush1.msra.mxu0 0.0
        %1246 = vmatprep.subr.mxu0 0.0
        %1247 = vmatpush1.msra.mxu0 0.0
        %1248 = vmatprep.subr.mxu0 0.0
        %1249 = vmatpush1.msra.mxu0 0.0
        %1250 = vmatprep.subr.mxu0 0.0
        %1251 = vmatpush1.msra.mxu0 0.0
        %1252 = vmatprep.subr.mxu0 0.0
        %1253 = vmatpush1.msra.mxu0 0.0
        %1254 = vmatprep.subr.mxu0 0.0
        %1255 = vmatpush1.msra.mxu0 0.0
        %1256 = vmatprep.subr.mxu0 0.0
        %1257 = vmatpush1.msra.mxu0 0.0
        %1258 = vmatprep.subr.mxu0 0.0
        %1259 = vmatpush1.msra.mxu0 0.0
        %1260 = vmatprep.subr.mxu0 0.0
        %1261 = vmatpush1.msra.mxu0 0.0
        %1262 = vmatprep.subr.mxu0 0.0
        %1263 = vmatpush1.msra.mxu0 0.0
        %1264 = vmatprep.subr.mxu0 0.0
        %1265 = vmatpush1.msra.mxu0 0.0
        %1266 = vmatprep.subr.mxu0 0.0
        %1267 = vmatpush1.msra.mxu0 0.0
        %1268 = vmatprep.subr.mxu0 0.0
        %1269 = vmatpush1.msra.mxu0 0.0
        %1270 = vmatprep.subr.mxu0 0.0
        %1271 = vmatpush1.msra.mxu0 0.0
        %1272 = vmatprep.subr.mxu0 0.0
        %1273 = vmatpush1.msra.mxu0 0.0
        %1274 = vmatprep.subr.mxu0 0.0
        %1275 = vmatpush1.msra.mxu0 0.0
        %1276 = vmatprep.subr.mxu0 0.0
        %1277 = vmatpush1.msra.mxu0 0.0
        %1278 = vmatprep.subr.mxu0 0.0
        %1279 = vmatpush1.msra.mxu0 0.0
        %1280 = vmatprep.mubr.f32.mxu0 0.0
        %1281 = vmatmul.mubr.f32.gmra.mrb[0].mxu0 %v1193
        %v1282 = vpop.f32.mrb[0].mxu0
        %v1283 = vadd.f32 %v790, %v1282
        %v1284 = vpop.f32.mrb[0].mxu0
        %1285 = vmatprep.mubr.f32.mxu0 0.0
        %1286 = vmatmul.mubr.f32.gmra.mrb[0].mxu0 %v1196
        %v1287 = vpop.f32.mrb[0].mxu0
        %v1288 = vadd.f32 %v790, %v1287
        %v1289 = vpop.f32.mrb[0].mxu0
        %1290 = vmatprep.mubr.f32.mxu0 0.0
        %1291 = vmatmul.mubr.f32.gmra.mrb[0].mxu0 %v1199
        %v1292 = vpop.f32.mrb[0].mxu0
        %v1293 = vadd.f32 %v790, %v1292
        %v1294 = vpop.f32.mrb[0].mxu0
        %1295 = vmatprep.mubr.f32.mxu0 0.0
        %1296 = vmatmul.mubr.f32.gmra.mrb[0].mxu0 %v1202
        %v1297 = vpop.f32.mrb[0].mxu0
        %v1298 = vadd.f32 %v790, %v1297
        %v1299 = vpop.f32.mrb[0].mxu0
        %1300 = vmatprep.mubr.f32.mxu0 0.0
        %1301 = vmatmul.mubr.f32.gmra.mrb[0].mxu0 %v1205
        %v1302 = vpop.f32.mrb[0].mxu0
        %v1303 = vadd.f32 %v790, %v1302
        %v1304 = vpop.f32.mrb[0].mxu0
        %1305 = vmatprep.mubr.f32.mxu0 0.0
        %1306 = vmatmul.mubr.f32.gmra.mrb[0].mxu0 %v1208
        %v1307 = vpop.f32.mrb[0].mxu0
        %v1308 = vadd.f32 %v790, %v1307
        %v1309 = vpop.f32.mrb[0].mxu0
        %1310 = vmatprep.mubr.f32.mxu0 0.0
        %1311 = vmatmul.mubr.f32.gmra.mrb[0].mxu0 %v1211
        %v1312 = vpop.f32.mrb[0].mxu0
        %v1313 = vadd.f32 %v790, %v1312
        %v1314 = vpop.f32.mrb[0].mxu0
        %1315 = vmatprep.mubr.f32.mxu0 0.0
        %1316 = vmatmul.mubr.f32.gmra.mrb[0].mxu0 %v1214
        %v1317 = vpop.f32.mrb[0].mxu0
        %v1318 = vadd.f32 %v790, %v1317
        %v1319 = vpop.f32.mrb[0].mxu0
        %1320 = vdwg.mxu0
        %v1321 = vmax.f32 %v1283, 0.0
        %v1322 = vmax.f32 %v1288, 0.0
        %v1323 = vmax.f32 %v1293, 0.0
        %v1324 = vmax.f32 %v1298, 0.0
        %v1325 = vmax.f32 %v1303, 0.0
        %v1326 = vmax.f32 %v1308, 0.0
        %v1327 = vmax.f32 %v1313, 0.0
        %v1328 = vmax.f32 %v1318, 0.0
        %v1330 = vsel %vm792, %v1321, 0
        %v1333 = vsel %vm792, %v1322, 0
        %v1336 = vsel %vm792, %v1323, 0
        %v1339 = vsel %vm792, %v1324, 0
        %v1342 = vsel %vm792, %v1325, 0
        %v1345 = vsel %vm792, %v1326, 0
        %v1348 = vsel %vm792, %v1327, 0
        %v1351 = vsel %vm792, %v1328, 0
        %1353 = vmatprep.subr.mxu0 0.0
        %1354 = vmatpush1.msra.mxu0 %v776
        %1355 = vmatprep.subr.mxu0 0.0
        %1356 = vmatpush1.msra.mxu0 %v777
        %1357 = vmatprep.subr.mxu0 0.0
        %1358 = vmatpush1.msra.mxu0 %v778
        %1359 = vmatprep.subr.mxu0 0.0
        %1360 = vmatpush1.msra.mxu0 %v779
        %1361 = vmatprep.subr.mxu0 0.0
        %1362 = vmatpush1.msra.mxu0 0.0
        %1363 = vmatprep.subr.mxu0 0.0
        %1364 = vmatpush1.msra.mxu0 0.0
        %1365 = vmatprep.subr.mxu0 0.0
        %1366 = vmatpush1.msra.mxu0 0.0
        %1367 = vmatprep.subr.mxu0 0.0
        %1368 = vmatpush1.msra.mxu0 0.0
        %1369 = vmatprep.subr.mxu0 0.0
        %1370 = vmatpush1.msra.mxu0 0.0
        %1371 = vmatprep.subr.mxu0 0.0
        %1372 = vmatpush1.msra.mxu0 0.0
        %1373 = vmatprep.subr.mxu0 0.0
        %1374 = vmatpush1.msra.mxu0 0.0
        %1375 = vmatprep.subr.mxu0 0.0
        %1376 = vmatpush1.msra.mxu0 0.0
        %1377 = vmatprep.subr.mxu0 0.0
        %1378 = vmatpush1.msra.mxu0 0.0
        %1379 = vmatprep.subr.mxu0 0.0
        %1380 = vmatpush1.msra.mxu0 0.0
        %1381 = vmatprep.subr.mxu0 0.0
        %1382 = vmatpush1.msra.mxu0 0.0
        %1383 = vmatprep.subr.mxu0 0.0
        %1384 = vmatpush1.msra.mxu0 0.0
        %1385 = vmatprep.subr.mxu0 0.0
        %1386 = vmatpush1.msra.mxu0 0.0
        %1387 = vmatprep.subr.mxu0 0.0
        %1388 = vmatpush1.msra.mxu0 0.0
        %1389 = vmatprep.subr.mxu0 0.0
        %1390 = vmatpush1.msra.mxu0 0.0
        %1391 = vmatprep.subr.mxu0 0.0
        %1392 = vmatpush1.msra.mxu0 0.0
        %1393 = vmatprep.subr.mxu0 0.0
        %1394 = vmatpush1.msra.mxu0 0.0
        %1395 = vmatprep.subr.mxu0 0.0
        %1396 = vmatpush1.msra.mxu0 0.0
        %1397 = vmatprep.subr.mxu0 0.0
        %1398 = vmatpush1.msra.mxu0 0.0
        %1399 = vmatprep.subr.mxu0 0.0
        %1400 = vmatpush1.msra.mxu0 0.0
        %1401 = vmatprep.subr.mxu0 0.0
        %1402 = vmatpush1.msra.mxu0 0.0
        %1403 = vmatprep.subr.mxu0 0.0
        %1404 = vmatpush1.msra.mxu0 0.0
        %1405 = vmatprep.subr.mxu0 0.0
        %1406 = vmatpush1.msra.mxu0 0.0
        %1407 = vmatprep.subr.mxu0 0.0
        %1408 = vmatpush1.msra.mxu0 0.0
        %1409 = vmatprep.subr.mxu0 0.0
        %1410 = vmatpush1.msra.mxu0 0.0
        %1411 = vmatprep.subr.mxu0 0.0
        %1412 = vmatpush1.msra.mxu0 0.0
        %1413 = vmatprep.subr.mxu0 0.0
        %1414 = vmatpush1.msra.mxu0 0.0
        %1415 = vmatprep.subr.mxu0 0.0
        %1416 = vmatpush1.msra.mxu0 0.0
        %1417 = vmatprep.mubr.f32.mxu0 0.0
        %1418 = vmatmul.mubr.f32.gmra.mrb[0].mxu0 %v1330
        %v1419 = vpop.f32.mrb[0].mxu0
        %v1420 = vadd.f32 %v934, %v1419
        %v1421 = vpop.f32.mrb[0].mxu0
        %1422 = vmatprep.mubr.f32.mxu0 0.0
        %1423 = vmatmul.mubr.f32.gmra.mrb[0].mxu0 %v1333
        %v1424 = vpop.f32.mrb[0].mxu0
        %v1425 = vadd.f32 %v934, %v1424
        %v1426 = vpop.f32.mrb[0].mxu0
        %1427 = vmatprep.mubr.f32.mxu0 0.0
        %1428 = vmatmul.mubr.f32.gmra.mrb[0].mxu0 %v1336
        %v1429 = vpop.f32.mrb[0].mxu0
        %v1430 = vadd.f32 %v934, %v1429
        %v1431 = vpop.f32.mrb[0].mxu0
        %1432 = vmatprep.mubr.f32.mxu0 0.0
        %1433 = vmatmul.mubr.f32.gmra.mrb[0].mxu0 %v1339
        %v1434 = vpop.f32.mrb[0].mxu0
        %v1435 = vadd.f32 %v934, %v1434
        %v1436 = vpop.f32.mrb[0].mxu0
        %1437 = vmatprep.mubr.f32.mxu0 0.0
        %1438 = vmatmul.mubr.f32.gmra.mrb[0].mxu0 %v1342
        %v1439 = vpop.f32.mrb[0].mxu0
        %v1440 = vadd.f32 %v934, %v1439
        %v1441 = vpop.f32.mrb[0].mxu0
        %1442 = vmatprep.mubr.f32.mxu0 0.0
        %1443 = vmatmul.mubr.f32.gmra.mrb[0].mxu0 %v1345
        %v1444 = vpop.f32.mrb[0].mxu0
        %v1445 = vadd.f32 %v934, %v1444
        %v1446 = vpop.f32.mrb[0].mxu0
        %1447 = vmatprep.mubr.f32.mxu0 0.0
        %1448 = vmatmul.mubr.f32.gmra.mrb[0].mxu0 %v1348
        %v1449 = vpop.f32.mrb[0].mxu0
        %v1450 = vadd.f32 %v934, %v1449
        %v1451 = vpop.f32.mrb[0].mxu0
        %1452 = vmatprep.mubr.f32.mxu0 0.0
        %1453 = vmatmul.mubr.f32.gmra.mrb[0].mxu0 %v1351
        %v1454 = vpop.f32.mrb[0].mxu0
        %v1455 = vadd.f32 %v934, %v1454
        %v1456 = vpop.f32.mrb[0].mxu0
        %1457 = vdwg.mxu0
        %v1458 = vmax.f32 %v1420, 0.0
        %v1459 = vmax.f32 %v1425, 0.0
        %v1460 = vmax.f32 %v1430, 0.0
        %v1461 = vmax.f32 %v1435, 0.0
        %v1462 = vmax.f32 %v1440, 0.0
        %v1463 = vmax.f32 %v1445, 0.0
        %v1464 = vmax.f32 %v1450, 0.0
        %v1465 = vmax.f32 %v1455, 0.0
        %1466 = vmatprep.subr.mxu0 0.0
        %1467 = vmatpush1.msra.mxu0 %v781
        %1468 = vmatprep.subr.mxu0 0.0
        %1469 = vmatpush1.msra.mxu0 %v782
        %1470 = vmatprep.subr.mxu0 0.0
        %1471 = vmatpush1.msra.mxu0 %v783
        %1472 = vmatprep.subr.mxu0 0.0
        %1473 = vmatpush1.msra.mxu0 %v784
        %1474 = vmatprep.subr.mxu0 0.0
        %1475 = vmatpush1.msra.mxu0 0.0
        %1476 = vmatprep.subr.mxu0 0.0
        %1477 = vmatpush1.msra.mxu0 0.0
        %1478 = vmatprep.subr.mxu0 0.0
        %1479 = vmatpush1.msra.mxu0 0.0
        %1480 = vmatprep.subr.mxu0 0.0
        %1481 = vmatpush1.msra.mxu0 0.0
        %1482 = vmatprep.subr.mxu0 0.0
        %1483 = vmatpush1.msra.mxu0 0.0
        %1484 = vmatprep.subr.mxu0 0.0
        %1485 = vmatpush1.msra.mxu0 0.0
        %1486 = vmatprep.subr.mxu0 0.0
        %1487 = vmatpush1.msra.mxu0 0.0
        %1488 = vmatprep.subr.mxu0 0.0
        %1489 = vmatpush1.msra.mxu0 0.0
        %1490 = vmatprep.subr.mxu0 0.0
        %1491 = vmatpush1.msra.mxu0 0.0
        %1492 = vmatprep.subr.mxu0 0.0
        %1493 = vmatpush1.msra.mxu0 0.0
        %1494 = vmatprep.subr.mxu0 0.0
        %1495 = vmatpush1.msra.mxu0 0.0
        %1496 = vmatprep.subr.mxu0 0.0
        %1497 = vmatpush1.msra.mxu0 0.0
        %1498 = vmatprep.subr.mxu0 0.0
        %1499 = vmatpush1.msra.mxu0 0.0
        %1500 = vmatprep.subr.mxu0 0.0
        %1501 = vmatpush1.msra.mxu0 0.0
        %1502 = vmatprep.subr.mxu0 0.0
        %1503 = vmatpush1.msra.mxu0 0.0
        %1504 = vmatprep.subr.mxu0 0.0
        %1505 = vmatpush1.msra.mxu0 0.0
        %1506 = vmatprep.subr.mxu0 0.0
        %1507 = vmatpush1.msra.mxu0 0.0
        %1508 = vmatprep.subr.mxu0 0.0
        %1509 = vmatpush1.msra.mxu0 0.0
        %1510 = vmatprep.subr.mxu0 0.0
        %1511 = vmatpush1.msra.mxu0 0.0
        %1512 = vmatprep.subr.mxu0 0.0
        %1513 = vmatpush1.msra.mxu0 0.0
        %1514 = vmatprep.subr.mxu0 0.0
        %1515 = vmatpush1.msra.mxu0 0.0
        %1516 = vmatprep.subr.mxu0 0.0
        %1517 = vmatpush1.msra.mxu0 0.0
        %1518 = vmatprep.subr.mxu0 0.0
        %1519 = vmatpush1.msra.mxu0 0.0
        %1520 = vmatprep.subr.mxu0 0.0
        %1521 = vmatpush1.msra.mxu0 0.0
        %1522 = vmatprep.subr.mxu0 0.0
        %1523 = vmatpush1.msra.mxu0 0.0
        %1524 = vmatprep.subr.mxu0 0.0
        %1525 = vmatpush1.msra.mxu0 0.0
        %1526 = vmatprep.subr.mxu0 0.0
        %1527 = vmatpush1.msra.mxu0 0.0
        %1528 = vmatprep.subr.mxu0 0.0
        %1529 = vmatpush1.msra.mxu0 0.0
        %1530 = vmatprep.mubr.f32.mxu0 0.0
        %1531 = vmatmul.mubr.f32.gmra.mrb[0].mxu0 %v1330
        %v1532 = vpop.f32.mrb[0].mxu0
        %v1533 = vadd.f32 %v1077, %v1532
        %v1534 = vpop.f32.mrb[0].mxu0
        %1535 = vmatprep.mubr.f32.mxu0 0.0
        %1536 = vmatmul.mubr.f32.gmra.mrb[0].mxu0 %v1333
        %v1537 = vpop.f32.mrb[0].mxu0
        %v1538 = vadd.f32 %v1077, %v1537
        %v1539 = vpop.f32.mrb[0].mxu0
        %1540 = vmatprep.mubr.f32.mxu0 0.0
        %1541 = vmatmul.mubr.f32.gmra.mrb[0].mxu0 %v1336
        %v1542 = vpop.f32.mrb[0].mxu0
        %v1543 = vadd.f32 %v1077, %v1542
        %v1544 = vpop.f32.mrb[0].mxu0
        %1545 = vmatprep.mubr.f32.mxu0 0.0
        %1546 = vmatmul.mubr.f32.gmra.mrb[0].mxu0 %v1339
        %v1547 = vpop.f32.mrb[0].mxu0
        %v1548 = vadd.f32 %v1077, %v1547
        %v1549 = vpop.f32.mrb[0].mxu0
        %1550 = vmatprep.mubr.f32.mxu0 0.0
        %1551 = vmatmul.mubr.f32.gmra.mrb[0].mxu0 %v1342
        %v1552 = vpop.f32.mrb[0].mxu0
        %v1553 = vadd.f32 %v1077, %v1552
        %v1554 = vpop.f32.mrb[0].mxu0
        %1555 = vmatprep.mubr.f32.mxu0 0.0
        %1556 = vmatmul.mubr.f32.gmra.mrb[0].mxu0 %v1345
        %v1557 = vpop.f32.mrb[0].mxu0
        %v1558 = vadd.f32 %v1077, %v1557
        %v1559 = vpop.f32.mrb[0].mxu0
        %1560 = vmatprep.mubr.f32.mxu0 0.0
        %1561 = vmatmul.mubr.f32.gmra.mrb[0].mxu0 %v1348
        %v1562 = vpop.f32.mrb[0].mxu0
        %v1563 = vadd.f32 %v1077, %v1562
        %v1564 = vpop.f32.mrb[0].mxu0
        %1565 = vmatprep.mubr.f32.mxu0 0.0
        %1566 = vmatmul.mubr.f32.gmra.mrb[0].mxu0 %v1351
        %v1567 = vpop.f32.mrb[0].mxu0
        %v1568 = vadd.f32 %v1077, %v1567
        %v1569 = vpop.f32.mrb[0].mxu0
        %1570 = vdwg.mxu0
        %v1571 = vmax.f32 %v1533, 0.0
        %v1572 = vmax.f32 %v1538, 0.0
        %v1573 = vmax.f32 %v1543, 0.0
        %v1574 = vmax.f32 %v1548, 0.0
        %v1575 = vmax.f32 %v1553, 0.0
        %v1576 = vmax.f32 %v1558, 0.0
        %v1577 = vmax.f32 %v1563, 0.0
        %v1578 = vmax.f32 %v1568, 0.0
        %v1583 = vrot.slane %v738, 2
        %v1584 = vrot.slane %v739, 2
        %v1585 = vrot.slane %v740, 2
        %v1586 = vrot.slane %v741, 2
        %s1587 = vtos %v1583
        %v1588 = vstv %s1587
        %s1590 = vtos %v1584
        %v1591 = vstv %s1590
        %s1593 = vtos %v1585
        %v1594 = vstv %s1593
        %s1596 = vtos %v1586
        %v1597 = vstv %s1596
        %v1599 = vmul.f32 %v1065, %v1588
        %v1600 = vmul.f32 %v1066, %v1588
        %v1601 = vmul.f32 %v1067, %v1591
        %v1602 = vmul.f32 %v1068, %v1591
        %v1603 = vmul.f32 %v1069, %v1594
        %v1604 = vmul.f32 %v1070, %v1594
        %v1605 = vmul.f32 %v1071, %v1597
        %v1606 = vmul.f32 %v1072, %v1597
        %v1607 = vmul.f32 %v1184, %v1588
        %v1608 = vmul.f32 %v1185, %v1588
        %v1609 = vmul.f32 %v1186, %v1591
        %v1610 = vmul.f32 %v1187, %v1591
        %v1611 = vmul.f32 %v1188, %v1594
        %v1612 = vmul.f32 %v1189, %v1594
        %v1613 = vmul.f32 %v1190, %v1597
        %v1614 = vmul.f32 %v1191, %v1597
        %1615 = vset.pattern.permute.xlu0 0
        %1616 = vperm.xlu0 %1615, %v738
        %v1617 = vpop.permute.xlu0 %1616
        %1619 = vset.pattern.permute.xlu0 0
        %1620 = vperm.xlu0 %1619, %v739
        %v1621 = vpop.permute.xlu0 %1620
        %1623 = vset.pattern.permute.xlu0 0
        %1624 = vperm.xlu0 %1623, %v740
        %v1625 = vpop.permute.xlu0 %1624
        %1627 = vset.pattern.permute.xlu0 0
        %1628 = vperm.xlu0 %1627, %v741
        %v1629 = vpop.permute.xlu0 %1628
        %v1631 = vmul.f32 %v1458, %v1617
        %v1632 = vmul.f32 %v1460, %v1621
        %v1633 = vmul.f32 %v1462, %v1625
        %v1634 = vmul.f32 %v1464, %v1629
        %v1635 = vmul.f32 %v1459, %v1617
        %v1636 = vmul.f32 %v1461, %v1621
        %v1637 = vmul.f32 %v1463, %v1625
        %v1638 = vmul.f32 %v1465, %v1629
        %v1639 = vmul.f32 %v1571, %v1617
        %v1640 = vmul.f32 %v1573, %v1621
        %v1641 = vmul.f32 %v1575, %v1625
        %v1642 = vmul.f32 %v1577, %v1629
        %v1643 = vmul.f32 %v1572, %v1617
        %v1644 = vmul.f32 %v1574, %v1621
        %v1645 = vmul.f32 %v1576, %v1625
        %v1646 = vmul.f32 %v1578, %v1629
        %v1647 = vld [vmem:[%s4] sm:$0xff]
        %v1648 = vld [vmem:[%s4 + $0x8] sm:$0xff]
        %v1649 = vld [vmem:[%s4 + $0x10] sm:$0xff]
        %v1650 = vld [vmem:[%s4 + $0x18] sm:$0xff]
        %v1651 = vld [vmem:[%s4 + $0x20] sm:$0xff]
        %v1652 = vld [vmem:[%s4 + $0x28] sm:$0xff]
        %v1653 = vld [vmem:[%s4 + $0x30] sm:$0xff]
        %v1654 = vld [vmem:[%s4 + $0x38] sm:$0xff]
        %v1655 = vld [vmem:[%s4 + $0x40] sm:$0xff]
        %v1656 = vld [vmem:[%s4 + $0x48] sm:$0xff]
        %v1657 = vld [vmem:[%s4 + $0x50] sm:$0xff]
        %v1658 = vld [vmem:[%s4 + $0x58] sm:$0xff]
        %v1659 = vld [vmem:[%s4 + $0x60] sm:$0xff]
        %v1660 = vld [vmem:[%s4 + $0x68] sm:$0xff]
        %v1661 = vld [vmem:[%s4 + $0x70] sm:$0xff]
        %v1662 = vld [vmem:[%s4 + $0x78] sm:$0xff]
        %vm1663 = vcmp.gt.f32.partialorder %v1647, 0.5
        %vm1664 = vcmp.gt.f32.partialorder %v1648, 0.5
        %vm1665 = vcmp.gt.f32.partialorder %v1649, 0.5
        %vm1666 = vcmp.gt.f32.partialorder %v1650, 0.5
        %vm1667 = vcmp.gt.f32.partialorder %v1651, 0.5
        %vm1668 = vcmp.gt.f32.partialorder %v1652, 0.5
        %vm1669 = vcmp.gt.f32.partialorder %v1653, 0.5
        %vm1670 = vcmp.gt.f32.partialorder %v1654, 0.5
        %vm1671 = vcmp.gt.f32.partialorder %v1655, 0.5
        %vm1672 = vcmp.gt.f32.partialorder %v1656, 0.5
        %vm1673 = vcmp.gt.f32.partialorder %v1657, 0.5
        %vm1674 = vcmp.gt.f32.partialorder %v1658, 0.5
        %vm1675 = vcmp.gt.f32.partialorder %v1659, 0.5
        %vm1676 = vcmp.gt.f32.partialorder %v1660, 0.5
        %vm1677 = vcmp.gt.f32.partialorder %v1661, 0.5
        %vm1678 = vcmp.gt.f32.partialorder %v1662, 0.5
        %v1679 = vld [vmem:[%s5] sm:$0xff]
        %v1680 = vld [vmem:[%s5 + $0x8] sm:$0xff]
        %v1681 = vld [vmem:[%s5 + $0x10] sm:$0xff]
        %v1682 = vld [vmem:[%s5 + $0x18] sm:$0xff]
        %v1683 = vld [vmem:[%s5 + $0x20] sm:$0xff]
        %v1684 = vld [vmem:[%s5 + $0x28] sm:$0xff]
        %v1685 = vld [vmem:[%s5 + $0x30] sm:$0xff]
        %v1686 = vld [vmem:[%s5 + $0x38] sm:$0xff]
        %v1687 = vld [vmem:[%s5 + $0x40] sm:$0xff]
        %v1688 = vld [vmem:[%s5 + $0x48] sm:$0xff]
        %v1689 = vld [vmem:[%s5 + $0x50] sm:$0xff]
        %v1690 = vld [vmem:[%s5 + $0x58] sm:$0xff]
        %v1691 = vld [vmem:[%s5 + $0x60] sm:$0xff]
        %v1692 = vld [vmem:[%s5 + $0x68] sm:$0xff]
        %v1693 = vld [vmem:[%s5 + $0x70] sm:$0xff]
        %v1694 = vld [vmem:[%s5 + $0x78] sm:$0xff]
        %vm1695 = vcmp.gt.f32.partialorder %v1679, 0.5
        %vm1696 = vcmp.gt.f32.partialorder %v1680, 0.5
        %vm1697 = vcmp.gt.f32.partialorder %v1681, 0.5
        %vm1698 = vcmp.gt.f32.partialorder %v1682, 0.5
        %vm1699 = vcmp.gt.f32.partialorder %v1683, 0.5
        %vm1700 = vcmp.gt.f32.partialorder %v1684, 0.5
        %vm1701 = vcmp.gt.f32.partialorder %v1685, 0.5
        %vm1702 = vcmp.gt.f32.partialorder %v1686, 0.5
        %vm1703 = vcmp.gt.f32.partialorder %v1687, 0.5
        %vm1704 = vcmp.gt.f32.partialorder %v1688, 0.5
        %vm1705 = vcmp.gt.f32.partialorder %v1689, 0.5
        %vm1706 = vcmp.gt.f32.partialorder %v1690, 0.5
        %vm1707 = vcmp.gt.f32.partialorder %v1691, 0.5
        %vm1708 = vcmp.gt.f32.partialorder %v1692, 0.5
        %vm1709 = vcmp.gt.f32.partialorder %v1693, 0.5
        %vm1710 = vcmp.gt.f32.partialorder %v1694, 0.5
        %v1715 = vcombine.high %v1635, %v1635
        %v1717 = vunpack.c.l.s4 1966171168
        %v1718 = vunpack.c.0.s8 %v1717
        %v1719 = vlaneseq
        %v1720 = vshrl.u32 %v1719, 7
        %v1721 = vsub.s32 %v1718, %v1720
        %v1722 = vrot.slane %v1635, %v1721
        %v1724 = vunpack.c.l.s4 1966171168
        %v1725 = vunpack.c.0.s8 %v1724
        %v1726 = vlaneseq
        %v1727 = vshrl.u32 %v1726, 7
        %v1728 = vsub.s32 %v1725, %v1727
        %v1729 = vrot.slane %v1715, %v1728
        %v1730 = vcombine.high %v1722, %v1722
        %v1731 = vcombine.high %v1729, %v1729
        %v1733 = vunpack.c.l.s4 1966171168
        %v1734 = vunpack.c.0.s8 %v1733
        %v1735 = vlaneseq
        %v1736 = vshrl.u32 %v1735, 7
        %v1737 = vsub.s32 %v1734, %v1736
        %v1738 = vrot.slane %v1722, %v1737
        %v1740 = vunpack.c.l.s4 1966171168
        %v1741 = vunpack.c.0.s8 %v1740
        %v1742 = vlaneseq
        %v1743 = vshrl.u32 %v1742, 7
        %v1744 = vsub.s32 %v1741, %v1743
        %v1745 = vrot.slane %v1729, %v1744
        %v1747 = vunpack.c.l.s4 1966171168
        %v1748 = vunpack.c.0.s8 %v1747
        %v1749 = vlaneseq
        %v1750 = vshrl.u32 %v1749, 7
        %v1751 = vsub.s32 %v1748, %v1750
        %v1752 = vrot.slane %v1730, %v1751
        %v1754 = vunpack.c.l.s4 1966171168
        %v1755 = vunpack.c.0.s8 %v1754
        %v1756 = vlaneseq
        %v1757 = vshrl.u32 %v1756, 7
        %v1758 = vsub.s32 %v1755, %v1757
        %v1759 = vrot.slane %v1731, %v1758
        %v1760 = vcombine.high %v1738, %v1738
        %v1761 = vcombine.high %v1745, %v1745
        %v1762 = vcombine.high %v1752, %v1752
        %v1763 = vcombine.high %v1759, %v1759
        %v1764 = vcombine.high %v1636, %v1636
        %v1766 = vunpack.c.l.s4 1966171168
        %v1767 = vunpack.c.0.s8 %v1766
        %v1768 = vlaneseq
        %v1769 = vshrl.u32 %v1768, 7
        %v1770 = vsub.s32 %v1767, %v1769
        %v1771 = vrot.slane %v1636, %v1770
        %v1773 = vunpack.c.l.s4 1966171168
        %v1774 = vunpack.c.0.s8 %v1773
        %v1775 = vlaneseq
        %v1776 = vshrl.u32 %v1775, 7
        %v1777 = vsub.s32 %v1774, %v1776
        %v1778 = vrot.slane %v1764, %v1777
        %v1779 = vcombine.high %v1771, %v1771
        %v1780 = vcombine.high %v1778, %v1778
        %v1782 = vunpack.c.l.s4 1966171168
        %v1783 = vunpack.c.0.s8 %v1782
        %v1784 = vlaneseq
        %v1785 = vshrl.u32 %v1784, 7
        %v1786 = vsub.s32 %v1783, %v1785
        %v1787 = vrot.slane %v1771, %v1786
        %v1789 = vunpack.c.l.s4 1966171168
        %v1790 = vunpack.c.0.s8 %v1789
        %v1791 = vlaneseq
        %v1792 = vshrl.u32 %v1791, 7
        %v1793 = vsub.s32 %v1790, %v1792
        %v1794 = vrot.slane %v1778, %v1793
        %v1796 = vunpack.c.l.s4 1966171168
        %v1797 = vunpack.c.0.s8 %v1796
        %v1798 = vlaneseq
        %v1799 = vshrl.u32 %v1798, 7
        %v1800 = vsub.s32 %v1797, %v1799
        %v1801 = vrot.slane %v1779, %v1800
        %v1803 = vunpack.c.l.s4 1966171168
        %v1804 = vunpack.c.0.s8 %v1803
        %v1805 = vlaneseq
        %v1806 = vshrl.u32 %v1805, 7
        %v1807 = vsub.s32 %v1804, %v1806
        %v1808 = vrot.slane %v1780, %v1807
        %v1809 = vcombine.high %v1787, %v1787
        %v1810 = vcombine.high %v1794, %v1794
        %v1811 = vcombine.high %v1801, %v1801
        %v1812 = vcombine.high %v1808, %v1808
        %v1813 = vcombine.high %v1637, %v1637
        %v1815 = vunpack.c.l.s4 1966171168
        %v1816 = vunpack.c.0.s8 %v1815
        %v1817 = vlaneseq
        %v1818 = vshrl.u32 %v1817, 7
        %v1819 = vsub.s32 %v1816, %v1818
        %v1820 = vrot.slane %v1637, %v1819
        %v1822 = vunpack.c.l.s4 1966171168
        %v1823 = vunpack.c.0.s8 %v1822
        %v1824 = vlaneseq
        %v1825 = vshrl.u32 %v1824, 7
        %v1826 = vsub.s32 %v1823, %v1825
        %v1827 = vrot.slane %v1813, %v1826
        %v1828 = vcombine.high %v1820, %v1820
        %v1829 = vcombine.high %v1827, %v1827
        %v1831 = vunpack.c.l.s4 1966171168
        %v1832 = vunpack.c.0.s8 %v1831
        %v1833 = vlaneseq
        %v1834 = vshrl.u32 %v1833, 7
        %v1835 = vsub.s32 %v1832, %v1834
        %v1836 = vrot.slane %v1820, %v1835
        %v1838 = vunpack.c.l.s4 1966171168
        %v1839 = vunpack.c.0.s8 %v1838
        %v1840 = vlaneseq
        %v1841 = vshrl.u32 %v1840, 7
        %v1842 = vsub.s32 %v1839, %v1841
        %v1843 = vrot.slane %v1827, %v1842
        %v1845 = vunpack.c.l.s4 1966171168
        %v1846 = vunpack.c.0.s8 %v1845
        %v1847 = vlaneseq
        %v1848 = vshrl.u32 %v1847, 7
        %v1849 = vsub.s32 %v1846, %v1848
        %v1850 = vrot.slane %v1828, %v1849
        %v1852 = vunpack.c.l.s4 1966171168
        %v1853 = vunpack.c.0.s8 %v1852
        %v1854 = vlaneseq
        %v1855 = vshrl.u32 %v1854, 7
        %v1856 = vsub.s32 %v1853, %v1855
        %v1857 = vrot.slane %v1829, %v1856
        %v1858 = vcombine.high %v1836, %v1836
        %v1859 = vcombine.high %v1843, %v1843
        %v1860 = vcombine.high %v1850, %v1850
        %v1861 = vcombine.high %v1857, %v1857
        %v1862 = vcombine.high %v1638, %v1638
        %v1864 = vunpack.c.l.s4 1966171168
        %v1865 = vunpack.c.0.s8 %v1864
        %v1866 = vlaneseq
        %v1867 = vshrl.u32 %v1866, 7
        %v1868 = vsub.s32 %v1865, %v1867
        %v1869 = vrot.slane %v1638, %v1868
        %v1871 = vunpack.c.l.s4 1966171168
        %v1872 = vunpack.c.0.s8 %v1871
        %v1873 = vlaneseq
        %v1874 = vshrl.u32 %v1873, 7
        %v1875 = vsub.s32 %v1872, %v1874
        %v1876 = vrot.slane %v1862, %v1875
        %v1877 = vcombine.high %v1869, %v1869
        %v1878 = vcombine.high %v1876, %v1876
        %v1880 = vunpack.c.l.s4 1966171168
        %v1881 = vunpack.c.0.s8 %v1880
        %v1882 = vlaneseq
        %v1883 = vshrl.u32 %v1882, 7
        %v1884 = vsub.s32 %v1881, %v1883
        %v1885 = vrot.slane %v1869, %v1884
        %v1887 = vunpack.c.l.s4 1966171168
        %v1888 = vunpack.c.0.s8 %v1887
        %v1889 = vlaneseq
        %v1890 = vshrl.u32 %v1889, 7
        %v1891 = vsub.s32 %v1888, %v1890
        %v1892 = vrot.slane %v1876, %v1891
        %v1894 = vunpack.c.l.s4 1966171168
        %v1895 = vunpack.c.0.s8 %v1894
        %v1896 = vlaneseq
        %v1897 = vshrl.u32 %v1896, 7
        %v1898 = vsub.s32 %v1895, %v1897
        %v1899 = vrot.slane %v1877, %v1898
        %v1901 = vunpack.c.l.s4 1966171168
        %v1902 = vunpack.c.0.s8 %v1901
        %v1903 = vlaneseq
        %v1904 = vshrl.u32 %v1903, 7
        %v1905 = vsub.s32 %v1902, %v1904
        %v1906 = vrot.slane %v1878, %v1905
        %v1907 = vcombine.high %v1885, %v1885
        %v1908 = vcombine.high %v1892, %v1892
        %v1909 = vcombine.high %v1899, %v1899
        %v1910 = vcombine.high %v1906, %v1906
        %v1915 = vcombine.high %v1631, %v1631
        %v1917 = vunpack.c.l.s4 1966171168
        %v1918 = vunpack.c.0.s8 %v1917
        %v1919 = vlaneseq
        %v1920 = vshrl.u32 %v1919, 7
        %v1921 = vsub.s32 %v1918, %v1920
        %v1922 = vrot.slane %v1631, %v1921
        %v1924 = vunpack.c.l.s4 1966171168
        %v1925 = vunpack.c.0.s8 %v1924
        %v1926 = vlaneseq
        %v1927 = vshrl.u32 %v1926, 7
        %v1928 = vsub.s32 %v1925, %v1927
        %v1929 = vrot.slane %v1915, %v1928
        %v1930 = vcombine.high %v1922, %v1922
        %v1931 = vcombine.high %v1929, %v1929
        %v1933 = vunpack.c.l.s4 1966171168
        %v1934 = vunpack.c.0.s8 %v1933
        %v1935 = vlaneseq
        %v1936 = vshrl.u32 %v1935, 7
        %v1937 = vsub.s32 %v1934, %v1936
        %v1938 = vrot.slane %v1922, %v1937
        %v1940 = vunpack.c.l.s4 1966171168
        %v1941 = vunpack.c.0.s8 %v1940
        %v1942 = vlaneseq
        %v1943 = vshrl.u32 %v1942, 7
        %v1944 = vsub.s32 %v1941, %v1943
        %v1945 = vrot.slane %v1929, %v1944
        %v1947 = vunpack.c.l.s4 1966171168
        %v1948 = vunpack.c.0.s8 %v1947
        %v1949 = vlaneseq
        %v1950 = vshrl.u32 %v1949, 7
        %v1951 = vsub.s32 %v1948, %v1950
        %v1952 = vrot.slane %v1930, %v1951
        %v1954 = vunpack.c.l.s4 1966171168
        %v1955 = vunpack.c.0.s8 %v1954
        %v1956 = vlaneseq
        %v1957 = vshrl.u32 %v1956, 7
        %v1958 = vsub.s32 %v1955, %v1957
        %v1959 = vrot.slane %v1931, %v1958
        %v1960 = vcombine.high %v1938, %v1938
        %v1961 = vcombine.high %v1945, %v1945
        %v1962 = vcombine.high %v1952, %v1952
        %v1963 = vcombine.high %v1959, %v1959
        %v1964 = vcombine.high %v1632, %v1632
        %v1966 = vunpack.c.l.s4 1966171168
        %v1967 = vunpack.c.0.s8 %v1966
        %v1968 = vlaneseq
        %v1969 = vshrl.u32 %v1968, 7
        %v1970 = vsub.s32 %v1967, %v1969
        %v1971 = vrot.slane %v1632, %v1970
        %v1973 = vunpack.c.l.s4 1966171168
        %v1974 = vunpack.c.0.s8 %v1973
        %v1975 = vlaneseq
        %v1976 = vshrl.u32 %v1975, 7
        %v1977 = vsub.s32 %v1974, %v1976
        %v1978 = vrot.slane %v1964, %v1977
        %v1979 = vcombine.high %v1971, %v1971
        %v1980 = vcombine.high %v1978, %v1978
        %v1982 = vunpack.c.l.s4 1966171168
        %v1983 = vunpack.c.0.s8 %v1982
        %v1984 = vlaneseq
        %v1985 = vshrl.u32 %v1984, 7
        %v1986 = vsub.s32 %v1983, %v1985
        %v1987 = vrot.slane %v1971, %v1986
        %v1989 = vunpack.c.l.s4 1966171168
        %v1990 = vunpack.c.0.s8 %v1989
        %v1991 = vlaneseq
        %v1992 = vshrl.u32 %v1991, 7
        %v1993 = vsub.s32 %v1990, %v1992
        %v1994 = vrot.slane %v1978, %v1993
        %v1996 = vunpack.c.l.s4 1966171168
        %v1997 = vunpack.c.0.s8 %v1996
        %v1998 = vlaneseq
        %v1999 = vshrl.u32 %v1998, 7
        %v2000 = vsub.s32 %v1997, %v1999
        %v2001 = vrot.slane %v1979, %v2000
        %v2003 = vunpack.c.l.s4 1966171168
        %v2004 = vunpack.c.0.s8 %v2003
        %v2005 = vlaneseq
        %v2006 = vshrl.u32 %v2005, 7
        %v2007 = vsub.s32 %v2004, %v2006
        %v2008 = vrot.slane %v1980, %v2007
        %v2009 = vcombine.high %v1987, %v1987
        %v2010 = vcombine.high %v1994, %v1994
        %v2011 = vcombine.high %v2001, %v2001
        %v2012 = vcombine.high %v2008, %v2008
        %v2013 = vcombine.high %v1633, %v1633
        %v2015 = vunpack.c.l.s4 1966171168
        %v2016 = vunpack.c.0.s8 %v2015
        %v2017 = vlaneseq
        %v2018 = vshrl.u32 %v2017, 7
        %v2019 = vsub.s32 %v2016, %v2018
        %v2020 = vrot.slane %v1633, %v2019
        %v2022 = vunpack.c.l.s4 1966171168
        %v2023 = vunpack.c.0.s8 %v2022
        %v2024 = vlaneseq
        %v2025 = vshrl.u32 %v2024, 7
        %v2026 = vsub.s32 %v2023, %v2025
        %v2027 = vrot.slane %v2013, %v2026
        %v2028 = vcombine.high %v2020, %v2020
        %v2029 = vcombine.high %v2027, %v2027
        %v2031 = vunpack.c.l.s4 1966171168
        %v2032 = vunpack.c.0.s8 %v2031
        %v2033 = vlaneseq
        %v2034 = vshrl.u32 %v2033, 7
        %v2035 = vsub.s32 %v2032, %v2034
        %v2036 = vrot.slane %v2020, %v2035
        %v2038 = vunpack.c.l.s4 1966171168
        %v2039 = vunpack.c.0.s8 %v2038
        %v2040 = vlaneseq
        %v2041 = vshrl.u32 %v2040, 7
        %v2042 = vsub.s32 %v2039, %v2041
        %v2043 = vrot.slane %v2027, %v2042
        %v2045 = vunpack.c.l.s4 1966171168
        %v2046 = vunpack.c.0.s8 %v2045
        %v2047 = vlaneseq
        %v2048 = vshrl.u32 %v2047, 7
        %v2049 = vsub.s32 %v2046, %v2048
        %v2050 = vrot.slane %v2028, %v2049
        %v2052 = vunpack.c.l.s4 1966171168
        %v2053 = vunpack.c.0.s8 %v2052
        %v2054 = vlaneseq
        %v2055 = vshrl.u32 %v2054, 7
        %v2056 = vsub.s32 %v2053, %v2055
        %v2057 = vrot.slane %v2029, %v2056
        %v2058 = vcombine.high %v2036, %v2036
        %v2059 = vcombine.high %v2043, %v2043
        %v2060 = vcombine.high %v2050, %v2050
        %v2061 = vcombine.high %v2057, %v2057
        %v2062 = vcombine.high %v1634, %v1634
        %v2064 = vunpack.c.l.s4 1966171168
        %v2065 = vunpack.c.0.s8 %v2064
        %v2066 = vlaneseq
        %v2067 = vshrl.u32 %v2066, 7
        %v2068 = vsub.s32 %v2065, %v2067
        %v2069 = vrot.slane %v1634, %v2068
        %v2071 = vunpack.c.l.s4 1966171168
        %v2072 = vunpack.c.0.s8 %v2071
        %v2073 = vlaneseq
        %v2074 = vshrl.u32 %v2073, 7
        %v2075 = vsub.s32 %v2072, %v2074
        %v2076 = vrot.slane %v2062, %v2075
        %v2077 = vcombine.high %v2069, %v2069
        %v2078 = vcombine.high %v2076, %v2076
        %v2080 = vunpack.c.l.s4 1966171168
        %v2081 = vunpack.c.0.s8 %v2080
        %v2082 = vlaneseq
        %v2083 = vshrl.u32 %v2082, 7
        %v2084 = vsub.s32 %v2081, %v2083
        %v2085 = vrot.slane %v2069, %v2084
        %v2087 = vunpack.c.l.s4 1966171168
        %v2088 = vunpack.c.0.s8 %v2087
        %v2089 = vlaneseq
        %v2090 = vshrl.u32 %v2089, 7
        %v2091 = vsub.s32 %v2088, %v2090
        %v2092 = vrot.slane %v2076, %v2091
        %v2094 = vunpack.c.l.s4 1966171168
        %v2095 = vunpack.c.0.s8 %v2094
        %v2096 = vlaneseq
        %v2097 = vshrl.u32 %v2096, 7
        %v2098 = vsub.s32 %v2095, %v2097
        %v2099 = vrot.slane %v2077, %v2098
        %v2101 = vunpack.c.l.s4 1966171168
        %v2102 = vunpack.c.0.s8 %v2101
        %v2103 = vlaneseq
        %v2104 = vshrl.u32 %v2103, 7
        %v2105 = vsub.s32 %v2102, %v2104
        %v2106 = vrot.slane %v2078, %v2105
        %v2107 = vcombine.high %v2085, %v2085
        %v2108 = vcombine.high %v2092, %v2092
        %v2109 = vcombine.high %v2099, %v2099
        %v2110 = vcombine.high %v2106, %v2106
        %v2111 = vsel %vm1695, 1, 0
        %v2112 = vsel %vm1696, 1, 0
        %v2113 = vsel %vm1697, 1, 0
        %v2114 = vsel %vm1698, 1, 0
        %v2115 = vsel %vm1699, 1, 0
        %v2116 = vsel %vm1700, 1, 0
        %v2117 = vsel %vm1701, 1, 0
        %v2118 = vsel %vm1702, 1, 0
        %v2119 = vsel %vm1703, 1, 0
        %v2120 = vsel %vm1704, 1, 0
        %v2121 = vsel %vm1705, 1, 0
        %v2122 = vsel %vm1706, 1, 0
        %v2123 = vsel %vm1707, 1, 0
        %v2124 = vsel %vm1708, 1, 0
        %v2125 = vsel %vm1709, 1, 0
        %v2126 = vsel %vm1710, 1, 0
        %2127 = vset.pattern.permute.xlu0 0
        %2128 = vperm.xlu0 %2127, %v2111
        %v2129 = vpop.permute.xlu0 %2128
        %2130 = vset.pattern.permute.xlu0 0
        %2131 = vperm.xlu0 %2130, %v2112
        %v2132 = vpop.permute.xlu0 %2131
        %2133 = vset.pattern.permute.xlu0 0
        %2134 = vperm.xlu0 %2133, %v2113
        %v2135 = vpop.permute.xlu0 %2134
        %2136 = vset.pattern.permute.xlu0 0
        %2137 = vperm.xlu0 %2136, %v2114
        %v2138 = vpop.permute.xlu0 %2137
        %2139 = vset.pattern.permute.xlu0 0
        %2140 = vperm.xlu0 %2139, %v2115
        %v2141 = vpop.permute.xlu0 %2140
        %2142 = vset.pattern.permute.xlu0 0
        %2143 = vperm.xlu0 %2142, %v2116
        %v2144 = vpop.permute.xlu0 %2143
        %2145 = vset.pattern.permute.xlu0 0
        %2146 = vperm.xlu0 %2145, %v2117
        %v2147 = vpop.permute.xlu0 %2146
        %2148 = vset.pattern.permute.xlu0 0
        %2149 = vperm.xlu0 %2148, %v2118
        %v2150 = vpop.permute.xlu0 %2149
        %2151 = vset.pattern.permute.xlu0 0
        %2152 = vperm.xlu0 %2151, %v2119
        %v2153 = vpop.permute.xlu0 %2152
        %2154 = vset.pattern.permute.xlu0 0
        %2155 = vperm.xlu0 %2154, %v2120
        %v2156 = vpop.permute.xlu0 %2155
        %2157 = vset.pattern.permute.xlu0 0
        %2158 = vperm.xlu0 %2157, %v2121
        %v2159 = vpop.permute.xlu0 %2158
        %2160 = vset.pattern.permute.xlu0 0
        %2161 = vperm.xlu0 %2160, %v2122
        %v2162 = vpop.permute.xlu0 %2161
        %2163 = vset.pattern.permute.xlu0 0
        %2164 = vperm.xlu0 %2163, %v2123
        %v2165 = vpop.permute.xlu0 %2164
        %2166 = vset.pattern.permute.xlu0 0
        %2167 = vperm.xlu0 %2166, %v2124
        %v2168 = vpop.permute.xlu0 %2167
        %2169 = vset.pattern.permute.xlu0 0
        %2170 = vperm.xlu0 %2169, %v2125
        %v2171 = vpop.permute.xlu0 %2170
        %2172 = vset.pattern.permute.xlu0 0
        %2173 = vperm.xlu0 %2172, %v2126
        %v2174 = vpop.permute.xlu0 %2173
        %vm2175 = vcmp.eq.s32.totalorder %v2129, 1
        %vm2176 = vcmp.eq.s32.totalorder %v2132, 1
        %vm2177 = vcmp.eq.s32.totalorder %v2135, 1
        %vm2178 = vcmp.eq.s32.totalorder %v2138, 1
        %vm2179 = vcmp.eq.s32.totalorder %v2141, 1
        %vm2180 = vcmp.eq.s32.totalorder %v2144, 1
        %vm2181 = vcmp.eq.s32.totalorder %v2147, 1
        %vm2182 = vcmp.eq.s32.totalorder %v2150, 1
        %vm2183 = vcmp.eq.s32.totalorder %v2153, 1
        %vm2184 = vcmp.eq.s32.totalorder %v2156, 1
        %vm2185 = vcmp.eq.s32.totalorder %v2159, 1
        %vm2186 = vcmp.eq.s32.totalorder %v2162, 1
        %vm2187 = vcmp.eq.s32.totalorder %v2165, 1
        %vm2188 = vcmp.eq.s32.totalorder %v2168, 1
        %vm2189 = vcmp.eq.s32.totalorder %v2171, 1
        %vm2190 = vcmp.eq.s32.totalorder %v2174, 1
        %v2191 = vlaneseq
        %v2192 = vshrl.u32 %v2191, 7
        %v2193 = vsub.s32 0, %v2192
        %v2194 = vrot.slane %v1738, %v2193
        %v2195 = vlaneseq
        %v2196 = vshrl.u32 %v2195, 7
        %v2197 = vsub.s32 0, %v2196
        %v2198 = vrot.slane %v1752, %v2197
        %v2199 = vlaneseq
        %v2200 = vshrl.u32 %v2199, 7
        %v2201 = vsub.s32 0, %v2200
        %v2202 = vrot.slane %v1760, %v2201
        %v2203 = vlaneseq
        %v2204 = vshrl.u32 %v2203, 7
        %v2205 = vsub.s32 0, %v2204
        %v2206 = vrot.slane %v1762, %v2205
        %v2207 = vlaneseq
        %v2208 = vshrl.u32 %v2207, 7
        %v2209 = vsub.s32 0, %v2208
        %v2210 = vrot.slane %v1745, %v2209
        %v2211 = vlaneseq
        %v2212 = vshrl.u32 %v2211, 7
        %v2213 = vsub.s32 0, %v2212
        %v2214 = vrot.slane %v1759, %v2213
        %v2215 = vlaneseq
        %v2216 = vshrl.u32 %v2215, 7
        %v2217 = vsub.s32 0, %v2216
        %v2218 = vrot.slane %v1761, %v2217
        %v2219 = vlaneseq
        %v2220 = vshrl.u32 %v2219, 7
        %v2221 = vsub.s32 0, %v2220
        %v2222 = vrot.slane %v1763, %v2221
        %v2223 = vlaneseq
        %v2224 = vshrl.u32 %v2223, 7
        %v2225 = vsub.s32 0, %v2224
        %v2226 = vrot.slane %v1787, %v2225
        %v2227 = vlaneseq
        %v2228 = vshrl.u32 %v2227, 7
        %v2229 = vsub.s32 0, %v2228
        %v2230 = vrot.slane %v1801, %v2229
        %v2231 = vlaneseq
        %v2232 = vshrl.u32 %v2231, 7
        %v2233 = vsub.s32 0, %v2232
        %v2234 = vrot.slane %v1809, %v2233
        %v2235 = vlaneseq
        %v2236 = vshrl.u32 %v2235, 7
        %v2237 = vsub.s32 0, %v2236
        %v2238 = vrot.slane %v1811, %v2237
        %v2239 = vlaneseq
        %v2240 = vshrl.u32 %v2239, 7
        %v2241 = vsub.s32 0, %v2240
        %v2242 = vrot.slane %v1794, %v2241
        %v2243 = vlaneseq
        %v2244 = vshrl.u32 %v2243, 7
        %v2245 = vsub.s32 0, %v2244
        %v2246 = vrot.slane %v1808, %v2245
        %v2247 = vlaneseq
        %v2248 = vshrl.u32 %v2247, 7
        %v2249 = vsub.s32 0, %v2248
        %v2250 = vrot.slane %v1810, %v2249
        %v2251 = vlaneseq
        %v2252 = vshrl.u32 %v2251, 7
        %v2253 = vsub.s32 0, %v2252
        %v2254 = vrot.slane %v1812, %v2253
        %v2255 = vlaneseq
        %v2256 = vshrl.u32 %v2255, 7
        %v2257 = vsub.s32 0, %v2256
        %v2258 = vrot.slane %v1836, %v2257
        %v2259 = vlaneseq
        %v2260 = vshrl.u32 %v2259, 7
        %v2261 = vsub.s32 0, %v2260
        %v2262 = vrot.slane %v1850, %v2261
        %v2263 = vlaneseq
        %v2264 = vshrl.u32 %v2263, 7
        %v2265 = vsub.s32 0, %v2264
        %v2266 = vrot.slane %v1858, %v2265
        %v2267 = vlaneseq
        %v2268 = vshrl.u32 %v2267, 7
        %v2269 = vsub.s32 0, %v2268
        %v2270 = vrot.slane %v1860, %v2269
        %v2271 = vlaneseq
        %v2272 = vshrl.u32 %v2271, 7
        %v2273 = vsub.s32 0, %v2272
        %v2274 = vrot.slane %v1843, %v2273
        %v2275 = vlaneseq
        %v2276 = vshrl.u32 %v2275, 7
        %v2277 = vsub.s32 0, %v2276
        %v2278 = vrot.slane %v1857, %v2277
        %v2279 = vlaneseq
        %v2280 = vshrl.u32 %v2279, 7
        %v2281 = vsub.s32 0, %v2280
        %v2282 = vrot.slane %v1859, %v2281
        %v2283 = vlaneseq
        %v2284 = vshrl.u32 %v2283, 7
        %v2285 = vsub.s32 0, %v2284
        %v2286 = vrot.slane %v1861, %v2285
        %v2287 = vlaneseq
        %v2288 = vshrl.u32 %v2287, 7
        %v2289 = vsub.s32 0, %v2288
        %v2290 = vrot.slane %v1885, %v2289
        %v2291 = vlaneseq
        %v2292 = vshrl.u32 %v2291, 7
        %v2293 = vsub.s32 0, %v2292
        %v2294 = vrot.slane %v1899, %v2293
        %v2295 = vlaneseq
        %v2296 = vshrl.u32 %v2295, 7
        %v2297 = vsub.s32 0, %v2296
        %v2298 = vrot.slane %v1907, %v2297
        %v2299 = vlaneseq
        %v2300 = vshrl.u32 %v2299, 7
        %v2301 = vsub.s32 0, %v2300
        %v2302 = vrot.slane %v1909, %v2301
        %v2303 = vlaneseq
        %v2304 = vshrl.u32 %v2303, 7
        %v2305 = vsub.s32 0, %v2304
        %v2306 = vrot.slane %v1892, %v2305
        %v2307 = vlaneseq
        %v2308 = vshrl.u32 %v2307, 7
        %v2309 = vsub.s32 0, %v2308
        %v2310 = vrot.slane %v1906, %v2309
        %v2311 = vlaneseq
        %v2312 = vshrl.u32 %v2311, 7
        %v2313 = vsub.s32 0, %v2312
        %v2314 = vrot.slane %v1908, %v2313
        %v2315 = vlaneseq
        %v2316 = vshrl.u32 %v2315, 7
        %v2317 = vsub.s32 0, %v2316
        %v2318 = vrot.slane %v1910, %v2317
        %v2351 = vlaneseq
        %v2352 = vshrl.u32 %v2351, 7
        %v2353 = vsub.s32 0, %v2352
        %v2354 = vrot.slane %v1938, %v2353
        %v2355 = vlaneseq
        %v2356 = vshrl.u32 %v2355, 7
        %v2357 = vsub.s32 0, %v2356
        %v2358 = vrot.slane %v1952, %v2357
        %v2359 = vlaneseq
        %v2360 = vshrl.u32 %v2359, 7
        %v2361 = vsub.s32 0, %v2360
        %v2362 = vrot.slane %v1960, %v2361
        %v2363 = vlaneseq
        %v2364 = vshrl.u32 %v2363, 7
        %v2365 = vsub.s32 0, %v2364
        %v2366 = vrot.slane %v1962, %v2365
        %v2367 = vlaneseq
        %v2368 = vshrl.u32 %v2367, 7
        %v2369 = vsub.s32 0, %v2368
        %v2370 = vrot.slane %v1945, %v2369
        %v2371 = vlaneseq
        %v2372 = vshrl.u32 %v2371, 7
        %v2373 = vsub.s32 0, %v2372
        %v2374 = vrot.slane %v1959, %v2373
        %v2375 = vlaneseq
        %v2376 = vshrl.u32 %v2375, 7
        %v2377 = vsub.s32 0, %v2376
        %v2378 = vrot.slane %v1961, %v2377
        %v2379 = vlaneseq
        %v2380 = vshrl.u32 %v2379, 7
        %v2381 = vsub.s32 0, %v2380
        %v2382 = vrot.slane %v1963, %v2381
        %v2383 = vlaneseq
        %v2384 = vshrl.u32 %v2383, 7
        %v2385 = vsub.s32 0, %v2384
        %v2386 = vrot.slane %v1987, %v2385
        %v2387 = vlaneseq
        %v2388 = vshrl.u32 %v2387, 7
        %v2389 = vsub.s32 0, %v2388
        %v2390 = vrot.slane %v2001, %v2389
        %v2391 = vlaneseq
        %v2392 = vshrl.u32 %v2391, 7
        %v2393 = vsub.s32 0, %v2392
        %v2394 = vrot.slane %v2009, %v2393
        %v2395 = vlaneseq
        %v2396 = vshrl.u32 %v2395, 7
        %v2397 = vsub.s32 0, %v2396
        %v2398 = vrot.slane %v2011, %v2397
        %v2399 = vlaneseq
        %v2400 = vshrl.u32 %v2399, 7
        %v2401 = vsub.s32 0, %v2400
        %v2402 = vrot.slane %v1994, %v2401
        %v2403 = vlaneseq
        %v2404 = vshrl.u32 %v2403, 7
        %v2405 = vsub.s32 0, %v2404
        %v2406 = vrot.slane %v2008, %v2405
        %v2407 = vlaneseq
        %v2408 = vshrl.u32 %v2407, 7
        %v2409 = vsub.s32 0, %v2408
        %v2410 = vrot.slane %v2010, %v2409
        %v2411 = vlaneseq
        %v2412 = vshrl.u32 %v2411, 7
        %v2413 = vsub.s32 0, %v2412
        %v2414 = vrot.slane %v2012, %v2413
        %v2415 = vlaneseq
        %v2416 = vshrl.u32 %v2415, 7
        %v2417 = vsub.s32 0, %v2416
        %v2418 = vrot.slane %v2036, %v2417
        %v2419 = vlaneseq
        %v2420 = vshrl.u32 %v2419, 7
        %v2421 = vsub.s32 0, %v2420
        %v2422 = vrot.slane %v2050, %v2421
        %v2423 = vlaneseq
        %v2424 = vshrl.u32 %v2423, 7
        %v2425 = vsub.s32 0, %v2424
        %v2426 = vrot.slane %v2058, %v2425
        %v2427 = vlaneseq
        %v2428 = vshrl.u32 %v2427, 7
        %v2429 = vsub.s32 0, %v2428
        %v2430 = vrot.slane %v2060, %v2429
        %v2431 = vlaneseq
        %v2432 = vshrl.u32 %v2431, 7
        %v2433 = vsub.s32 0, %v2432
        %v2434 = vrot.slane %v2043, %v2433
        %v2435 = vlaneseq
        %v2436 = vshrl.u32 %v2435, 7
        %v2437 = vsub.s32 0, %v2436
        %v2438 = vrot.slane %v2057, %v2437
        %v2439 = vlaneseq
        %v2440 = vshrl.u32 %v2439, 7
        %v2441 = vsub.s32 0, %v2440
        %v2442 = vrot.slane %v2059, %v2441
        %v2443 = vlaneseq
        %v2444 = vshrl.u32 %v2443, 7
        %v2445 = vsub.s32 0, %v2444
        %v2446 = vrot.slane %v2061, %v2445
        %v2447 = vlaneseq
        %v2448 = vshrl.u32 %v2447, 7
        %v2449 = vsub.s32 0, %v2448
        %v2450 = vrot.slane %v2085, %v2449
        %v2451 = vlaneseq
        %v2452 = vshrl.u32 %v2451, 7
        %v2453 = vsub.s32 0, %v2452
        %v2454 = vrot.slane %v2099, %v2453
        %v2455 = vlaneseq
        %v2456 = vshrl.u32 %v2455, 7
        %v2457 = vsub.s32 0, %v2456
        %v2458 = vrot.slane %v2107, %v2457
        %v2459 = vlaneseq
        %v2460 = vshrl.u32 %v2459, 7
        %v2461 = vsub.s32 0, %v2460
        %v2462 = vrot.slane %v2109, %v2461
        %v2463 = vlaneseq
        %v2464 = vshrl.u32 %v2463, 7
        %v2465 = vsub.s32 0, %v2464
        %v2466 = vrot.slane %v2092, %v2465
        %v2467 = vlaneseq
        %v2468 = vshrl.u32 %v2467, 7
        %v2469 = vsub.s32 0, %v2468
        %v2470 = vrot.slane %v2106, %v2469
        %v2471 = vlaneseq
        %v2472 = vshrl.u32 %v2471, 7
        %v2473 = vsub.s32 0, %v2472
        %v2474 = vrot.slane %v2108, %v2473
        %v2475 = vlaneseq
        %v2476 = vshrl.u32 %v2475, 7
        %v2477 = vsub.s32 0, %v2476
        %v2478 = vrot.slane %v2110, %v2477
        %v2511 = vsel %vm2175, %v2194, %v2354
        %v2512 = vsel %vm2176, %v2194, %v2354
        %v2513 = vsel %vm2177, %v2198, %v2358
        %v2514 = vsel %vm2178, %v2198, %v2358
        %v2515 = vsel %vm2179, %v2202, %v2362
        %v2516 = vsel %vm2180, %v2202, %v2362
        %v2517 = vsel %vm2181, %v2206, %v2366
        %v2518 = vsel %vm2182, %v2206, %v2366
        %v2519 = vsel %vm2183, %v2210, %v2370
        %v2520 = vsel %vm2184, %v2210, %v2370
        %v2521 = vsel %vm2185, %v2214, %v2374
        %v2522 = vsel %vm2186, %v2214, %v2374
        %v2523 = vsel %vm2187, %v2218, %v2378
        %v2524 = vsel %vm2188, %v2218, %v2378
        %v2525 = vsel %vm2189, %v2222, %v2382
        %v2526 = vsel %vm2190, %v2222, %v2382
        %v2527 = vsel %vm2175, %v2226, %v2386
        %v2528 = vsel %vm2176, %v2226, %v2386
        %v2529 = vsel %vm2177, %v2230, %v2390
        %v2530 = vsel %vm2178, %v2230, %v2390
        %v2531 = vsel %vm2179, %v2234, %v2394
        %v2532 = vsel %vm2180, %v2234, %v2394
        %v2533 = vsel %vm2181, %v2238, %v2398
        %v2534 = vsel %vm2182, %v2238, %v2398
        %v2535 = vsel %vm2183, %v2242, %v2402
        %v2536 = vsel %vm2184, %v2242, %v2402
        %v2537 = vsel %vm2185, %v2246, %v2406
        %v2538 = vsel %vm2186, %v2246, %v2406
        %v2539 = vsel %vm2187, %v2250, %v2410
        %v2540 = vsel %vm2188, %v2250, %v2410
        %v2541 = vsel %vm2189, %v2254, %v2414
        %v2542 = vsel %vm2190, %v2254, %v2414
        %v2543 = vsel %vm2175, %v2258, %v2418
        %v2544 = vsel %vm2176, %v2258, %v2418
        %v2545 = vsel %vm2177, %v2262, %v2422
        %v2546 = vsel %vm2178, %v2262, %v2422
        %v2547 = vsel %vm2179, %v2266, %v2426
        %v2548 = vsel %vm2180, %v2266, %v2426
        %v2549 = vsel %vm2181, %v2270, %v2430
        %v2550 = vsel %vm2182, %v2270, %v2430
        %v2551 = vsel %vm2183, %v2274, %v2434
        %v2552 = vsel %vm2184, %v2274, %v2434
        %v2553 = vsel %vm2185, %v2278, %v2438
        %v2554 = vsel %vm2186, %v2278, %v2438
        %v2555 = vsel %vm2187, %v2282, %v2442
        %v2556 = vsel %vm2188, %v2282, %v2442
        %v2557 = vsel %vm2189, %v2286, %v2446
        %v2558 = vsel %vm2190, %v2286, %v2446
        %v2559 = vsel %vm2175, %v2290, %v2450
        %v2560 = vsel %vm2176, %v2290, %v2450
        %v2561 = vsel %vm2177, %v2294, %v2454
        %v2562 = vsel %vm2178, %v2294, %v2454
        %v2563 = vsel %vm2179, %v2298, %v2458
        %v2564 = vsel %vm2180, %v2298, %v2458
        %v2565 = vsel %vm2181, %v2302, %v2462
        %v2566 = vsel %vm2182, %v2302, %v2462
        %v2567 = vsel %vm2183, %v2306, %v2466
        %v2568 = vsel %vm2184, %v2306, %v2466
        %v2569 = vsel %vm2185, %v2310, %v2470
        %v2570 = vsel %vm2186, %v2310, %v2470
        %v2571 = vsel %vm2187, %v2314, %v2474
        %v2572 = vsel %vm2188, %v2314, %v2474
        %v2573 = vsel %vm2189, %v2318, %v2478
        %v2574 = vsel %vm2190, %v2318, %v2478
        %v2575 = vsel %vm1663, 1, 0
        %v2576 = vsel %vm1664, 1, 0
        %v2577 = vsel %vm1665, 1, 0
        %v2578 = vsel %vm1666, 1, 0
        %v2579 = vsel %vm1667, 1, 0
        %v2580 = vsel %vm1668, 1, 0
        %v2581 = vsel %vm1669, 1, 0
        %v2582 = vsel %vm1670, 1, 0
        %v2583 = vsel %vm1671, 1, 0
        %v2584 = vsel %vm1672, 1, 0
        %v2585 = vsel %vm1673, 1, 0
        %v2586 = vsel %vm1674, 1, 0
        %v2587 = vsel %vm1675, 1, 0
        %v2588 = vsel %vm1676, 1, 0
        %v2589 = vsel %vm1677, 1, 0
        %v2590 = vsel %vm1678, 1, 0
        %2591 = vset.pattern.permute.xlu0 0
        %2592 = vperm.xlu0 %2591, %v2575
        %v2593 = vpop.permute.xlu0 %2592
        %2594 = vset.pattern.permute.xlu0 0
        %2595 = vperm.xlu0 %2594, %v2576
        %v2596 = vpop.permute.xlu0 %2595
        %2597 = vset.pattern.permute.xlu0 0
        %2598 = vperm.xlu0 %2597, %v2577
        %v2599 = vpop.permute.xlu0 %2598
        %2600 = vset.pattern.permute.xlu0 0
        %2601 = vperm.xlu0 %2600, %v2578
        %v2602 = vpop.permute.xlu0 %2601
        %2603 = vset.pattern.permute.xlu0 0
        %2604 = vperm.xlu0 %2603, %v2579
        %v2605 = vpop.permute.xlu0 %2604
        %2606 = vset.pattern.permute.xlu0 0
        %2607 = vperm.xlu0 %2606, %v2580
        %v2608 = vpop.permute.xlu0 %2607
        %2609 = vset.pattern.permute.xlu0 0
        %2610 = vperm.xlu0 %2609, %v2581
        %v2611 = vpop.permute.xlu0 %2610
        %2612 = vset.pattern.permute.xlu0 0
        %2613 = vperm.xlu0 %2612, %v2582
        %v2614 = vpop.permute.xlu0 %2613
        %2615 = vset.pattern.permute.xlu0 0
        %2616 = vperm.xlu0 %2615, %v2583
        %v2617 = vpop.permute.xlu0 %2616
        %2618 = vset.pattern.permute.xlu0 0
        %2619 = vperm.xlu0 %2618, %v2584
        %v2620 = vpop.permute.xlu0 %2619
        %2621 = vset.pattern.permute.xlu0 0
        %2622 = vperm.xlu0 %2621, %v2585
        %v2623 = vpop.permute.xlu0 %2622
        %2624 = vset.pattern.permute.xlu0 0
        %2625 = vperm.xlu0 %2624, %v2586
        %v2626 = vpop.permute.xlu0 %2625
        %2627 = vset.pattern.permute.xlu0 0
        %2628 = vperm.xlu0 %2627, %v2587
        %v2629 = vpop.permute.xlu0 %2628
        %2630 = vset.pattern.permute.xlu0 0
        %2631 = vperm.xlu0 %2630, %v2588
        %v2632 = vpop.permute.xlu0 %2631
        %2633 = vset.pattern.permute.xlu0 0
        %2634 = vperm.xlu0 %2633, %v2589
        %v2635 = vpop.permute.xlu0 %2634
        %2636 = vset.pattern.permute.xlu0 0
        %2637 = vperm.xlu0 %2636, %v2590
        %v2638 = vpop.permute.xlu0 %2637
        %vm2639 = vcmp.eq.s32.totalorder %v2593, 1
        %vm2640 = vcmp.eq.s32.totalorder %v2596, 1
        %vm2641 = vcmp.eq.s32.totalorder %v2599, 1
        %vm2642 = vcmp.eq.s32.totalorder %v2602, 1
        %vm2643 = vcmp.eq.s32.totalorder %v2605, 1
        %vm2644 = vcmp.eq.s32.totalorder %v2608, 1
        %vm2645 = vcmp.eq.s32.totalorder %v2611, 1
        %vm2646 = vcmp.eq.s32.totalorder %v2614, 1
        %vm2647 = vcmp.eq.s32.totalorder %v2617, 1
        %vm2648 = vcmp.eq.s32.totalorder %v2620, 1
        %vm2649 = vcmp.eq.s32.totalorder %v2623, 1
        %vm2650 = vcmp.eq.s32.totalorder %v2626, 1
        %vm2651 = vcmp.eq.s32.totalorder %v2629, 1
        %vm2652 = vcmp.eq.s32.totalorder %v2632, 1
        %vm2653 = vcmp.eq.s32.totalorder %v2635, 1
        %vm2654 = vcmp.eq.s32.totalorder %v2638, 1
        %v2655 = vsel %vm2639, %v1599, %v2511
        %v2656 = vsel %vm2640, %v1600, %v2512
        %v2657 = vsel %vm2641, %v1599, %v2513
        %v2658 = vsel %vm2642, %v1600, %v2514
        %v2659 = vsel %vm2643, %v1599, %v2515
        %v2660 = vsel %vm2644, %v1600, %v2516
        %v2661 = vsel %vm2645, %v1599, %v2517
        %v2662 = vsel %vm2646, %v1600, %v2518
        %v2663 = vsel %vm2647, %v1599, %v2519
        %v2664 = vsel %vm2648, %v1600, %v2520
        %v2665 = vsel %vm2649, %v1599, %v2521
        %v2666 = vsel %vm2650, %v1600, %v2522
        %v2667 = vsel %vm2651, %v1599, %v2523
        %v2668 = vsel %vm2652, %v1600, %v2524
        %v2669 = vsel %vm2653, %v1599, %v2525
        %v2670 = vsel %vm2654, %v1600, %v2526
        %v2671 = vsel %vm2639, %v1601, %v2527
        %v2672 = vsel %vm2640, %v1602, %v2528
        %v2673 = vsel %vm2641, %v1601, %v2529
        %v2674 = vsel %vm2642, %v1602, %v2530
        %v2675 = vsel %vm2643, %v1601, %v2531
        %v2676 = vsel %vm2644, %v1602, %v2532
        %v2677 = vsel %vm2645, %v1601, %v2533
        %v2678 = vsel %vm2646, %v1602, %v2534
        %v2679 = vsel %vm2647, %v1601, %v2535
        %v2680 = vsel %vm2648, %v1602, %v2536
        %v2681 = vsel %vm2649, %v1601, %v2537
        %v2682 = vsel %vm2650, %v1602, %v2538
        %v2683 = vsel %vm2651, %v1601, %v2539
        %v2684 = vsel %vm2652, %v1602, %v2540
        %v2685 = vsel %vm2653, %v1601, %v2541
        %v2686 = vsel %vm2654, %v1602, %v2542
        %v2687 = vsel %vm2639, %v1603, %v2543
        %v2688 = vsel %vm2640, %v1604, %v2544
        %v2689 = vsel %vm2641, %v1603, %v2545
        %v2690 = vsel %vm2642, %v1604, %v2546
        %v2691 = vsel %vm2643, %v1603, %v2547
        %v2692 = vsel %vm2644, %v1604, %v2548
        %v2693 = vsel %vm2645, %v1603, %v2549
        %v2694 = vsel %vm2646, %v1604, %v2550
        %v2695 = vsel %vm2647, %v1603, %v2551
        %v2696 = vsel %vm2648, %v1604, %v2552
        %v2697 = vsel %vm2649, %v1603, %v2553
        %v2698 = vsel %vm2650, %v1604, %v2554
        %v2699 = vsel %vm2651, %v1603, %v2555
        %v2700 = vsel %vm2652, %v1604, %v2556
        %v2701 = vsel %vm2653, %v1603, %v2557
        %v2702 = vsel %vm2654, %v1604, %v2558
        %v2703 = vsel %vm2639, %v1605, %v2559
        %v2704 = vsel %vm2640, %v1606, %v2560
        %v2705 = vsel %vm2641, %v1605, %v2561
        %v2706 = vsel %vm2642, %v1606, %v2562
        %v2707 = vsel %vm2643, %v1605, %v2563
        %v2708 = vsel %vm2644, %v1606, %v2564
        %v2709 = vsel %vm2645, %v1605, %v2565
        %v2710 = vsel %vm2646, %v1606, %v2566
        %v2711 = vsel %vm2647, %v1605, %v2567
        %v2712 = vsel %vm2648, %v1606, %v2568
        %v2713 = vsel %vm2649, %v1605, %v2569
        %v2714 = vsel %vm2650, %v1606, %v2570
        %v2715 = vsel %vm2651, %v1605, %v2571
        %v2716 = vsel %vm2652, %v1606, %v2572
        %v2717 = vsel %vm2653, %v1605, %v2573
        %v2718 = vsel %vm2654, %v1606, %v2574
        %v2719 = vsel %vm792, %v2655, 0.0
        %v2720 = vsel %vm792, %v2657, 0.0
        %v2721 = vadd.f32 %v2719, %v2720
        %v2722 = vsel %vm792, %v2659, 0.0
        %v2723 = vadd.f32 %v2721, %v2722
        %v2724 = vsel %vm792, %v2661, 0.0
        %v2725 = vadd.f32 %v2723, %v2724
        %v2726 = vsel %vm792, %v2663, 0.0
        %v2727 = vadd.f32 %v2725, %v2726
        %v2728 = vsel %vm792, %v2665, 0.0
        %v2729 = vadd.f32 %v2727, %v2728
        %v2730 = vsel %vm792, %v2667, 0.0
        %v2731 = vadd.f32 %v2729, %v2730
        %v2732 = vsel %vm792, %v2669, 0.0
        %v2733 = vadd.f32 %v2731, %v2732
        %v2734 = vsel %vm792, %v2656, 0.0
        %v2735 = vsel %vm792, %v2658, 0.0
        %v2736 = vadd.f32 %v2734, %v2735
        %v2737 = vsel %vm792, %v2660, 0.0
        %v2738 = vadd.f32 %v2736, %v2737
        %v2739 = vsel %vm792, %v2662, 0.0
        %v2740 = vadd.f32 %v2738, %v2739
        %v2741 = vsel %vm792, %v2664, 0.0
        %v2742 = vadd.f32 %v2740, %v2741
        %v2743 = vsel %vm792, %v2666, 0.0
        %v2744 = vadd.f32 %v2742, %v2743
        %v2745 = vsel %vm792, %v2668, 0.0
        %v2746 = vadd.f32 %v2744, %v2745
        %v2747 = vsel %vm792, %v2670, 0.0
        %v2748 = vadd.f32 %v2746, %v2747
        %v2749 = vsel %vm792, %v2671, 0.0
        %v2750 = vsel %vm792, %v2673, 0.0
        %v2751 = vadd.f32 %v2749, %v2750
        %v2752 = vsel %vm792, %v2675, 0.0
        %v2753 = vadd.f32 %v2751, %v2752
        %v2754 = vsel %vm792, %v2677, 0.0
        %v2755 = vadd.f32 %v2753, %v2754
        %v2756 = vsel %vm792, %v2679, 0.0
        %v2757 = vadd.f32 %v2755, %v2756
        %v2758 = vsel %vm792, %v2681, 0.0
        %v2759 = vadd.f32 %v2757, %v2758
        %v2760 = vsel %vm792, %v2683, 0.0
        %v2761 = vadd.f32 %v2759, %v2760
        %v2762 = vsel %vm792, %v2685, 0.0
        %v2763 = vadd.f32 %v2761, %v2762
        %v2764 = vsel %vm792, %v2672, 0.0
        %v2765 = vsel %vm792, %v2674, 0.0
        %v2766 = vadd.f32 %v2764, %v2765
        %v2767 = vsel %vm792, %v2676, 0.0
        %v2768 = vadd.f32 %v2766, %v2767
        %v2769 = vsel %vm792, %v2678, 0.0
        %v2770 = vadd.f32 %v2768, %v2769
        %v2771 = vsel %vm792, %v2680, 0.0
        %v2772 = vadd.f32 %v2770, %v2771
        %v2773 = vsel %vm792, %v2682, 0.0
        %v2774 = vadd.f32 %v2772, %v2773
        %v2775 = vsel %vm792, %v2684, 0.0
        %v2776 = vadd.f32 %v2774, %v2775
        %v2777 = vsel %vm792, %v2686, 0.0
        %v2778 = vadd.f32 %v2776, %v2777
        %v2779 = vsel %vm792, %v2687, 0.0
        %v2780 = vsel %vm792, %v2689, 0.0
        %v2781 = vadd.f32 %v2779, %v2780
        %v2782 = vsel %vm792, %v2691, 0.0
        %v2783 = vadd.f32 %v2781, %v2782
        %v2784 = vsel %vm792, %v2693, 0.0
        %v2785 = vadd.f32 %v2783, %v2784
        %v2786 = vsel %vm792, %v2695, 0.0
        %v2787 = vadd.f32 %v2785, %v2786
        %v2788 = vsel %vm792, %v2697, 0.0
        %v2789 = vadd.f32 %v2787, %v2788
        %v2790 = vsel %vm792, %v2699, 0.0
        %v2791 = vadd.f32 %v2789, %v2790
        %v2792 = vsel %vm792, %v2701, 0.0
        %v2793 = vadd.f32 %v2791, %v2792
        %v2794 = vsel %vm792, %v2688, 0.0
        %v2795 = vsel %vm792, %v2690, 0.0
        %v2796 = vadd.f32 %v2794, %v2795
        %v2797 = vsel %vm792, %v2692, 0.0
        %v2798 = vadd.f32 %v2796, %v2797
        %v2799 = vsel %vm792, %v2694, 0.0
        %v2800 = vadd.f32 %v2798, %v2799
        %v2801 = vsel %vm792, %v2696, 0.0
        %v2802 = vadd.f32 %v2800, %v2801
        %v2803 = vsel %vm792, %v2698, 0.0
        %v2804 = vadd.f32 %v2802, %v2803
        %v2805 = vsel %vm792, %v2700, 0.0
        %v2806 = vadd.f32 %v2804, %v2805
        %v2807 = vsel %vm792, %v2702, 0.0
        %v2808 = vadd.f32 %v2806, %v2807
        %v2809 = vsel %vm792, %v2703, 0.0
        %v2810 = vsel %vm792, %v2705, 0.0
        %v2811 = vadd.f32 %v2809, %v2810
        %v2812 = vsel %vm792, %v2707, 0.0
        %v2813 = vadd.f32 %v2811, %v2812
        %v2814 = vsel %vm792, %v2709, 0.0
        %v2815 = vadd.f32 %v2813, %v2814
        %v2816 = vsel %vm792, %v2711, 0.0
        %v2817 = vadd.f32 %v2815, %v2816
        %v2818 = vsel %vm792, %v2713, 0.0
        %v2819 = vadd.f32 %v2817, %v2818
        %v2820 = vsel %vm792, %v2715, 0.0
        %v2821 = vadd.f32 %v2819, %v2820
        %v2822 = vsel %vm792, %v2717, 0.0
        %v2823 = vadd.f32 %v2821, %v2822
        %v2824 = vsel %vm792, %v2704, 0.0
        %v2825 = vsel %vm792, %v2706, 0.0
        %v2826 = vadd.f32 %v2824, %v2825
        %v2827 = vsel %vm792, %v2708, 0.0
        %v2828 = vadd.f32 %v2826, %v2827
        %v2829 = vsel %vm792, %v2710, 0.0
        %v2830 = vadd.f32 %v2828, %v2829
        %v2831 = vsel %vm792, %v2712, 0.0
        %v2832 = vadd.f32 %v2830, %v2831
        %v2833 = vsel %vm792, %v2714, 0.0
        %v2834 = vadd.f32 %v2832, %v2833
        %v2835 = vsel %vm792, %v2716, 0.0
        %v2836 = vadd.f32 %v2834, %v2835
        %v2837 = vsel %vm792, %v2718, 0.0
        %v2838 = vadd.f32 %v2836, %v2837
        %v2839 = vmul.f32 %v2733, 0.125
        %v2840 = vmul.f32 %v2748, 0.125
        %v2841 = vmul.f32 %v2763, 0.125
        %v2842 = vmul.f32 %v2778, 0.125
        %v2843 = vmul.f32 %v2793, 0.125
        %v2844 = vmul.f32 %v2808, 0.125
        %v2845 = vmul.f32 %v2823, 0.125
        %v2846 = vmul.f32 %v2838, 0.125
        %v2851 = vcombine.high %v1643, %v1643
        %v2853 = vunpack.c.l.s4 1966171168
        %v2854 = vunpack.c.0.s8 %v2853
        %v2855 = vlaneseq
        %v2856 = vshrl.u32 %v2855, 7
        %v2857 = vsub.s32 %v2854, %v2856
        %v2858 = vrot.slane %v1643, %v2857
        %v2860 = vunpack.c.l.s4 1966171168
        %v2861 = vunpack.c.0.s8 %v2860
        %v2862 = vlaneseq
        %v2863 = vshrl.u32 %v2862, 7
        %v2864 = vsub.s32 %v2861, %v2863
        %v2865 = vrot.slane %v2851, %v2864
        %v2866 = vcombine.high %v2858, %v2858
        %v2867 = vcombine.high %v2865, %v2865
        %v2869 = vunpack.c.l.s4 1966171168
        %v2870 = vunpack.c.0.s8 %v2869
        %v2871 = vlaneseq
        %v2872 = vshrl.u32 %v2871, 7
        %v2873 = vsub.s32 %v2870, %v2872
        %v2874 = vrot.slane %v2858, %v2873
        %v2876 = vunpack.c.l.s4 1966171168
        %v2877 = vunpack.c.0.s8 %v2876
        %v2878 = vlaneseq
        %v2879 = vshrl.u32 %v2878, 7
        %v2880 = vsub.s32 %v2877, %v2879
        %v2881 = vrot.slane %v2865, %v2880
        %v2883 = vunpack.c.l.s4 1966171168
        %v2884 = vunpack.c.0.s8 %v2883
        %v2885 = vlaneseq
        %v2886 = vshrl.u32 %v2885, 7
        %v2887 = vsub.s32 %v2884, %v2886
        %v2888 = vrot.slane %v2866, %v2887
        %v2890 = vunpack.c.l.s4 1966171168
        %v2891 = vunpack.c.0.s8 %v2890
        %v2892 = vlaneseq
        %v2893 = vshrl.u32 %v2892, 7
        %v2894 = vsub.s32 %v2891, %v2893
        %v2895 = vrot.slane %v2867, %v2894
        %v2896 = vcombine.high %v2874, %v2874
        %v2897 = vcombine.high %v2881, %v2881
        %v2898 = vcombine.high %v2888, %v2888
        %v2899 = vcombine.high %v2895, %v2895
        %v2900 = vcombine.high %v1644, %v1644
        %v2902 = vunpack.c.l.s4 1966171168
        %v2903 = vunpack.c.0.s8 %v2902
        %v2904 = vlaneseq
        %v2905 = vshrl.u32 %v2904, 7
        %v2906 = vsub.s32 %v2903, %v2905
        %v2907 = vrot.slane %v1644, %v2906
        %v2909 = vunpack.c.l.s4 1966171168
        %v2910 = vunpack.c.0.s8 %v2909
        %v2911 = vlaneseq
        %v2912 = vshrl.u32 %v2911, 7
        %v2913 = vsub.s32 %v2910, %v2912
        %v2914 = vrot.slane %v2900, %v2913
        %v2915 = vcombine.high %v2907, %v2907
        %v2916 = vcombine.high %v2914, %v2914
        %v2918 = vunpack.c.l.s4 1966171168
        %v2919 = vunpack.c.0.s8 %v2918
        %v2920 = vlaneseq
        %v2921 = vshrl.u32 %v2920, 7
        %v2922 = vsub.s32 %v2919, %v2921
        %v2923 = vrot.slane %v2907, %v2922
        %v2925 = vunpack.c.l.s4 1966171168
        %v2926 = vunpack.c.0.s8 %v2925
        %v2927 = vlaneseq
        %v2928 = vshrl.u32 %v2927, 7
        %v2929 = vsub.s32 %v2926, %v2928
        %v2930 = vrot.slane %v2914, %v2929
        %v2932 = vunpack.c.l.s4 1966171168
        %v2933 = vunpack.c.0.s8 %v2932
        %v2934 = vlaneseq
        %v2935 = vshrl.u32 %v2934, 7
        %v2936 = vsub.s32 %v2933, %v2935
        %v2937 = vrot.slane %v2915, %v2936
        %v2939 = vunpack.c.l.s4 1966171168
        %v2940 = vunpack.c.0.s8 %v2939
        %v2941 = vlaneseq
        %v2942 = vshrl.u32 %v2941, 7
        %v2943 = vsub.s32 %v2940, %v2942
        %v2944 = vrot.slane %v2916, %v2943
        %v2945 = vcombine.high %v2923, %v2923
        %v2946 = vcombine.high %v2930, %v2930
        %v2947 = vcombine.high %v2937, %v2937
        %v2948 = vcombine.high %v2944, %v2944
        %v2949 = vcombine.high %v1645, %v1645
        %v2951 = vunpack.c.l.s4 1966171168
        %v2952 = vunpack.c.0.s8 %v2951
        %v2953 = vlaneseq
        %v2954 = vshrl.u32 %v2953, 7
        %v2955 = vsub.s32 %v2952, %v2954
        %v2956 = vrot.slane %v1645, %v2955
        %v2958 = vunpack.c.l.s4 1966171168
        %v2959 = vunpack.c.0.s8 %v2958
        %v2960 = vlaneseq
        %v2961 = vshrl.u32 %v2960, 7
        %v2962 = vsub.s32 %v2959, %v2961
        %v2963 = vrot.slane %v2949, %v2962
        %v2964 = vcombine.high %v2956, %v2956
        %v2965 = vcombine.high %v2963, %v2963
        %v2967 = vunpack.c.l.s4 1966171168
        %v2968 = vunpack.c.0.s8 %v2967
        %v2969 = vlaneseq
        %v2970 = vshrl.u32 %v2969, 7
        %v2971 = vsub.s32 %v2968, %v2970
        %v2972 = vrot.slane %v2956, %v2971
        %v2974 = vunpack.c.l.s4 1966171168
        %v2975 = vunpack.c.0.s8 %v2974
        %v2976 = vlaneseq
        %v2977 = vshrl.u32 %v2976, 7
        %v2978 = vsub.s32 %v2975, %v2977
        %v2979 = vrot.slane %v2963, %v2978
        %v2981 = vunpack.c.l.s4 1966171168
        %v2982 = vunpack.c.0.s8 %v2981
        %v2983 = vlaneseq
        %v2984 = vshrl.u32 %v2983, 7
        %v2985 = vsub.s32 %v2982, %v2984
        %v2986 = vrot.slane %v2964, %v2985
        %v2988 = vunpack.c.l.s4 1966171168
        %v2989 = vunpack.c.0.s8 %v2988
        %v2990 = vlaneseq
        %v2991 = vshrl.u32 %v2990, 7
        %v2992 = vsub.s32 %v2989, %v2991
        %v2993 = vrot.slane %v2965, %v2992
        %v2994 = vcombine.high %v2972, %v2972
        %v2995 = vcombine.high %v2979, %v2979
        %v2996 = vcombine.high %v2986, %v2986
        %v2997 = vcombine.high %v2993, %v2993
        %v2998 = vcombine.high %v1646, %v1646
        %v3000 = vunpack.c.l.s4 1966171168
        %v3001 = vunpack.c.0.s8 %v3000
        %v3002 = vlaneseq
        %v3003 = vshrl.u32 %v3002, 7
        %v3004 = vsub.s32 %v3001, %v3003
        %v3005 = vrot.slane %v1646, %v3004
        %v3007 = vunpack.c.l.s4 1966171168
        %v3008 = vunpack.c.0.s8 %v3007
        %v3009 = vlaneseq
        %v3010 = vshrl.u32 %v3009, 7
        %v3011 = vsub.s32 %v3008, %v3010
        %v3012 = vrot.slane %v2998, %v3011
        %v3013 = vcombine.high %v3005, %v3005
        %v3014 = vcombine.high %v3012, %v3012
        %v3016 = vunpack.c.l.s4 1966171168
        %v3017 = vunpack.c.0.s8 %v3016
        %v3018 = vlaneseq
        %v3019 = vshrl.u32 %v3018, 7
        %v3020 = vsub.s32 %v3017, %v3019
        %v3021 = vrot.slane %v3005, %v3020
        %v3023 = vunpack.c.l.s4 1966171168
        %v3024 = vunpack.c.0.s8 %v3023
        %v3025 = vlaneseq
        %v3026 = vshrl.u32 %v3025, 7
        %v3027 = vsub.s32 %v3024, %v3026
        %v3028 = vrot.slane %v3012, %v3027
        %v3030 = vunpack.c.l.s4 1966171168
        %v3031 = vunpack.c.0.s8 %v3030
        %v3032 = vlaneseq
        %v3033 = vshrl.u32 %v3032, 7
        %v3034 = vsub.s32 %v3031, %v3033
        %v3035 = vrot.slane %v3013, %v3034
        %v3037 = vunpack.c.l.s4 1966171168
        %v3038 = vunpack.c.0.s8 %v3037
        %v3039 = vlaneseq
        %v3040 = vshrl.u32 %v3039, 7
        %v3041 = vsub.s32 %v3038, %v3040
        %v3042 = vrot.slane %v3014, %v3041
        %v3043 = vcombine.high %v3021, %v3021
        %v3044 = vcombine.high %v3028, %v3028
        %v3045 = vcombine.high %v3035, %v3035
        %v3046 = vcombine.high %v3042, %v3042
        %v3051 = vcombine.high %v1639, %v1639
        %v3053 = vunpack.c.l.s4 1966171168
        %v3054 = vunpack.c.0.s8 %v3053
        %v3055 = vlaneseq
        %v3056 = vshrl.u32 %v3055, 7
        %v3057 = vsub.s32 %v3054, %v3056
        %v3058 = vrot.slane %v1639, %v3057
        %v3060 = vunpack.c.l.s4 1966171168
        %v3061 = vunpack.c.0.s8 %v3060
        %v3062 = vlaneseq
        %v3063 = vshrl.u32 %v3062, 7
        %v3064 = vsub.s32 %v3061, %v3063
        %v3065 = vrot.slane %v3051, %v3064
        %v3066 = vcombine.high %v3058, %v3058
        %v3067 = vcombine.high %v3065, %v3065
        %v3069 = vunpack.c.l.s4 1966171168
        %v3070 = vunpack.c.0.s8 %v3069
        %v3071 = vlaneseq
        %v3072 = vshrl.u32 %v3071, 7
        %v3073 = vsub.s32 %v3070, %v3072
        %v3074 = vrot.slane %v3058, %v3073
        %v3076 = vunpack.c.l.s4 1966171168
        %v3077 = vunpack.c.0.s8 %v3076
        %v3078 = vlaneseq
        %v3079 = vshrl.u32 %v3078, 7
        %v3080 = vsub.s32 %v3077, %v3079
        %v3081 = vrot.slane %v3065, %v3080
        %v3083 = vunpack.c.l.s4 1966171168
        %v3084 = vunpack.c.0.s8 %v3083
        %v3085 = vlaneseq
        %v3086 = vshrl.u32 %v3085, 7
        %v3087 = vsub.s32 %v3084, %v3086
        %v3088 = vrot.slane %v3066, %v3087
        %v3090 = vunpack.c.l.s4 1966171168
        %v3091 = vunpack.c.0.s8 %v3090
        %v3092 = vlaneseq
        %v3093 = vshrl.u32 %v3092, 7
        %v3094 = vsub.s32 %v3091, %v3093
        %v3095 = vrot.slane %v3067, %v3094
        %v3096 = vcombine.high %v3074, %v3074
        %v3097 = vcombine.high %v3081, %v3081
        %v3098 = vcombine.high %v3088, %v3088
        %v3099 = vcombine.high %v3095, %v3095
        %v3100 = vcombine.high %v1640, %v1640
        %v3102 = vunpack.c.l.s4 1966171168
        %v3103 = vunpack.c.0.s8 %v3102
        %v3104 = vlaneseq
        %v3105 = vshrl.u32 %v3104, 7
        %v3106 = vsub.s32 %v3103, %v3105
        %v3107 = vrot.slane %v1640, %v3106
        %v3109 = vunpack.c.l.s4 1966171168
        %v3110 = vunpack.c.0.s8 %v3109
        %v3111 = vlaneseq
        %v3112 = vshrl.u32 %v3111, 7
        %v3113 = vsub.s32 %v3110, %v3112
        %v3114 = vrot.slane %v3100, %v3113
        %v3115 = vcombine.high %v3107, %v3107
        %v3116 = vcombine.high %v3114, %v3114
        %v3118 = vunpack.c.l.s4 1966171168
        %v3119 = vunpack.c.0.s8 %v3118
        %v3120 = vlaneseq
        %v3121 = vshrl.u32 %v3120, 7
        %v3122 = vsub.s32 %v3119, %v3121
        %v3123 = vrot.slane %v3107, %v3122
        %v3125 = vunpack.c.l.s4 1966171168
        %v3126 = vunpack.c.0.s8 %v3125
        %v3127 = vlaneseq
        %v3128 = vshrl.u32 %v3127, 7
        %v3129 = vsub.s32 %v3126, %v3128
        %v3130 = vrot.slane %v3114, %v3129
        %v3132 = vunpack.c.l.s4 1966171168
        %v3133 = vunpack.c.0.s8 %v3132
        %v3134 = vlaneseq
        %v3135 = vshrl.u32 %v3134, 7
        %v3136 = vsub.s32 %v3133, %v3135
        %v3137 = vrot.slane %v3115, %v3136
        %v3139 = vunpack.c.l.s4 1966171168
        %v3140 = vunpack.c.0.s8 %v3139
        %v3141 = vlaneseq
        %v3142 = vshrl.u32 %v3141, 7
        %v3143 = vsub.s32 %v3140, %v3142
        %v3144 = vrot.slane %v3116, %v3143
        %v3145 = vcombine.high %v3123, %v3123
        %v3146 = vcombine.high %v3130, %v3130
        %v3147 = vcombine.high %v3137, %v3137
        %v3148 = vcombine.high %v3144, %v3144
        %v3149 = vcombine.high %v1641, %v1641
        %v3151 = vunpack.c.l.s4 1966171168
        %v3152 = vunpack.c.0.s8 %v3151
        %v3153 = vlaneseq
        %v3154 = vshrl.u32 %v3153, 7
        %v3155 = vsub.s32 %v3152, %v3154
        %v3156 = vrot.slane %v1641, %v3155
        %v3158 = vunpack.c.l.s4 1966171168
        %v3159 = vunpack.c.0.s8 %v3158
        %v3160 = vlaneseq
        %v3161 = vshrl.u32 %v3160, 7
        %v3162 = vsub.s32 %v3159, %v3161
        %v3163 = vrot.slane %v3149, %v3162
        %v3164 = vcombine.high %v3156, %v3156
        %v3165 = vcombine.high %v3163, %v3163
        %v3167 = vunpack.c.l.s4 1966171168
        %v3168 = vunpack.c.0.s8 %v3167
        %v3169 = vlaneseq
        %v3170 = vshrl.u32 %v3169, 7
        %v3171 = vsub.s32 %v3168, %v3170
        %v3172 = vrot.slane %v3156, %v3171
        %v3174 = vunpack.c.l.s4 1966171168
        %v3175 = vunpack.c.0.s8 %v3174
        %v3176 = vlaneseq
        %v3177 = vshrl.u32 %v3176, 7
        %v3178 = vsub.s32 %v3175, %v3177
        %v3179 = vrot.slane %v3163, %v3178
        %v3181 = vunpack.c.l.s4 1966171168
        %v3182 = vunpack.c.0.s8 %v3181
        %v3183 = vlaneseq
        %v3184 = vshrl.u32 %v3183, 7
        %v3185 = vsub.s32 %v3182, %v3184
        %v3186 = vrot.slane %v3164, %v3185
        %v3188 = vunpack.c.l.s4 1966171168
        %v3189 = vunpack.c.0.s8 %v3188
        %v3190 = vlaneseq
        %v3191 = vshrl.u32 %v3190, 7
        %v3192 = vsub.s32 %v3189, %v3191
        %v3193 = vrot.slane %v3165, %v3192
        %v3194 = vcombine.high %v3172, %v3172
        %v3195 = vcombine.high %v3179, %v3179
        %v3196 = vcombine.high %v3186, %v3186
        %v3197 = vcombine.high %v3193, %v3193
        %v3198 = vcombine.high %v1642, %v1642
        %v3200 = vunpack.c.l.s4 1966171168
        %v3201 = vunpack.c.0.s8 %v3200
        %v3202 = vlaneseq
        %v3203 = vshrl.u32 %v3202, 7
        %v3204 = vsub.s32 %v3201, %v3203
        %v3205 = vrot.slane %v1642, %v3204
        %v3207 = vunpack.c.l.s4 1966171168
        %v3208 = vunpack.c.0.s8 %v3207
        %v3209 = vlaneseq
        %v3210 = vshrl.u32 %v3209, 7
        %v3211 = vsub.s32 %v3208, %v3210
        %v3212 = vrot.slane %v3198, %v3211
        %v3213 = vcombine.high %v3205, %v3205
        %v3214 = vcombine.high %v3212, %v3212
        %v3216 = vunpack.c.l.s4 1966171168
        %v3217 = vunpack.c.0.s8 %v3216
        %v3218 = vlaneseq
        %v3219 = vshrl.u32 %v3218, 7
        %v3220 = vsub.s32 %v3217, %v3219
        %v3221 = vrot.slane %v3205, %v3220
        %v3223 = vunpack.c.l.s4 1966171168
        %v3224 = vunpack.c.0.s8 %v3223
        %v3225 = vlaneseq
        %v3226 = vshrl.u32 %v3225, 7
        %v3227 = vsub.s32 %v3224, %v3226
        %v3228 = vrot.slane %v3212, %v3227
        %v3230 = vunpack.c.l.s4 1966171168
        %v3231 = vunpack.c.0.s8 %v3230
        %v3232 = vlaneseq
        %v3233 = vshrl.u32 %v3232, 7
        %v3234 = vsub.s32 %v3231, %v3233
        %v3235 = vrot.slane %v3213, %v3234
        %v3237 = vunpack.c.l.s4 1966171168
        %v3238 = vunpack.c.0.s8 %v3237
        %v3239 = vlaneseq
        %v3240 = vshrl.u32 %v3239, 7
        %v3241 = vsub.s32 %v3238, %v3240
        %v3242 = vrot.slane %v3214, %v3241
        %v3243 = vcombine.high %v3221, %v3221
        %v3244 = vcombine.high %v3228, %v3228
        %v3245 = vcombine.high %v3235, %v3235
        %v3246 = vcombine.high %v3242, %v3242
        %v3247 = vlaneseq
        %v3248 = vshrl.u32 %v3247, 7
        %v3249 = vsub.s32 0, %v3248
        %v3250 = vrot.slane %v2874, %v3249
        %v3251 = vlaneseq
        %v3252 = vshrl.u32 %v3251, 7
        %v3253 = vsub.s32 0, %v3252
        %v3254 = vrot.slane %v2888, %v3253
        %v3255 = vlaneseq
        %v3256 = vshrl.u32 %v3255, 7
        %v3257 = vsub.s32 0, %v3256
        %v3258 = vrot.slane %v2896, %v3257
        %v3259 = vlaneseq
        %v3260 = vshrl.u32 %v3259, 7
        %v3261 = vsub.s32 0, %v3260
        %v3262 = vrot.slane %v2898, %v3261
        %v3263 = vlaneseq
        %v3264 = vshrl.u32 %v3263, 7
        %v3265 = vsub.s32 0, %v3264
        %v3266 = vrot.slane %v2881, %v3265
        %v3267 = vlaneseq
        %v3268 = vshrl.u32 %v3267, 7
        %v3269 = vsub.s32 0, %v3268
        %v3270 = vrot.slane %v2895, %v3269
        %v3271 = vlaneseq
        %v3272 = vshrl.u32 %v3271, 7
        %v3273 = vsub.s32 0, %v3272
        %v3274 = vrot.slane %v2897, %v3273
        %v3275 = vlaneseq
        %v3276 = vshrl.u32 %v3275, 7
        %v3277 = vsub.s32 0, %v3276
        %v3278 = vrot.slane %v2899, %v3277
        %v3279 = vlaneseq
        %v3280 = vshrl.u32 %v3279, 7
        %v3281 = vsub.s32 0, %v3280
        %v3282 = vrot.slane %v2923, %v3281
        %v3283 = vlaneseq
        %v3284 = vshrl.u32 %v3283, 7
        %v3285 = vsub.s32 0, %v3284
        %v3286 = vrot.slane %v2937, %v3285
        %v3287 = vlaneseq
        %v3288 = vshrl.u32 %v3287, 7
        %v3289 = vsub.s32 0, %v3288
        %v3290 = vrot.slane %v2945, %v3289
        %v3291 = vlaneseq
        %v3292 = vshrl.u32 %v3291, 7
        %v3293 = vsub.s32 0, %v3292
        %v3294 = vrot.slane %v2947, %v3293
        %v3295 = vlaneseq
        %v3296 = vshrl.u32 %v3295, 7
        %v3297 = vsub.s32 0, %v3296
        %v3298 = vrot.slane %v2930, %v3297
        %v3299 = vlaneseq
        %v3300 = vshrl.u32 %v3299, 7
        %v3301 = vsub.s32 0, %v3300
        %v3302 = vrot.slane %v2944, %v3301
        %v3303 = vlaneseq
        %v3304 = vshrl.u32 %v3303, 7
        %v3305 = vsub.s32 0, %v3304
        %v3306 = vrot.slane %v2946, %v3305
        %v3307 = vlaneseq
        %v3308 = vshrl.u32 %v3307, 7
        %v3309 = vsub.s32 0, %v3308
        %v3310 = vrot.slane %v2948, %v3309
        %v3311 = vlaneseq
        %v3312 = vshrl.u32 %v3311, 7
        %v3313 = vsub.s32 0, %v3312
        %v3314 = vrot.slane %v2972, %v3313
        %v3315 = vlaneseq
        %v3316 = vshrl.u32 %v3315, 7
        %v3317 = vsub.s32 0, %v3316
        %v3318 = vrot.slane %v2986, %v3317
        %v3319 = vlaneseq
        %v3320 = vshrl.u32 %v3319, 7
        %v3321 = vsub.s32 0, %v3320
        %v3322 = vrot.slane %v2994, %v3321
        %v3323 = vlaneseq
        %v3324 = vshrl.u32 %v3323, 7
        %v3325 = vsub.s32 0, %v3324
        %v3326 = vrot.slane %v2996, %v3325
        %v3327 = vlaneseq
        %v3328 = vshrl.u32 %v3327, 7
        %v3329 = vsub.s32 0, %v3328
        %v3330 = vrot.slane %v2979, %v3329
        %v3331 = vlaneseq
        %v3332 = vshrl.u32 %v3331, 7
        %v3333 = vsub.s32 0, %v3332
        %v3334 = vrot.slane %v2993, %v3333
        %v3335 = vlaneseq
        %v3336 = vshrl.u32 %v3335, 7
        %v3337 = vsub.s32 0, %v3336
        %v3338 = vrot.slane %v2995, %v3337
        %v3339 = vlaneseq
        %v3340 = vshrl.u32 %v3339, 7
        %v3341 = vsub.s32 0, %v3340
        %v3342 = vrot.slane %v2997, %v3341
        %v3343 = vlaneseq
        %v3344 = vshrl.u32 %v3343, 7
        %v3345 = vsub.s32 0, %v3344
        %v3346 = vrot.slane %v3021, %v3345
        %v3347 = vlaneseq
        %v3348 = vshrl.u32 %v3347, 7
        %v3349 = vsub.s32 0, %v3348
        %v3350 = vrot.slane %v3035, %v3349
        %v3351 = vlaneseq
        %v3352 = vshrl.u32 %v3351, 7
        %v3353 = vsub.s32 0, %v3352
        %v3354 = vrot.slane %v3043, %v3353
        %v3355 = vlaneseq
        %v3356 = vshrl.u32 %v3355, 7
        %v3357 = vsub.s32 0, %v3356
        %v3358 = vrot.slane %v3045, %v3357
        %v3359 = vlaneseq
        %v3360 = vshrl.u32 %v3359, 7
        %v3361 = vsub.s32 0, %v3360
        %v3362 = vrot.slane %v3028, %v3361
        %v3363 = vlaneseq
        %v3364 = vshrl.u32 %v3363, 7
        %v3365 = vsub.s32 0, %v3364
        %v3366 = vrot.slane %v3042, %v3365
        %v3367 = vlaneseq
        %v3368 = vshrl.u32 %v3367, 7
        %v3369 = vsub.s32 0, %v3368
        %v3370 = vrot.slane %v3044, %v3369
        %v3371 = vlaneseq
        %v3372 = vshrl.u32 %v3371, 7
        %v3373 = vsub.s32 0, %v3372
        %v3374 = vrot.slane %v3046, %v3373
        %v3407 = vlaneseq
        %v3408 = vshrl.u32 %v3407, 7
        %v3409 = vsub.s32 0, %v3408
        %v3410 = vrot.slane %v3074, %v3409
        %v3411 = vlaneseq
        %v3412 = vshrl.u32 %v3411, 7
        %v3413 = vsub.s32 0, %v3412
        %v3414 = vrot.slane %v3088, %v3413
        %v3415 = vlaneseq
        %v3416 = vshrl.u32 %v3415, 7
        %v3417 = vsub.s32 0, %v3416
        %v3418 = vrot.slane %v3096, %v3417
        %v3419 = vlaneseq
        %v3420 = vshrl.u32 %v3419, 7
        %v3421 = vsub.s32 0, %v3420
        %v3422 = vrot.slane %v3098, %v3421
        %v3423 = vlaneseq
        %v3424 = vshrl.u32 %v3423, 7
        %v3425 = vsub.s32 0, %v3424
        %v3426 = vrot.slane %v3081, %v3425
        %v3427 = vlaneseq
        %v3428 = vshrl.u32 %v3427, 7
        %v3429 = vsub.s32 0, %v3428
        %v3430 = vrot.slane %v3095, %v3429
        %v3431 = vlaneseq
        %v3432 = vshrl.u32 %v3431, 7
        %v3433 = vsub.s32 0, %v3432
        %v3434 = vrot.slane %v3097, %v3433
        %v3435 = vlaneseq
        %v3436 = vshrl.u32 %v3435, 7
        %v3437 = vsub.s32 0, %v3436
        %v3438 = vrot.slane %v3099, %v3437
        %v3439 = vlaneseq
        %v3440 = vshrl.u32 %v3439, 7
        %v3441 = vsub.s32 0, %v3440
        %v3442 = vrot.slane %v3123, %v3441
        %v3443 = vlaneseq
        %v3444 = vshrl.u32 %v3443, 7
        %v3445 = vsub.s32 0, %v3444
        %v3446 = vrot.slane %v3137, %v3445
        %v3447 = vlaneseq
        %v3448 = vshrl.u32 %v3447, 7
        %v3449 = vsub.s32 0, %v3448
        %v3450 = vrot.slane %v3145, %v3449
        %v3451 = vlaneseq
        %v3452 = vshrl.u32 %v3451, 7
        %v3453 = vsub.s32 0, %v3452
        %v3454 = vrot.slane %v3147, %v3453
        %v3455 = vlaneseq
        %v3456 = vshrl.u32 %v3455, 7
        %v3457 = vsub.s32 0, %v3456
        %v3458 = vrot.slane %v3130, %v3457
        %v3459 = vlaneseq
        %v3460 = vshrl.u32 %v3459, 7
        %v3461 = vsub.s32 0, %v3460
        %v3462 = vrot.slane %v3144, %v3461
        %v3463 = vlaneseq
        %v3464 = vshrl.u32 %v3463, 7
        %v3465 = vsub.s32 0, %v3464
        %v3466 = vrot.slane %v3146, %v3465
        %v3467 = vlaneseq
        %v3468 = vshrl.u32 %v3467, 7
        %v3469 = vsub.s32 0, %v3468
        %v3470 = vrot.slane %v3148, %v3469
        %v3471 = vlaneseq
        %v3472 = vshrl.u32 %v3471, 7
        %v3473 = vsub.s32 0, %v3472
        %v3474 = vrot.slane %v3172, %v3473
        %v3475 = vlaneseq
        %v3476 = vshrl.u32 %v3475, 7
        %v3477 = vsub.s32 0, %v3476
        %v3478 = vrot.slane %v3186, %v3477
        %v3479 = vlaneseq
        %v3480 = vshrl.u32 %v3479, 7
        %v3481 = vsub.s32 0, %v3480
        %v3482 = vrot.slane %v3194, %v3481
        %v3483 = vlaneseq
        %v3484 = vshrl.u32 %v3483, 7
        %v3485 = vsub.s32 0, %v3484
        %v3486 = vrot.slane %v3196, %v3485
        %v3487 = vlaneseq
        %v3488 = vshrl.u32 %v3487, 7
        %v3489 = vsub.s32 0, %v3488
        %v3490 = vrot.slane %v3179, %v3489
        %v3491 = vlaneseq
        %v3492 = vshrl.u32 %v3491, 7
        %v3493 = vsub.s32 0, %v3492
        %v3494 = vrot.slane %v3193, %v3493
        %v3495 = vlaneseq
        %v3496 = vshrl.u32 %v3495, 7
        %v3497 = vsub.s32 0, %v3496
        %v3498 = vrot.slane %v3195, %v3497
        %v3499 = vlaneseq
        %v3500 = vshrl.u32 %v3499, 7
        %v3501 = vsub.s32 0, %v3500
        %v3502 = vrot.slane %v3197, %v3501
        %v3503 = vlaneseq
        %v3504 = vshrl.u32 %v3503, 7
        %v3505 = vsub.s32 0, %v3504
        %v3506 = vrot.slane %v3221, %v3505
        %v3507 = vlaneseq
        %v3508 = vshrl.u32 %v3507, 7
        %v3509 = vsub.s32 0, %v3508
        %v3510 = vrot.slane %v3235, %v3509
        %v3511 = vlaneseq
        %v3512 = vshrl.u32 %v3511, 7
        %v3513 = vsub.s32 0, %v3512
        %v3514 = vrot.slane %v3243, %v3513
        %v3515 = vlaneseq
        %v3516 = vshrl.u32 %v3515, 7
        %v3517 = vsub.s32 0, %v3516
        %v3518 = vrot.slane %v3245, %v3517
        %v3519 = vlaneseq
        %v3520 = vshrl.u32 %v3519, 7
        %v3521 = vsub.s32 0, %v3520
        %v3522 = vrot.slane %v3228, %v3521
        %v3523 = vlaneseq
        %v3524 = vshrl.u32 %v3523, 7
        %v3525 = vsub.s32 0, %v3524
        %v3526 = vrot.slane %v3242, %v3525
        %v3527 = vlaneseq
        %v3528 = vshrl.u32 %v3527, 7
        %v3529 = vsub.s32 0, %v3528
        %v3530 = vrot.slane %v3244, %v3529
        %v3531 = vlaneseq
        %v3532 = vshrl.u32 %v3531, 7
        %v3533 = vsub.s32 0, %v3532
        %v3534 = vrot.slane %v3246, %v3533
        %v3567 = vsel %vm2175, %v3250, %v3410
        %v3568 = vsel %vm2176, %v3250, %v3410
        %v3569 = vsel %vm2177, %v3254, %v3414
        %v3570 = vsel %vm2178, %v3254, %v3414
        %v3571 = vsel %vm2179, %v3258, %v3418
        %v3572 = vsel %vm2180, %v3258, %v3418
        %v3573 = vsel %vm2181, %v3262, %v3422
        %v3574 = vsel %vm2182, %v3262, %v3422
        %v3575 = vsel %vm2183, %v3266, %v3426
        %v3576 = vsel %vm2184, %v3266, %v3426
        %v3577 = vsel %vm2185, %v3270, %v3430
        %v3578 = vsel %vm2186, %v3270, %v3430
        %v3579 = vsel %vm2187, %v3274, %v3434
        %v3580 = vsel %vm2188, %v3274, %v3434
        %v3581 = vsel %vm2189, %v3278, %v3438
        %v3582 = vsel %vm2190, %v3278, %v3438
        %v3583 = vsel %vm2175, %v3282, %v3442
        %v3584 = vsel %vm2176, %v3282, %v3442
        %v3585 = vsel %vm2177, %v3286, %v3446
        %v3586 = vsel %vm2178, %v3286, %v3446
        %v3587 = vsel %vm2179, %v3290, %v3450
        %v3588 = vsel %vm2180, %v3290, %v3450
        %v3589 = vsel %vm2181, %v3294, %v3454
        %v3590 = vsel %vm2182, %v3294, %v3454
        %v3591 = vsel %vm2183, %v3298, %v3458
        %v3592 = vsel %vm2184, %v3298, %v3458
        %v3593 = vsel %vm2185, %v3302, %v3462
        %v3594 = vsel %vm2186, %v3302, %v3462
        %v3595 = vsel %vm2187, %v3306, %v3466
        %v3596 = vsel %vm2188, %v3306, %v3466
        %v3597 = vsel %vm2189, %v3310, %v3470
        %v3598 = vsel %vm2190, %v3310, %v3470
        %v3599 = vsel %vm2175, %v3314, %v3474
        %v3600 = vsel %vm2176, %v3314, %v3474
        %v3601 = vsel %vm2177, %v3318, %v3478
        %v3602 = vsel %vm2178, %v3318, %v3478
        %v3603 = vsel %vm2179, %v3322, %v3482
        %v3604 = vsel %vm2180, %v3322, %v3482
        %v3605 = vsel %vm2181, %v3326, %v3486
        %v3606 = vsel %vm2182, %v3326, %v3486
        %v3607 = vsel %vm2183, %v3330, %v3490
        %v3608 = vsel %vm2184, %v3330, %v3490
        %v3609 = vsel %vm2185, %v3334, %v3494
        %v3610 = vsel %vm2186, %v3334, %v3494
        %v3611 = vsel %vm2187, %v3338, %v3498
        %v3612 = vsel %vm2188, %v3338, %v3498
        %v3613 = vsel %vm2189, %v3342, %v3502
        %v3614 = vsel %vm2190, %v3342, %v3502
        %v3615 = vsel %vm2175, %v3346, %v3506
        %v3616 = vsel %vm2176, %v3346, %v3506
        %v3617 = vsel %vm2177, %v3350, %v3510
        %v3618 = vsel %vm2178, %v3350, %v3510
        %v3619 = vsel %vm2179, %v3354, %v3514
        %v3620 = vsel %vm2180, %v3354, %v3514
        %v3621 = vsel %vm2181, %v3358, %v3518
        %v3622 = vsel %vm2182, %v3358, %v3518
        %v3623 = vsel %vm2183, %v3362, %v3522
        %v3624 = vsel %vm2184, %v3362, %v3522
        %v3625 = vsel %vm2185, %v3366, %v3526
        %v3626 = vsel %vm2186, %v3366, %v3526
        %v3627 = vsel %vm2187, %v3370, %v3530
        %v3628 = vsel %vm2188, %v3370, %v3530
        %v3629 = vsel %vm2189, %v3374, %v3534
        %v3630 = vsel %vm2190, %v3374, %v3534
        %v3631 = vsel %vm2639, %v1607, %v3567
        %v3632 = vsel %vm2640, %v1608, %v3568
        %v3633 = vsel %vm2641, %v1607, %v3569
        %v3634 = vsel %vm2642, %v1608, %v3570
        %v3635 = vsel %vm2643, %v1607, %v3571
        %v3636 = vsel %vm2644, %v1608, %v3572
        %v3637 = vsel %vm2645, %v1607, %v3573
        %v3638 = vsel %vm2646, %v1608, %v3574
        %v3639 = vsel %vm2647, %v1607, %v3575
        %v3640 = vsel %vm2648, %v1608, %v3576
        %v3641 = vsel %vm2649, %v1607, %v3577
        %v3642 = vsel %vm2650, %v1608, %v3578
        %v3643 = vsel %vm2651, %v1607, %v3579
        %v3644 = vsel %vm2652, %v1608, %v3580
        %v3645 = vsel %vm2653, %v1607, %v3581
        %v3646 = vsel %vm2654, %v1608, %v3582
        %v3647 = vsel %vm2639, %v1609, %v3583
        %v3648 = vsel %vm2640, %v1610, %v3584
        %v3649 = vsel %vm2641, %v1609, %v3585
        %v3650 = vsel %vm2642, %v1610, %v3586
        %v3651 = vsel %vm2643, %v1609, %v3587
        %v3652 = vsel %vm2644, %v1610, %v3588
        %v3653 = vsel %vm2645, %v1609, %v3589
        %v3654 = vsel %vm2646, %v1610, %v3590
        %v3655 = vsel %vm2647, %v1609, %v3591
        %v3656 = vsel %vm2648, %v1610, %v3592
        %v3657 = vsel %vm2649, %v1609, %v3593
        %v3658 = vsel %vm2650, %v1610, %v3594
        %v3659 = vsel %vm2651, %v1609, %v3595
        %v3660 = vsel %vm2652, %v1610, %v3596
        %v3661 = vsel %vm2653, %v1609, %v3597
        %v3662 = vsel %vm2654, %v1610, %v3598
        %v3663 = vsel %vm2639, %v1611, %v3599
        %v3664 = vsel %vm2640, %v1612, %v3600
        %v3665 = vsel %vm2641, %v1611, %v3601
        %v3666 = vsel %vm2642, %v1612, %v3602
        %v3667 = vsel %vm2643, %v1611, %v3603
        %v3668 = vsel %vm2644, %v1612, %v3604
        %v3669 = vsel %vm2645, %v1611, %v3605
        %v3670 = vsel %vm2646, %v1612, %v3606
        %v3671 = vsel %vm2647, %v1611, %v3607
        %v3672 = vsel %vm2648, %v1612, %v3608
        %v3673 = vsel %vm2649, %v1611, %v3609
        %v3674 = vsel %vm2650, %v1612, %v3610
        %v3675 = vsel %vm2651, %v1611, %v3611
        %v3676 = vsel %vm2652, %v1612, %v3612
        %v3677 = vsel %vm2653, %v1611, %v3613
        %v3678 = vsel %vm2654, %v1612, %v3614
        %v3679 = vsel %vm2639, %v1613, %v3615
        %v3680 = vsel %vm2640, %v1614, %v3616
        %v3681 = vsel %vm2641, %v1613, %v3617
        %v3682 = vsel %vm2642, %v1614, %v3618
        %v3683 = vsel %vm2643, %v1613, %v3619
        %v3684 = vsel %vm2644, %v1614, %v3620
        %v3685 = vsel %vm2645, %v1613, %v3621
        %v3686 = vsel %vm2646, %v1614, %v3622
        %v3687 = vsel %vm2647, %v1613, %v3623
        %v3688 = vsel %vm2648, %v1614, %v3624
        %v3689 = vsel %vm2649, %v1613, %v3625
        %v3690 = vsel %vm2650, %v1614, %v3626
        %v3691 = vsel %vm2651, %v1613, %v3627
        %v3692 = vsel %vm2652, %v1614, %v3628
        %v3693 = vsel %vm2653, %v1613, %v3629
        %v3694 = vsel %vm2654, %v1614, %v3630
        %v3695 = vsel %vm792, %v3631, -inf
        %v3696 = vsel %vm792, %v3633, -inf
        %v3697 = vmax.f32 %v3695, %v3696
        %v3698 = vsel %vm792, %v3635, -inf
        %v3699 = vmax.f32 %v3697, %v3698
        %v3700 = vsel %vm792, %v3637, -inf
        %v3701 = vmax.f32 %v3699, %v3700
        %v3702 = vsel %vm792, %v3639, -inf
        %v3703 = vmax.f32 %v3701, %v3702
        %v3704 = vsel %vm792, %v3641, -inf
        %v3705 = vmax.f32 %v3703, %v3704
        %v3706 = vsel %vm792, %v3643, -inf
        %v3707 = vmax.f32 %v3705, %v3706
        %v3708 = vsel %vm792, %v3645, -inf
        %v3709 = vmax.f32 %v3707, %v3708
        %v3710 = vsel %vm792, %v3632, -inf
        %v3711 = vsel %vm792, %v3634, -inf
        %v3712 = vmax.f32 %v3710, %v3711
        %v3713 = vsel %vm792, %v3636, -inf
        %v3714 = vmax.f32 %v3712, %v3713
        %v3715 = vsel %vm792, %v3638, -inf
        %v3716 = vmax.f32 %v3714, %v3715
        %v3717 = vsel %vm792, %v3640, -inf
        %v3718 = vmax.f32 %v3716, %v3717
        %v3719 = vsel %vm792, %v3642, -inf
        %v3720 = vmax.f32 %v3718, %v3719
        %v3721 = vsel %vm792, %v3644, -inf
        %v3722 = vmax.f32 %v3720, %v3721
        %v3723 = vsel %vm792, %v3646, -inf
        %v3724 = vmax.f32 %v3722, %v3723
        %v3725 = vsel %vm792, %v3647, -inf
        %v3726 = vsel %vm792, %v3649, -inf
        %v3727 = vmax.f32 %v3725, %v3726
        %v3728 = vsel %vm792, %v3651, -inf
        %v3729 = vmax.f32 %v3727, %v3728
        %v3730 = vsel %vm792, %v3653, -inf
        %v3731 = vmax.f32 %v3729, %v3730
        %v3732 = vsel %vm792, %v3655, -inf
        %v3733 = vmax.f32 %v3731, %v3732
        %v3734 = vsel %vm792, %v3657, -inf
        %v3735 = vmax.f32 %v3733, %v3734
        %v3736 = vsel %vm792, %v3659, -inf
        %v3737 = vmax.f32 %v3735, %v3736
        %v3738 = vsel %vm792, %v3661, -inf
        %v3739 = vmax.f32 %v3737, %v3738
        %v3740 = vsel %vm792, %v3648, -inf
        %v3741 = vsel %vm792, %v3650, -inf
        %v3742 = vmax.f32 %v3740, %v3741
        %v3743 = vsel %vm792, %v3652, -inf
        %v3744 = vmax.f32 %v3742, %v3743
        %v3745 = vsel %vm792, %v3654, -inf
        %v3746 = vmax.f32 %v3744, %v3745
        %v3747 = vsel %vm792, %v3656, -inf
        %v3748 = vmax.f32 %v3746, %v3747
        %v3749 = vsel %vm792, %v3658, -inf
        %v3750 = vmax.f32 %v3748, %v3749
        %v3751 = vsel %vm792, %v3660, -inf
        %v3752 = vmax.f32 %v3750, %v3751
        %v3753 = vsel %vm792, %v3662, -inf
        %v3754 = vmax.f32 %v3752, %v3753
        %v3755 = vsel %vm792, %v3663, -inf
        %v3756 = vsel %vm792, %v3665, -inf
        %v3757 = vmax.f32 %v3755, %v3756
        %v3758 = vsel %vm792, %v3667, -inf
        %v3759 = vmax.f32 %v3757, %v3758
        %v3760 = vsel %vm792, %v3669, -inf
        %v3761 = vmax.f32 %v3759, %v3760
        %v3762 = vsel %vm792, %v3671, -inf
        %v3763 = vmax.f32 %v3761, %v3762
        %v3764 = vsel %vm792, %v3673, -inf
        %v3765 = vmax.f32 %v3763, %v3764
        %v3766 = vsel %vm792, %v3675, -inf
        %v3767 = vmax.f32 %v3765, %v3766
        %v3768 = vsel %vm792, %v3677, -inf
        %v3769 = vmax.f32 %v3767, %v3768
        %v3770 = vsel %vm792, %v3664, -inf
        %v3771 = vsel %vm792, %v3666, -inf
        %v3772 = vmax.f32 %v3770, %v3771
        %v3773 = vsel %vm792, %v3668, -inf
        %v3774 = vmax.f32 %v3772, %v3773
        %v3775 = vsel %vm792, %v3670, -inf
        %v3776 = vmax.f32 %v3774, %v3775
        %v3777 = vsel %vm792, %v3672, -inf
        %v3778 = vmax.f32 %v3776, %v3777
        %v3779 = vsel %vm792, %v3674, -inf
        %v3780 = vmax.f32 %v3778, %v3779
        %v3781 = vsel %vm792, %v3676, -inf
        %v3782 = vmax.f32 %v3780, %v3781
        %v3783 = vsel %vm792, %v3678, -inf
        %v3784 = vmax.f32 %v3782, %v3783
        %v3785 = vsel %vm792, %v3679, -inf
        %v3786 = vsel %vm792, %v3681, -inf
        %v3787 = vmax.f32 %v3785, %v3786
        %v3788 = vsel %vm792, %v3683, -inf
        %v3789 = vmax.f32 %v3787, %v3788
        %v3790 = vsel %vm792, %v3685, -inf
        %v3791 = vmax.f32 %v3789, %v3790
        %v3792 = vsel %vm792, %v3687, -inf
        %v3793 = vmax.f32 %v3791, %v3792
        %v3794 = vsel %vm792, %v3689, -inf
        %v3795 = vmax.f32 %v3793, %v3794
        %v3796 = vsel %vm792, %v3691, -inf
        %v3797 = vmax.f32 %v3795, %v3796
        %v3798 = vsel %vm792, %v3693, -inf
        %v3799 = vmax.f32 %v3797, %v3798
        %v3800 = vsel %vm792, %v3680, -inf
        %v3801 = vsel %vm792, %v3682, -inf
        %v3802 = vmax.f32 %v3800, %v3801
        %v3803 = vsel %vm792, %v3684, -inf
        %v3804 = vmax.f32 %v3802, %v3803
        %v3805 = vsel %vm792, %v3686, -inf
        %v3806 = vmax.f32 %v3804, %v3805
        %v3807 = vsel %vm792, %v3688, -inf
        %v3808 = vmax.f32 %v3806, %v3807
        %v3809 = vsel %vm792, %v3690, -inf
        %v3810 = vmax.f32 %v3808, %v3809
        %v3811 = vsel %vm792, %v3692, -inf
        %v3812 = vmax.f32 %v3810, %v3811
        %v3813 = vsel %vm792, %v3694, -inf
        %v3814 = vmax.f32 %v3812, %v3813
        %3815 = vst.msk [vmem:[%s677] sm:$0xff] %vm792, %v2839
        %3816 = vst.msk [vmem:[%s677 + $0x8] sm:$0xff] %vm792, %v2840
        %3817 = vst.msk [vmem:[%s677 + $0x10] sm:$0xff] %vm792, %v2841
        %3818 = vst.msk [vmem:[%s677 + $0x18] sm:$0xff] %vm792, %v2842
        %3819 = vst.msk [vmem:[%s677 + $0x20] sm:$0xff] %vm792, %v2843
        %3820 = vst.msk [vmem:[%s677 + $0x28] sm:$0xff] %vm792, %v2844
        %3821 = vst.msk [vmem:[%s677 + $0x30] sm:$0xff] %vm792, %v2845
        %3822 = vst.msk [vmem:[%s677 + $0x38] sm:$0xff] %vm792, %v2846
        %3823 = vst.msk [vmem:[%s684] sm:$0xff] %vm792, %v3709
        %3824 = vst.msk [vmem:[%s684 + $0x8] sm:$0xff] %vm792, %v3724
        %3825 = vst.msk [vmem:[%s684 + $0x10] sm:$0xff] %vm792, %v3739
        %3826 = vst.msk [vmem:[%s684 + $0x18] sm:$0xff] %vm792, %v3754
        %3827 = vst.msk [vmem:[%s684 + $0x20] sm:$0xff] %vm792, %v3769
        %3828 = vst.msk [vmem:[%s684 + $0x28] sm:$0xff] %vm792, %v3784
        %3829 = vst.msk [vmem:[%s684 + $0x30] sm:$0xff] %vm792, %v3799
        %3830 = vst.msk [vmem:[%s684 + $0x38] sm:$0xff] %vm792, %v3814
        %v3831 = vld [vmem:[%s13] sm:$0xff]
        %v3832 = vld [vmem:[%s13 + $0x8] sm:$0xff]
        %v3833 = vld [vmem:[%s13 + $0x10] sm:$0xff]
        %v3834 = vld [vmem:[%s13 + $0x18] sm:$0xff]
        %v3835 = vld [vmem:[%s14] sm:$0xff]
        %v3836 = vld [vmem:[%s14 + $0x8] sm:$0xff]
        %v3837 = vld [vmem:[%s14 + $0x10] sm:$0xff]
        %v3838 = vld [vmem:[%s14 + $0x18] sm:$0xff]
        %v3840 = vsel %vm792, %v3709, 0
        %v3843 = vsel %vm792, %v3724, 0
        %v3846 = vsel %vm792, %v3739, 0
        %v3849 = vsel %vm792, %v3754, 0
        %v3852 = vsel %vm792, %v3769, 0
        %v3855 = vsel %vm792, %v3784, 0
        %v3858 = vsel %vm792, %v3799, 0
        %v3861 = vsel %vm792, %v3814, 0
        %3863 = vmatprep.subr.mxu0 0.0
        %3864 = vmatpush1.msra.mxu0 %v3835
        %3865 = vmatprep.subr.mxu0 0.0
        %3866 = vmatpush1.msra.mxu0 %v3836
        %3867 = vmatprep.subr.mxu0 0.0
        %3868 = vmatpush1.msra.mxu0 %v3837
        %3869 = vmatprep.subr.mxu0 0.0
        %3870 = vmatpush1.msra.mxu0 %v3838
        %3871 = vmatprep.subr.mxu0 0.0
        %3872 = vmatpush1.msra.mxu0 0.0
        %3873 = vmatprep.subr.mxu0 0.0
        %3874 = vmatpush1.msra.mxu0 0.0
        %3875 = vmatprep.subr.mxu0 0.0
        %3876 = vmatpush1.msra.mxu0 0.0
        %3877 = vmatprep.subr.mxu0 0.0
        %3878 = vmatpush1.msra.mxu0 0.0
        %3879 = vmatprep.subr.mxu0 0.0
        %3880 = vmatpush1.msra.mxu0 0.0
        %3881 = vmatprep.subr.mxu0 0.0
        %3882 = vmatpush1.msra.mxu0 0.0
        %3883 = vmatprep.subr.mxu0 0.0
        %3884 = vmatpush1.msra.mxu0 0.0
        %3885 = vmatprep.subr.mxu0 0.0
        %3886 = vmatpush1.msra.mxu0 0.0
        %3887 = vmatprep.subr.mxu0 0.0
        %3888 = vmatpush1.msra.mxu0 0.0
        %3889 = vmatprep.subr.mxu0 0.0
        %3890 = vmatpush1.msra.mxu0 0.0
        %3891 = vmatprep.subr.mxu0 0.0
        %3892 = vmatpush1.msra.mxu0 0.0
        %3893 = vmatprep.subr.mxu0 0.0
        %3894 = vmatpush1.msra.mxu0 0.0
        %3895 = vmatprep.subr.mxu0 0.0
        %3896 = vmatpush1.msra.mxu0 0.0
        %3897 = vmatprep.subr.mxu0 0.0
        %3898 = vmatpush1.msra.mxu0 0.0
        %3899 = vmatprep.subr.mxu0 0.0
        %3900 = vmatpush1.msra.mxu0 0.0
        %3901 = vmatprep.subr.mxu0 0.0
        %3902 = vmatpush1.msra.mxu0 0.0
        %3903 = vmatprep.subr.mxu0 0.0
        %3904 = vmatpush1.msra.mxu0 0.0
        %3905 = vmatprep.subr.mxu0 0.0
        %3906 = vmatpush1.msra.mxu0 0.0
        %3907 = vmatprep.subr.mxu0 0.0
        %3908 = vmatpush1.msra.mxu0 0.0
        %3909 = vmatprep.subr.mxu0 0.0
        %3910 = vmatpush1.msra.mxu0 0.0
        %3911 = vmatprep.subr.mxu0 0.0
        %3912 = vmatpush1.msra.mxu0 0.0
        %3913 = vmatprep.subr.mxu0 0.0
        %3914 = vmatpush1.msra.mxu0 0.0
        %3915 = vmatprep.subr.mxu0 0.0
        %3916 = vmatpush1.msra.mxu0 0.0
        %3917 = vmatprep.subr.mxu0 0.0
        %3918 = vmatpush1.msra.mxu0 0.0
        %3919 = vmatprep.subr.mxu0 0.0
        %3920 = vmatpush1.msra.mxu0 0.0
        %3921 = vmatprep.subr.mxu0 0.0
        %3922 = vmatpush1.msra.mxu0 0.0
        %3923 = vmatprep.subr.mxu0 0.0
        %3924 = vmatpush1.msra.mxu0 0.0
        %3925 = vmatprep.subr.mxu0 0.0
        %3926 = vmatpush1.msra.mxu0 0.0
        %3927 = vmatprep.mubr.f32.mxu0 0.0
        %3928 = vmatmul.mubr.f32.gmra.mrb[0].mxu0 %v3840
        %v3929 = vpop.f32.mrb[0].mxu0
        %v3930 = vadd.f32 0.0, %v3929
        %v3931 = vpop.f32.mrb[0].mxu0
        %3932 = vmatprep.mubr.f32.mxu0 0.0
        %3933 = vmatmul.mubr.f32.gmra.mrb[0].mxu0 %v3843
        %v3934 = vpop.f32.mrb[0].mxu0
        %v3935 = vadd.f32 0.0, %v3934
        %v3936 = vpop.f32.mrb[0].mxu0
        %3937 = vmatprep.mubr.f32.mxu0 0.0
        %3938 = vmatmul.mubr.f32.gmra.mrb[0].mxu0 %v3846
        %v3939 = vpop.f32.mrb[0].mxu0
        %v3940 = vadd.f32 0.0, %v3939
        %v3941 = vpop.f32.mrb[0].mxu0
        %3942 = vmatprep.mubr.f32.mxu0 0.0
        %3943 = vmatmul.mubr.f32.gmra.mrb[0].mxu0 %v3849
        %v3944 = vpop.f32.mrb[0].mxu0
        %v3945 = vadd.f32 0.0, %v3944
        %v3946 = vpop.f32.mrb[0].mxu0
        %3947 = vmatprep.mubr.f32.mxu0 0.0
        %3948 = vmatmul.mubr.f32.gmra.mrb[0].mxu0 %v3852
        %v3949 = vpop.f32.mrb[0].mxu0
        %v3950 = vadd.f32 0.0, %v3949
        %v3951 = vpop.f32.mrb[0].mxu0
        %3952 = vmatprep.mubr.f32.mxu0 0.0
        %3953 = vmatmul.mubr.f32.gmra.mrb[0].mxu0 %v3855
        %v3954 = vpop.f32.mrb[0].mxu0
        %v3955 = vadd.f32 0.0, %v3954
        %v3956 = vpop.f32.mrb[0].mxu0
        %3957 = vmatprep.mubr.f32.mxu0 0.0
        %3958 = vmatmul.mubr.f32.gmra.mrb[0].mxu0 %v3858
        %v3959 = vpop.f32.mrb[0].mxu0
        %v3960 = vadd.f32 0.0, %v3959
        %v3961 = vpop.f32.mrb[0].mxu0
        %3962 = vmatprep.mubr.f32.mxu0 0.0
        %3963 = vmatmul.mubr.f32.gmra.mrb[0].mxu0 %v3861
        %v3964 = vpop.f32.mrb[0].mxu0
        %v3965 = vadd.f32 0.0, %v3964
        %v3966 = vpop.f32.mrb[0].mxu0
        %3967 = vdwg.mxu0
        %v3969 = vsel %vm792, %v2839, 0
        %v3972 = vsel %vm792, %v2840, 0
        %v3975 = vsel %vm792, %v2841, 0
        %v3978 = vsel %vm792, %v2842, 0
        %v3981 = vsel %vm792, %v2843, 0
        %v3984 = vsel %vm792, %v2844, 0
        %v3987 = vsel %vm792, %v2845, 0
        %v3990 = vsel %vm792, %v2846, 0
        %3992 = vmatprep.subr.mxu0 0.0
        %3993 = vmatpush1.msra.mxu0 %v3831
        %3994 = vmatprep.subr.mxu0 0.0
        %3995 = vmatpush1.msra.mxu0 %v3832
        %3996 = vmatprep.subr.mxu0 0.0
        %3997 = vmatpush1.msra.mxu0 %v3833
        %3998 = vmatprep.subr.mxu0 0.0
        %3999 = vmatpush1.msra.mxu0 %v3834
        %4000 = vmatprep.subr.mxu0 0.0
        %4001 = vmatpush1.msra.mxu0 0.0
        %4002 = vmatprep.subr.mxu0 0.0
        %4003 = vmatpush1.msra.mxu0 0.0
        %4004 = vmatprep.subr.mxu0 0.0
        %4005 = vmatpush1.msra.mxu0 0.0
        %4006 = vmatprep.subr.mxu0 0.0
        %4007 = vmatpush1.msra.mxu0 0.0
        %4008 = vmatprep.subr.mxu0 0.0
        %4009 = vmatpush1.msra.mxu0 0.0
        %4010 = vmatprep.subr.mxu0 0.0
        %4011 = vmatpush1.msra.mxu0 0.0
        %4012 = vmatprep.subr.mxu0 0.0
        %4013 = vmatpush1.msra.mxu0 0.0
        %4014 = vmatprep.subr.mxu0 0.0
        %4015 = vmatpush1.msra.mxu0 0.0
        %4016 = vmatprep.subr.mxu0 0.0
        %4017 = vmatpush1.msra.mxu0 0.0
        %4018 = vmatprep.subr.mxu0 0.0
        %4019 = vmatpush1.msra.mxu0 0.0
        %4020 = vmatprep.subr.mxu0 0.0
        %4021 = vmatpush1.msra.mxu0 0.0
        %4022 = vmatprep.subr.mxu0 0.0
        %4023 = vmatpush1.msra.mxu0 0.0
        %4024 = vmatprep.subr.mxu0 0.0
        %4025 = vmatpush1.msra.mxu0 0.0
        %4026 = vmatprep.subr.mxu0 0.0
        %4027 = vmatpush1.msra.mxu0 0.0
        %4028 = vmatprep.subr.mxu0 0.0
        %4029 = vmatpush1.msra.mxu0 0.0
        %4030 = vmatprep.subr.mxu0 0.0
        %4031 = vmatpush1.msra.mxu0 0.0
        %4032 = vmatprep.subr.mxu0 0.0
        %4033 = vmatpush1.msra.mxu0 0.0
        %4034 = vmatprep.subr.mxu0 0.0
        %4035 = vmatpush1.msra.mxu0 0.0
        %4036 = vmatprep.subr.mxu0 0.0
        %4037 = vmatpush1.msra.mxu0 0.0
        %4038 = vmatprep.subr.mxu0 0.0
        %4039 = vmatpush1.msra.mxu0 0.0
        %4040 = vmatprep.subr.mxu0 0.0
        %4041 = vmatpush1.msra.mxu0 0.0
        %4042 = vmatprep.subr.mxu0 0.0
        %4043 = vmatpush1.msra.mxu0 0.0
        %4044 = vmatprep.subr.mxu0 0.0
        %4045 = vmatpush1.msra.mxu0 0.0
        %4046 = vmatprep.subr.mxu0 0.0
        %4047 = vmatpush1.msra.mxu0 0.0
        %4048 = vmatprep.subr.mxu0 0.0
        %4049 = vmatpush1.msra.mxu0 0.0
        %4050 = vmatprep.subr.mxu0 0.0
        %4051 = vmatpush1.msra.mxu0 0.0
        %4052 = vmatprep.subr.mxu0 0.0
        %4053 = vmatpush1.msra.mxu0 0.0
        %4054 = vmatprep.subr.mxu0 0.0
        %4055 = vmatpush1.msra.mxu0 0.0
        %4056 = vmatprep.mubr.f32.mxu0 0.0
        %4057 = vmatmul.mubr.f32.gmra.mrb[0].mxu0 %v3969
        %v4058 = vpop.f32.mrb[0].mxu0
        %v4059 = vadd.f32 %v3930, %v4058
        %v4060 = vpop.f32.mrb[0].mxu0
        %4061 = vmatprep.mubr.f32.mxu0 0.0
        %4062 = vmatmul.mubr.f32.gmra.mrb[0].mxu0 %v3972
        %v4063 = vpop.f32.mrb[0].mxu0
        %v4064 = vadd.f32 %v3935, %v4063
        %v4065 = vpop.f32.mrb[0].mxu0
        %4066 = vmatprep.mubr.f32.mxu0 0.0
        %4067 = vmatmul.mubr.f32.gmra.mrb[0].mxu0 %v3975
        %v4068 = vpop.f32.mrb[0].mxu0
        %v4069 = vadd.f32 %v3940, %v4068
        %v4070 = vpop.f32.mrb[0].mxu0
        %4071 = vmatprep.mubr.f32.mxu0 0.0
        %4072 = vmatmul.mubr.f32.gmra.mrb[0].mxu0 %v3978
        %v4073 = vpop.f32.mrb[0].mxu0
        %v4074 = vadd.f32 %v3945, %v4073
        %v4075 = vpop.f32.mrb[0].mxu0
        %4076 = vmatprep.mubr.f32.mxu0 0.0
        %4077 = vmatmul.mubr.f32.gmra.mrb[0].mxu0 %v3981
        %v4078 = vpop.f32.mrb[0].mxu0
        %v4079 = vadd.f32 %v3950, %v4078
        %v4080 = vpop.f32.mrb[0].mxu0
        %4081 = vmatprep.mubr.f32.mxu0 0.0
        %4082 = vmatmul.mubr.f32.gmra.mrb[0].mxu0 %v3984
        %v4083 = vpop.f32.mrb[0].mxu0
        %v4084 = vadd.f32 %v3955, %v4083
        %v4085 = vpop.f32.mrb[0].mxu0
        %4086 = vmatprep.mubr.f32.mxu0 0.0
        %4087 = vmatmul.mubr.f32.gmra.mrb[0].mxu0 %v3987
        %v4088 = vpop.f32.mrb[0].mxu0
        %v4089 = vadd.f32 %v3960, %v4088
        %v4090 = vpop.f32.mrb[0].mxu0
        %4091 = vmatprep.mubr.f32.mxu0 0.0
        %4092 = vmatmul.mubr.f32.gmra.mrb[0].mxu0 %v3990
        %v4093 = vpop.f32.mrb[0].mxu0
        %v4094 = vadd.f32 %v3965, %v4093
        %v4095 = vpop.f32.mrb[0].mxu0
        %4096 = vdwg.mxu0
        %v4097 = vld [vmem:[%s15] sm:$0x1]
        %v4099 = vlaneseq
        %v4100 = vshrl.u32 %v4099, 7
        %v4101 = vsub.s32 0, %v4100
        %v4102 = vrot.slane %v4097, %v4101
        %v4104 = vadd.f32 %v4059, %v4102
        %v4105 = vadd.f32 %v4064, %v4102
        %v4106 = vadd.f32 %v4069, %v4102
        %v4107 = vadd.f32 %v4074, %v4102
        %v4108 = vadd.f32 %v4079, %v4102
        %v4109 = vadd.f32 %v4084, %v4102
        %v4110 = vadd.f32 %v4089, %v4102
        %v4111 = vadd.f32 %v4094, %v4102
        %v4112 = vmax.f32 %v4104, 0.0
        %v4113 = vmax.f32 %v4105, 0.0
        %v4114 = vmax.f32 %v4106, 0.0
        %v4115 = vmax.f32 %v4107, 0.0
        %v4116 = vmax.f32 %v4108, 0.0
        %v4117 = vmax.f32 %v4109, 0.0
        %v4118 = vmax.f32 %v4110, 0.0
        %v4119 = vmax.f32 %v4111, 0.0
        %v4120 = vld [vmem:[%s16] sm:$0xff]
        %v4121 = vld [vmem:[%s16 + $0x8] sm:$0xff]
        %v4122 = vld [vmem:[%s16 + $0x10] sm:$0xff]
        %v4123 = vld [vmem:[%s16 + $0x18] sm:$0xff]
        %v4124 = vld [vmem:[#allocation2] sm:$0x1]
        %v4126 = vlaneseq
        %v4127 = vshrl.u32 %v4126, 7
        %v4128 = vsub.s32 0, %v4127
        %v4129 = vrot.slane %v4124, %v4128
        %v4132 = vsel %vm792, %v4112, 0
        %v4135 = vsel %vm792, %v4113, 0
        %v4138 = vsel %vm792, %v4114, 0
        %v4141 = vsel %vm792, %v4115, 0
        %v4144 = vsel %vm792, %v4116, 0
        %v4147 = vsel %vm792, %v4117, 0
        %v4150 = vsel %vm792, %v4118, 0
        %v4153 = vsel %vm792, %v4119, 0
        %4155 = vmatprep.subr.mxu0 0.0
        %4156 = vmatpush1.msra.mxu0 %v4120
        %4157 = vmatprep.subr.mxu0 0.0
        %4158 = vmatpush1.msra.mxu0 %v4121
        %4159 = vmatprep.subr.mxu0 0.0
        %4160 = vmatpush1.msra.mxu0 %v4122
        %4161 = vmatprep.subr.mxu0 0.0
        %4162 = vmatpush1.msra.mxu0 %v4123
        %4163 = vmatprep.subr.mxu0 0.0
        %4164 = vmatpush1.msra.mxu0 0.0
        %4165 = vmatprep.subr.mxu0 0.0
        %4166 = vmatpush1.msra.mxu0 0.0
        %4167 = vmatprep.subr.mxu0 0.0
        %4168 = vmatpush1.msra.mxu0 0.0
        %4169 = vmatprep.subr.mxu0 0.0
        %4170 = vmatpush1.msra.mxu0 0.0
        %4171 = vmatprep.subr.mxu0 0.0
        %4172 = vmatpush1.msra.mxu0 0.0
        %4173 = vmatprep.subr.mxu0 0.0
        %4174 = vmatpush1.msra.mxu0 0.0
        %4175 = vmatprep.subr.mxu0 0.0
        %4176 = vmatpush1.msra.mxu0 0.0
        %4177 = vmatprep.subr.mxu0 0.0
        %4178 = vmatpush1.msra.mxu0 0.0
        %4179 = vmatprep.subr.mxu0 0.0
        %4180 = vmatpush1.msra.mxu0 0.0
        %4181 = vmatprep.subr.mxu0 0.0
        %4182 = vmatpush1.msra.mxu0 0.0
        %4183 = vmatprep.subr.mxu0 0.0
        %4184 = vmatpush1.msra.mxu0 0.0
        %4185 = vmatprep.subr.mxu0 0.0
        %4186 = vmatpush1.msra.mxu0 0.0
        %4187 = vmatprep.subr.mxu0 0.0
        %4188 = vmatpush1.msra.mxu0 0.0
        %4189 = vmatprep.subr.mxu0 0.0
        %4190 = vmatpush1.msra.mxu0 0.0
        %4191 = vmatprep.subr.mxu0 0.0
        %4192 = vmatpush1.msra.mxu0 0.0
        %4193 = vmatprep.subr.mxu0 0.0
        %4194 = vmatpush1.msra.mxu0 0.0
        %4195 = vmatprep.subr.mxu0 0.0
        %4196 = vmatpush1.msra.mxu0 0.0
        %4197 = vmatprep.subr.mxu0 0.0
        %4198 = vmatpush1.msra.mxu0 0.0
        %4199 = vmatprep.subr.mxu0 0.0
        %4200 = vmatpush1.msra.mxu0 0.0
        %4201 = vmatprep.subr.mxu0 0.0
        %4202 = vmatpush1.msra.mxu0 0.0
        %4203 = vmatprep.subr.mxu0 0.0
        %4204 = vmatpush1.msra.mxu0 0.0
        %4205 = vmatprep.subr.mxu0 0.0
        %4206 = vmatpush1.msra.mxu0 0.0
        %4207 = vmatprep.subr.mxu0 0.0
        %4208 = vmatpush1.msra.mxu0 0.0
        %4209 = vmatprep.subr.mxu0 0.0
        %4210 = vmatpush1.msra.mxu0 0.0
        %4211 = vmatprep.subr.mxu0 0.0
        %4212 = vmatpush1.msra.mxu0 0.0
        %4213 = vmatprep.subr.mxu0 0.0
        %4214 = vmatpush1.msra.mxu0 0.0
        %4215 = vmatprep.subr.mxu0 0.0
        %4216 = vmatpush1.msra.mxu0 0.0
        %4217 = vmatprep.subr.mxu0 0.0
        %4218 = vmatpush1.msra.mxu0 0.0
        %4219 = vmatprep.mubr.f32.mxu0 0.0
        %4220 = vmatmul.mubr.f32.gmra.mrb[0].mxu0 %v4132
        %v4221 = vpop.f32.mrb[0].mxu0
        %v4222 = vadd.f32 %v4129, %v4221
        %v4223 = vpop.f32.mrb[0].mxu0
        %4224 = vmatprep.mubr.f32.mxu0 0.0
        %4225 = vmatmul.mubr.f32.gmra.mrb[0].mxu0 %v4135
        %v4226 = vpop.f32.mrb[0].mxu0
        %v4227 = vadd.f32 %v4129, %v4226
        %v4228 = vpop.f32.mrb[0].mxu0
        %4229 = vmatprep.mubr.f32.mxu0 0.0
        %4230 = vmatmul.mubr.f32.gmra.mrb[0].mxu0 %v4138
        %v4231 = vpop.f32.mrb[0].mxu0
        %v4232 = vadd.f32 %v4129, %v4231
        %v4233 = vpop.f32.mrb[0].mxu0
        %4234 = vmatprep.mubr.f32.mxu0 0.0
        %4235 = vmatmul.mubr.f32.gmra.mrb[0].mxu0 %v4141
        %v4236 = vpop.f32.mrb[0].mxu0
        %v4237 = vadd.f32 %v4129, %v4236
        %v4238 = vpop.f32.mrb[0].mxu0
        %4239 = vmatprep.mubr.f32.mxu0 0.0
        %4240 = vmatmul.mubr.f32.gmra.mrb[0].mxu0 %v4144
        %v4241 = vpop.f32.mrb[0].mxu0
        %v4242 = vadd.f32 %v4129, %v4241
        %v4243 = vpop.f32.mrb[0].mxu0
        %4244 = vmatprep.mubr.f32.mxu0 0.0
        %4245 = vmatmul.mubr.f32.gmra.mrb[0].mxu0 %v4147
        %v4246 = vpop.f32.mrb[0].mxu0
        %v4247 = vadd.f32 %v4129, %v4246
        %v4248 = vpop.f32.mrb[0].mxu0
        %4249 = vmatprep.mubr.f32.mxu0 0.0
        %4250 = vmatmul.mubr.f32.gmra.mrb[0].mxu0 %v4150
        %v4251 = vpop.f32.mrb[0].mxu0
        %v4252 = vadd.f32 %v4129, %v4251
        %v4253 = vpop.f32.mrb[0].mxu0
        %4254 = vmatprep.mubr.f32.mxu0 0.0
        %4255 = vmatmul.mubr.f32.gmra.mrb[0].mxu0 %v4153
        %v4256 = vpop.f32.mrb[0].mxu0
        %v4257 = vadd.f32 %v4129, %v4256
        %v4258 = vpop.f32.mrb[0].mxu0
        %4259 = vdwg.mxu0
        %vm4260 = vcmask 7168
        %4261 = vst.msk [vmem:[%s724] sm:$0xff] %vm4260, %v4222
        %4262 = vst.msk [vmem:[%s724 + $0x8] sm:$0xff] %vm4260, %v4227
        %4263 = vst.msk [vmem:[%s724 + $0x10] sm:$0xff] %vm4260, %v4232
        %4264 = vst.msk [vmem:[%s724 + $0x18] sm:$0xff] %vm4260, %v4237
        %4265 = vst.msk [vmem:[%s724 + $0x20] sm:$0xff] %vm4260, %v4242
        %4266 = vst.msk [vmem:[%s724 + $0x28] sm:$0xff] %vm4260, %v4247
        %4267 = vst.msk [vmem:[%s724 + $0x30] sm:$0xff] %vm4260, %v4252
        %4268 = vst.msk [vmem:[%s724 + $0x38] sm:$0xff] %vm4260, %v4257
        %s4269 = sand.u32 %s446, 1
        %s4270 = scalar_lea.sflag [#allocation4], %s4269
        %s4271 = sand.u32 %s446, 1
        %s4272 = smul.addr %s4271, 64
        %s4273 = scalar_lea.vmem [#allocation3], %s4272
        %s4274 = sand.u32 %s472, 1
        %s4275 = scalar_lea.sflag [#allocation6], %s4274
        %s4276 = sand.u32 %s472, 1
        %s4277 = smul.addr %s4276, 64
        %s4278 = scalar_lea.vmem [#allocation5], %s4277
        %s4279 = smul.u32 4, %s40
        %p4280 = scmp.lt.s32.totalorder %s4279, 7
        %s4281 = scalar_select %p4280, %s4279, 7
        %s4282 = smul.addr %s4281, 2
        %s4283 = smul.addr %s4282, 8
        %s4284 = scalar_lea.vmem %s20, %s4283
        // Predicated region
        $region93: #{tpu_custom_call.1} parent=91 // pred_check
          %p4285 = pneg %p456
        $region94: #{tpu_custom_call.1} parent=91 // pred_check_branch
          %4287 = sbr.rel (%p4285) target = $region96
        $region95: #{tpu_custom_call.1} parent=91 // pred_region
          %s4288 = smul.u32 4, %s40
          %s4290 = ssub.s32 1024, 1024
          %4291 = vsyncadd %s4270, %s4290
          %s4292 = smul.addr %s4288, 2
          %s4293 = smul.addr %s4292, 128
          %s4294 = scalar_lea.hbm %s18, %s4293
          %s4295 = sshll.u32 %s4273, 4
          %s4296 = int_to_ptr.vmem [resolvable:$true] %s4295
          %4301 = dma.vmem_to_hbm [thread:$0]  %s4296, 1024, %s4294, %s4270, 128, 128, 8
        $region96: #{tpu_custom_call.1} parent=91 // pred_fallthru
          _
        // Predicated region
        $region97: #{tpu_custom_call.1} parent=91 // pred_check
          %p4302 = pneg %p482
        $region98: #{tpu_custom_call.1} parent=91 // pred_check_branch
          %4304 = sbr.rel (%p4302) target = $region100
        $region99: #{tpu_custom_call.1} parent=91 // pred_region
          %s4305 = smul.u32 4, %s40
          %s4307 = ssub.s32 1024, 1024
          %4308 = vsyncadd %s4275, %s4307
          %s4309 = smul.addr %s4305, 2
          %s4310 = smul.addr %s4309, 128
          %s4311 = scalar_lea.hbm %s19, %s4310
          %s4312 = sshll.u32 %s4278, 4
          %s4313 = int_to_ptr.vmem [resolvable:$true] %s4312
          %4318 = dma.vmem_to_hbm [thread:$0]  %s4313, 1024, %s4311, %s4275, 128, 128, 8
        $region100: #{tpu_custom_call.1} parent=91 // pred_fallthru
          _
        // Predicated region
        $region101: #{tpu_custom_call.1} parent=91 // pred_check
          %p4319 = pneg %p508
        $region102: #{tpu_custom_call.1} parent=91 // pred_check_branch
          %4321 = sbr.rel (%p4319) target = $region104
        $region103: #{tpu_custom_call.1} parent=91 // pred_region
          %s4322 = smul.u32 4, %s40
        $region104: #{tpu_custom_call.1} parent=91 // pred_fallthru
          _
      $region92: #{tpu_custom_call.1} parent=5 // pred_fallthru
        _
      %p4323 = scmp.le.s32.totalorder 2, %s35
      // Predicated region
      $region105: #{tpu_custom_call.1} parent=5 // pred_check
        %p4324 = pneg %p4323
      $region106: #{tpu_custom_call.1} parent=5 // pred_check_branch
        %4326 = sbr.rel (%p4324) target = $region108
      $region107: #{tpu_custom_call.1} parent=5 // pred_region
        %s4327 = ssub.s32 %s35, 2
        // Predicated region
        $region109: #{tpu_custom_call.1} parent=107 // pred_check
          %p4328 = pneg %p462
        $region110: #{tpu_custom_call.1} parent=107 // pred_check_branch
          %4330 = sbr.rel (%p4328) target = $region112
        $region111: #{tpu_custom_call.1} parent=107 // pred_region
          %s4331 = sand.u32 %s447, 1
          %s4332 = scalar_lea.sflag [#allocation4], %s4331
          %s4333 = sand.u32 %s447, 1
          %s4334 = smul.addr %s4333, 64
          %s4335 = scalar_lea.vmem [#allocation3], %s4334
          %4336 = dma.done %s4332, 1024
        $region112: #{tpu_custom_call.1} parent=107 // pred_fallthru
          _
        // Predicated region
        $region113: #{tpu_custom_call.1} parent=107 // pred_check
          %p4337 = pneg %p488
        $region114: #{tpu_custom_call.1} parent=107 // pred_check_branch
          %4339 = sbr.rel (%p4337) target = $region116
        $region115: #{tpu_custom_call.1} parent=107 // pred_region
          %s4340 = sand.u32 %s473, 1
          %s4341 = scalar_lea.sflag [#allocation6], %s4340
          %s4342 = sand.u32 %s473, 1
          %s4343 = smul.addr %s4342, 64
          %s4344 = scalar_lea.vmem [#allocation5], %s4343
          %4345 = dma.done %s4341, 1024
        $region116: #{tpu_custom_call.1} parent=107 // pred_fallthru
          _
        // Predicated region
        $region117: #{tpu_custom_call.1} parent=107 // pred_check
          %p4346 = pneg %p514
        $region118: #{tpu_custom_call.1} parent=107 // pred_check_branch
          %4348 = sbr.rel (%p4346) target = $region120
        $region119: #{tpu_custom_call.1} parent=107 // pred_region
          %s4349 = smul.u32 4, %s41
          %p4350 = scmp.lt.s32.totalorder %s4349, 7
          %s4351 = scalar_select %p4350, %s4349, 7
          %s4352 = smul.addr %s4351, 2
          %s4353 = smul.addr %s4352, 8
          %s4354 = scalar_lea.vmem %s20, %s4353
        $region120: #{tpu_custom_call.1} parent=107 // pred_fallthru
          _
      $region108: #{tpu_custom_call.1} parent=5 // pred_fallthru
        _
    $region6: #{tpu_custom_call.1} parent=1 // loop_footer
      %s39 = sadd.s32 1, %s35
    $region7: #{tpu_custom_call.1} parent=1 // loop_footer_branch
      %34 = sbr.rel target = $region3
    $region8: #{tpu_custom_call.1} parent=1 // loop_exit
      _
    %4355 = vsyncpa [#allocation4], 1
    %s4356 = scalar_lea.sflag [#allocation4], 1
    %4357 = vsyncpa %s4356, 1
    %4358 = vsyncpa [#allocation6], 1
    %s4359 = scalar_lea.sflag [#allocation6], 1
    %4360 = vsyncpa %s4359, 1

</llo_original>
